<compile_context>
chip_gen: v5e
topology: v5e:2x2
jax: 0.10.0
libtpu: 0.0.40
codegen_flags: <defaults>
</compile_context>

<pallas_src>
import functools

import jax
import jax.numpy as jnp
from jax.experimental import pallas as pl
from jax.experimental.pallas import tpu as pltpu

FEATURE_DIM = 100   # torch module's feature_dim (use_cos=False)
HIDDEN_DIM = 100
PAD = 128           # zero-padded feature/hidden width used inside the kernel
AUG = PAD + 8       # W1^T rows padded to 136: rows 0:128 = W1^T, row 128 = w3_enc^T


def onf_kernel(
    xt_ref,   # (2, TM)   f32   coordinate rows (x in row 0, y in row 1)
    we_ref,   # (128, 2)  f32   encoding weights^T (mean/sigma folded in)
    be_ref,   # (128, 1)  f32   encoding bias^T    (mean/sigma folded in)
    w1a_ref,  # (136, 128) bf16 rows 0:128 = W1^T, row 128 = w3_enc^T, rest 0
    b1_ref,   # (128, 1)  f32
    w2t_ref,  # (128, 128) bf16 W2^T
    b2_ref,   # (128, 1)  f32
    w3h_ref,  # (8, 128)  bf16  row 0 = w3_hidden^T, rows 1:8 zero
    b3_ref,   # (1, 1)    f32
    o_ref,    # (1, TM)   f32   lane-dense output row
    *,
    use_bf16_sin,
):
    # Encoding layer as a VPU broadcast-FMA (replaces the K=2 MXU matmul).
    x0 = xt_ref[0:1, :]                                   # (1, TM)
    x1 = xt_ref[1:2, :]                                   # (1, TM)
    pre = we_ref[:, 0:1] * x0 + we_ref[:, 1:2] * x1 + be_ref[...]   # (128, TM) f32
    if use_bf16_sin:
        # v6e/v7x: bf16 VPU -> ~2x fewer VALU issues for the sin polynomial.
        enc_bf = jnp.sin(pre.astype(jnp.bfloat16))
    else:
        enc_bf = jnp.sin(pre).astype(jnp.bfloat16)        # (128, TM) bf16

    # First MLP layer fused with the enc part of mlp2:
    #   rows 0:128  -> W1^T @ enc   (pre-bias h1)
    #   row  128    -> w3_enc^T @ enc  (carried straight to the output)
    g = jnp.dot(w1a_ref[...], enc_bf, preferred_element_type=jnp.float32)  # (136, TM)
    h1 = jnp.maximum(g[:PAD, :] + b1_ref[...], 0.0).astype(jnp.bfloat16)
    enc_out = g[PAD:PAD + 1, :]                            # (1, TM)

    h2 = jnp.maximum(
        jnp.dot(w2t_ref[...], h1, preferred_element_type=jnp.float32) + b2_ref[...],
        0.0,
    ).astype(jnp.bfloat16)                                 # (128, TM)

    # Hidden part of mlp2 (ReLU intervenes, so it cannot be folded into W2).
    out_h = jnp.dot(w3h_ref[...], h2, preferred_element_type=jnp.float32)  # (8, TM)
    out = out_h[0:1, :] + enc_out + b3_ref[...]            # (1, TM)
    o_ref[...] = out.astype(o_ref.dtype)


def _prepare_kernel_params(params):
    """Fold (x - mean)/sigma into the encoding layer, transpose to feature-major,
    zero-pad 100 -> 128, fuse w3_enc into W1^T, and cast MXU weights to bf16."""
    f32 = jnp.float32
    mean = params["mean"].astype(f32).reshape(1, 2)
    sigma = params["sigma"].astype(f32).reshape(1, 2)
    w_enc = params["w_enc"].astype(f32)            # (2, 100)
    b_enc = params["b_enc"].astype(f32)            # (1, 100)

    # ((x - mean)/sigma) @ W + b == x @ (W / sigma^T) + (b - (mean/sigma) @ W)
    we_eff = w_enc / sigma.reshape(2, 1)           # (2, 100)
    be_eff = b_enc - (mean / sigma) @ w_enc        # (1, 100)

    pf = PAD - FEATURE_DIM
    weT = jnp.pad(we_eff.T, ((0, pf), (0, 0)))                     # (128, 2)
    beT = jnp.pad(be_eff.T, ((0, pf), (0, 0)))                     # (128, 1)

    w1t = jnp.pad(params["w1"].astype(f32), ((0, pf), (0, pf))).T  # (128, 128)
    b1T = jnp.pad(params["b1"].astype(f32).T, ((0, pf), (0, 0)))   # (128, 1)
    w2t = jnp.pad(params["w2"].astype(f32), ((0, pf), (0, pf))).T  # (128, 128)
    b2T = jnp.pad(params["b2"].astype(f32).T, ((0, pf), (0, 0)))   # (128, 1)

    w3 = params["w3"].astype(f32)                                  # (200, 1)
    w3h = jnp.pad(w3[:HIDDEN_DIM].T, ((0, 7), (0, pf)))            # (8, 128) row 0 live
    w3e = jnp.pad(w3[HIDDEN_DIM:].T, ((0, 0), (0, pf)))            # (1, 128)

    # Fuse w3_enc^T as an extra row of W1^T (shares the enc MXU pass).
    w1a = jnp.concatenate(
        [w1t, w3e, jnp.zeros((AUG - PAD - 1, PAD), f32)], axis=0)  # (136, 128)

    return (
        weT, beT,
        w1a.astype(jnp.bfloat16), b1T,
        w2t.astype(jnp.bfloat16), b2T,
        w3h.astype(jnp.bfloat16),
        params["b3"].astype(f32).reshape(1, 1),
    )


def _round_up(a, m):
    return ((a + m - 1) // m) * m


_BF16_SIN_SUPPORTED = None


def bf16_sin_supported():
    """Probe whether jnp.sin on bf16 lowers on this backend (v6e/v7x fast path)."""
    global _BF16_SIN_SUPPORTED
    if _BF16_SIN_SUPPORTED is None:
        try:
            def probe(x_ref, o_ref):
                o_ref[...] = jnp.sin(x_ref[...].astype(jnp.bfloat16)).astype(jnp.float32)

            y = pl.pallas_call(
                probe, out_shape=jax.ShapeDtypeStruct((8, 128), jnp.float32)
            )(jnp.zeros((8, 128), jnp.float32))
            jax.block_until_ready(y)
            _BF16_SIN_SUPPORTED = True
        except Exception:
            _BF16_SIN_SUPPORTED = False
    return _BF16_SIN_SUPPORTED


def onf_forward(x, params, *, tile_m=4096, use_bf16_sin=None):
    """x: (N, C >= 2) float32. Returns (N, 1) float32."""
    n, c = x.shape
    assert c >= 2
    if use_bf16_sin is None:
        use_bf16_sin = bf16_sin_supported()

    kparams = _prepare_kernel_params(params)

    # Tile selection: large lane-dense tiles amortize the ~0.35us per-grid-step
    # overhead; keep the tile count even (when >1) so the "parallel" axis splits
    # evenly across v7x's two TensorCores.
    n128 = _round_up(n, 128)
    tm = min(_round_up(tile_m, 128), n128)
    num_tiles = (n128 + tm - 1) // tm
    if num_tiles > 1 and num_tiles % 2 == 1:
        num_tiles += 1
        tm = _round_up((n128 + num_tiles - 1) // num_tiles, 128)
        num_tiles = (n128 + tm - 1) // tm
    n_pad = num_tiles * tm

    # Lane-dense input: (2, N) coordinate rows (one cheap fused XLA transpose).
    xt = jnp.transpose(x[:, :2].astype(jnp.float32))
    if n_pad != n:
        xt = jnp.pad(xt, ((0, 0), (0, n_pad - n)))

    full = lambda i: (0, 0)
    kernel = functools.partial(onf_kernel, use_bf16_sin=use_bf16_sin)
    out = pl.pallas_call(
        kernel,
        out_shape=jax.ShapeDtypeStruct((1, n_pad), jnp.float32),
        grid_spec=pltpu.PrefetchScalarGridSpec(
            num_scalar_prefetch=0,
            grid=(num_tiles,),
            in_specs=[
                pl.BlockSpec((2, tm), lambda i: (0, i)),
                pl.BlockSpec((PAD, 2), full),
                pl.BlockSpec((PAD, 1), full),
                pl.BlockSpec((AUG, PAD), full),
                pl.BlockSpec((PAD, 1), full),
                pl.BlockSpec((PAD, PAD), full),
                pl.BlockSpec((PAD, 1), full),
                pl.BlockSpec((8, PAD), full),
                pl.BlockSpec((1, 1), full),
            ],
            out_specs=pl.BlockSpec((1, tm), lambda i: (0, i)),
        ),
        compiler_params=pltpu.CompilerParams(
            dimension_semantics=("parallel",),
            # Headroom for tile_m up to 4096 even on v5e (default scoped 16 MiB).
            vmem_limit_bytes=32 * 1024 * 1024,
        ),
    )(xt, *kparams)
    return out[0, :n].reshape(n, 1)


def init_params(key, mean, sigma):
    """Deterministic parameter init (shapes from ONF.__init__, feature_dim=100)."""
    ks = jax.random.split(key, 8)

    def linear(kw, kb, fan_in, fan_out):
        # PyTorch default Linear init: U(-1/sqrt(fan_in), 1/sqrt(fan_in))
        bound = 1.0 / jnp.sqrt(fan_in)
        w = jax.random.uniform(kw, (fan_in, fan_out), jnp.float32, -bound, bound)
        b = jax.random.uniform(kb, (1, fan_out), jnp.float32, -bound, bound)
        return w, b

    w_enc, b_enc = linear(ks[0], ks[1], 2, FEATURE_DIM)
    w1, b1 = linear(ks[2], ks[3], FEATURE_DIM, HIDDEN_DIM)
    w2, b2 = linear(ks[4], ks[5], HIDDEN_DIM, HIDDEN_DIM)
    w3, b3 = linear(ks[6], ks[7], HIDDEN_DIM + FEATURE_DIM, 1)

    return {
        "mean": jnp.asarray(mean, jnp.float32).reshape(1, 2),
        "sigma": jnp.asarray(sigma, jnp.float32).reshape(1, 2),
        "w_enc": w_enc, "b_enc": b_enc,
        "w1": w1, "b1": b1,
        "w2": w2, "b2": b2,
        "w3": w3, "b3": b3,
    }


def onf_reference(x, p):
    """Pure-JAX f32 reference (exact torch-module semantics)."""
    x2 = (x[:, :2] - p["mean"]) / p["sigma"]
    enc = jnp.sin(x2 @ p["w_enc"] + p["b_enc"])
    h = jnp.maximum(enc @ p["w1"] + p["b1"], 0.0)
    h = jnp.maximum(h @ p["w2"] + p["b2"], 0.0)
    cat = jnp.concatenate([h, enc], axis=1)
    return cat @ p["w3"] + p["b3"]


def onf_reference_matched(x, p, use_bf16_sin):
    """Reference mirroring the kernel's precision decisions (bf16 MXU, f32 acc,
    optional bf16 sin argument)."""
    bf = jnp.bfloat16
    x2 = (x[:, :2] - p["mean"]) / p["sigma"]
    pre = x2 @ p["w_enc"] + p["b_enc"]
    if use_bf16_sin:
        enc_bf = jnp.sin(pre.astype(bf))
    else:
        enc_bf = jnp.sin(pre).astype(bf)
    h = jnp.maximum(
        jnp.dot(enc_bf, p["w1"].astype(bf), preferred_element_type=jnp.float32)
        + p["b1"], 0.0)
    h = jnp.maximum(
        jnp.dot(h.astype(bf), p["w2"].astype(bf), preferred_element_type=jnp.float32)
        + p["b2"], 0.0)
    w3 = p["w3"].astype(bf)
    return (
        jnp.dot(h.astype(bf), w3[:HIDDEN_DIM], preferred_element_type=jnp.float32)
        + jnp.dot(enc_bf, w3[HIDDEN_DIM:], preferred_element_type=jnp.float32)
        + p["b3"]
    )


if __name__ == "__main__":
    key = jax.random.PRNGKey(0)
    k_param, k_x = jax.random.split(key)

    # mean / sigma as in planner usage: 2-D position normalization constants
    params = init_params(k_param, mean=[0.5, 0.5], sigma=[2.0, 2.0])

    used_bf16_sin = bf16_sin_supported()

    # input: N points with (x, y, angle) - angle column unused (angle_encoding=False).
    # N deliberately NOT a multiple of 128 so the ragged-batch padding path runs.
    N = 200
    x = jax.random.uniform(k_x, (N, 3), jnp.float32, -3.0, 3.0)

    out = jax.block_until_ready(onf_forward(x, params))

    ref_match = onf_reference_matched(x, params, used_bf16_sin)
    ref_f32 = onf_reference(x, params)

    assert out.shape == (N, 1)
    assert bool(jnp.all(jnp.isfinite(out)))
    assert jnp.allclose(out, ref_match, atol=3e-2, rtol=3e-2), (
        f"matched max abs err {float(jnp.max(jnp.abs(out - ref_match)))}"
    )
    assert jnp.allclose(out, ref_f32, atol=8e-2, rtol=8e-2), (
        f"f32 max abs err {float(jnp.max(jnp.abs(out - ref_f32)))}"
    )

    # Multi-tile path (even grid for v7x megacore) with ragged padding.
    N2 = 1000
    x2 = jax.random.uniform(jax.random.PRNGKey(1), (N2, 3), jnp.float32, -3.0, 3.0)
    out2 = jax.block_until_ready(onf_forward(x2, params, tile_m=512))
    ref2 = onf_reference_matched(x2, params, used_bf16_sin)
    assert out2.shape == (N2, 1)
    assert jnp.allclose(out2, ref2, atol=3e-2, rtol=3e-2), (
        f"multi-tile max abs err {float(jnp.max(jnp.abs(out2 - ref2)))}"
    )

    print("KERNEL_OK")
</pallas_src>

<mosaic_0001>
module attributes {stable_mosaic.version = 11 : i64} {
  func.func @probe(%arg0: memref<8x128xf32, #tpu.memory_space<vmem>>, %arg1: memref<8x128xf32, #tpu.memory_space<vmem>>) attributes {dimension_semantics = [], scalar_prefetch = 0 : i64, scratch_operands = 0 : i64, tpu.core_type = #tpu.core_type<tc>} {
    %c0 = arith.constant 0 : index
    %c0_0 = arith.constant 0 : index
    %0 = vector.load %arg0[%c0, %c0_0] : memref<8x128xf32, #tpu.memory_space<vmem>>, vector<8x128xf32>
    %1 = arith.truncf %0 : vector<8x128xf32> to vector<8x128xbf16>
    %2 = math.sin %1 : vector<8x128xbf16>
    %3 = arith.extf %2 : vector<8x128xbf16> to vector<8x128xf32>
    %c0_1 = arith.constant 0 : index
    %c0_2 = arith.constant 0 : index
    %4 = vector.load %arg1[%c0_1, %c0_2] : memref<8x128xf32, #tpu.memory_space<vmem>>, vector<8x128xf32>
    tpu.vector_store %arg1[%c0_1, %c0_2], %3 {strides = array<i32>} : memref<8x128xf32, #tpu.memory_space<vmem>>, vector<8x128xf32>,
    return
  }
}

module attributes {stable_mosaic.version = 11 : i64} {
  func.func @onf_kernel(%arg0: i32, %arg1: memref<2x256xf32, #tpu.memory_space<vmem>>, %arg2: memref<128x2xf32, #tpu.memory_space<vmem>>, %arg3: memref<128x1xf32, #tpu.memory_space<vmem>>, %arg4: memref<136x128xbf16, #tpu.memory_space<vmem>>, %arg5: memref<128x1xf32, #tpu.memory_space<vmem>>, %arg6: memref<128x128xbf16, #tpu.memory_space<vmem>>, %arg7: memref<128x1xf32, #tpu.memory_space<vmem>>, %arg8: memref<8x128xbf16, #tpu.memory_space<vmem>>, %arg9: memref<1x1xf32, #tpu.memory_space<vmem>>, %arg10: memref<1x256xf32, #tpu.memory_space<vmem>>) attributes {dimension_semantics = [#tpu.dimension_semantics<parallel>], iteration_bounds = array<i64: 1>, scalar_prefetch = 0 : i64, scratch_operands = 0 : i64, tpu.core_type = #tpu.core_type<tc>, window_params = [{transform_indices = @transform_0, window_bounds = array<i64: 2, 256>}, {pipeline_mode = #tpu.pipeline_mode<synchronous>, transform_indices = @transform_1, window_bounds = array<i64: 128, 2>}, {pipeline_mode = #tpu.pipeline_mode<synchronous>, transform_indices = @transform_2, window_bounds = array<i64: 128, 1>}, {pipeline_mode = #tpu.pipeline_mode<synchronous>, transform_indices = @transform_3, window_bounds = array<i64: 136, 128>}, {pipeline_mode = #tpu.pipeline_mode<synchronous>, transform_indices = @transform_4, window_bounds = array<i64: 128, 1>}, {pipeline_mode = #tpu.pipeline_mode<synchronous>, transform_indices = @transform_5, window_bounds = array<i64: 128, 128>}, {pipeline_mode = #tpu.pipeline_mode<synchronous>, transform_indices = @transform_6, window_bounds = array<i64: 128, 1>}, {pipeline_mode = #tpu.pipeline_mode<synchronous>, transform_indices = @transform_7, window_bounds = array<i64: 8, 128>}, {pipeline_mode = #tpu.pipeline_mode<synchronous>, transform_indices = @transform_8, window_bounds = array<i64: 1, 1>}, {transform_indices = @transform_9, window_bounds = array<i64: 1, 256>}]} {
    %c0 = arith.constant 0 : index
    %c0_0 = arith.constant 0 : index
    %0 = vector.load %arg1[%c0, %c0_0] : memref<2x256xf32, #tpu.memory_space<vmem>>, vector<1x256xf32>
    %c1 = arith.constant 1 : index
    %c0_1 = arith.constant 0 : index
    %1 = vector.load %arg1[%c1, %c0_1] : memref<2x256xf32, #tpu.memory_space<vmem>>, vector<1x256xf32>
    %c0_2 = arith.constant 0 : index
    %c0_3 = arith.constant 0 : index
    %2 = vector.load %arg2[%c0_2, %c0_3] : memref<128x2xf32, #tpu.memory_space<vmem>>, vector<128x1xf32>
    %3 = vector.broadcast %2 : vector<128x1xf32> to vector<128x256xf32>
    %4 = vector.broadcast %0 : vector<1x256xf32> to vector<128x256xf32>
    %5 = arith.mulf %3, %4 : vector<128x256xf32>
    %c0_4 = arith.constant 0 : index
    %c1_5 = arith.constant 1 : index
    %6 = vector.load %arg2[%c0_4, %c1_5] : memref<128x2xf32, #tpu.memory_space<vmem>>, vector<128x1xf32>
    %7 = vector.broadcast %6 : vector<128x1xf32> to vector<128x256xf32>
    %8 = vector.broadcast %1 : vector<1x256xf32> to vector<128x256xf32>
    %9 = arith.mulf %7, %8 : vector<128x256xf32>
    %10 = arith.addf %5, %9 : vector<128x256xf32>
    %c0_6 = arith.constant 0 : index
    %c0_7 = arith.constant 0 : index
    %11 = vector.load %arg3[%c0_6, %c0_7] : memref<128x1xf32, #tpu.memory_space<vmem>>, vector<128x1xf32>
    %12 = vector.broadcast %11 : vector<128x1xf32> to vector<128x256xf32>
    %13 = arith.addf %10, %12 : vector<128x256xf32>
    %14 = math.sin %13 : vector<128x256xf32>
    %15 = arith.truncf %14 : vector<128x256xf32> to vector<128x256xbf16>
    %c0_8 = arith.constant 0 : index
    %c0_9 = arith.constant 0 : index
    %16 = vector.load %arg4[%c0_8, %c0_9] : memref<136x128xbf16, #tpu.memory_space<vmem>>, vector<136x128xbf16>
    %cst = arith.constant dense<0.000000e+00> : vector<136x256xf32>
    %17 = tpu.matmul %16, %15, %cst {dimension_numbers = #tpu.dot_dimension_numbers<[1], [0], [0], [1], [0, 0, 1, 1], [], []>} : vector<136x128xbf16>, vector<128x256xbf16>, vector<136x256xf32> -> vector<136x256xf32>
    %18 = vector.extract_strided_slice %17 {offsets = [0, 0], sizes = [128, 256], strides = [1, 1]} : vector<136x256xf32> to vector<128x256xf32>
    %c0_10 = arith.constant 0 : index
    %c0_11 = arith.constant 0 : index
    %19 = vector.load %arg5[%c0_10, %c0_11] : memref<128x1xf32, #tpu.memory_space<vmem>>, vector<128x1xf32>
    %20 = vector.broadcast %19 : vector<128x1xf32> to vector<128x256xf32>
    %21 = arith.addf %18, %20 : vector<128x256xf32>
    %cst_12 = arith.constant 0.000000e+00 : f32
    %22 = vector.broadcast %cst_12 : f32 to vector<128x256xf32>
    %23 = arith.maximumf %21, %22 : vector<128x256xf32>
    %24 = arith.truncf %23 : vector<128x256xf32> to vector<128x256xbf16>
    %25 = vector.extract_strided_slice %17 {offsets = [128, 0], sizes = [1, 256], strides = [1, 1]} : vector<136x256xf32> to vector<1x256xf32>
    %c0_13 = arith.constant 0 : index
    %c0_14 = arith.constant 0 : index
    %26 = vector.load %arg6[%c0_13, %c0_14] : memref<128x128xbf16, #tpu.memory_space<vmem>>, vector<128x128xbf16>
    %cst_15 = arith.constant dense<0.000000e+00> : vector<128x256xf32>
    %27 = tpu.matmul %26, %24, %cst_15 {dimension_numbers = #tpu.dot_dimension_numbers<[1], [0], [0], [1], [0, 0, 1, 1], [], []>} : vector<128x128xbf16>, vector<128x256xbf16>, vector<128x256xf32> -> vector<128x256xf32>
    %c0_16 = arith.constant 0 : index
    %c0_17 = arith.constant 0 : index
    %28 = vector.load %arg7[%c0_16, %c0_17] : memref<128x1xf32, #tpu.memory_space<vmem>>, vector<128x1xf32>
    %29 = vector.broadcast %28 : vector<128x1xf32> to vector<128x256xf32>
    %30 = arith.addf %27, %29 : vector<128x256xf32>
    %cst_18 = arith.constant 0.000000e+00 : f32
    %31 = vector.broadcast %cst_18 : f32 to vector<128x256xf32>
    %32 = arith.maximumf %30, %31 : vector<128x256xf32>
    %33 = arith.truncf %32 : vector<128x256xf32> to vector<128x256xbf16>
    %c0_19 = arith.constant 0 : index
    %c0_20 = arith.constant 0 : index
    %34 = vector.load %arg8[%c0_19, %c0_20] : memref<8x128xbf16, #tpu.memory_space<vmem>>, vector<8x128xbf16>
    %cst_21 = arith.constant dense<0.000000e+00> : vector<8x256xf32>
    %35 = tpu.matmul %34, %33, %cst_21 {dimension_numbers = #tpu.dot_dimension_numbers<[1], [0], [0], [1], [0, 0, 1, 1], [], []>} : vector<8x128xbf16>, vector<128x256xbf16>, vector<8x256xf32> -> vector<8x256xf32>
    %36 = vector.extract_strided_slice %35 {offsets = [0, 0], sizes = [1, 256], strides = [1, 1]} : vector<8x256xf32> to vector<1x256xf32>
    %37 = arith.addf %36, %25 : vector<1x256xf32>
    %c0_22 = arith.constant 0 : index
    %c0_23 = arith.constant 0 : index
    %38 = vector.load %arg9[%c0_22, %c0_23] : memref<1x1xf32, #tpu.memory_space<vmem>>, vector<1x1xf32>
    %39 = vector.broadcast %38 : vector<1x1xf32> to vector<1x256xf32>
    %40 = arith.addf %37, %39 : vector<1x256xf32>
    %c0_24 = arith.constant 0 : index
    %c0_25 = arith.constant 0 : index
    %41 = vector.load %arg10[%c0_24, %c0_25] : memref<1x256xf32, #tpu.memory_space<vmem>>, vector<1x256xf32>
    tpu.vector_store %arg10[%c0_24, %c0_25], %40 {strides = array<i32>} : memref<1x256xf32, #tpu.memory_space<vmem>>, vector<1x256xf32>,
    return
  }
  func.func @transform_0(%arg0: i32) -> (i32, i32) {
    %c0_i32 = arith.constant 0 : i32
    %c0_i32_0 = arith.constant 0 : i32
    return %c0_i32, %arg0 : i32, i32
  }
  func.func @transform_1(%arg0: i32) -> (i32, i32) {
    %c0_i32 = arith.constant 0 : i32
    %c0_i32_0 = arith.constant 0 : i32
    %c0_i32_1 = arith.constant 0 : i32
    return %c0_i32, %c0_i32_0 : i32, i32
  }
  func.func @transform_2(%arg0: i32) -> (i32, i32) {
    %c0_i32 = arith.constant 0 : i32
    %c0_i32_0 = arith.constant 0 : i32
    %c0_i32_1 = arith.constant 0 : i32
    return %c0_i32, %c0_i32_0 : i32, i32
  }
  func.func @transform_3(%arg0: i32) -> (i32, i32) {
    %c0_i32 = arith.constant 0 : i32
    %c0_i32_0 = arith.constant 0 : i32
    %c0_i32_1 = arith.constant 0 : i32
    return %c0_i32, %c0_i32_0 : i32, i32
  }
  func.func @transform_4(%arg0: i32) -> (i32, i32) {
    %c0_i32 = arith.constant 0 : i32
    %c0_i32_0 = arith.constant 0 : i32
    %c0_i32_1 = arith.constant 0 : i32
    return %c0_i32, %c0_i32_0 : i32, i32
  }
  func.func @transform_5(%arg0: i32) -> (i32, i32) {
    %c0_i32 = arith.constant 0 : i32
    %c0_i32_0 = arith.constant 0 : i32
    %c0_i32_1 = arith.constant 0 : i32
    return %c0_i32, %c0_i32_0 : i32, i32
  }
  func.func @transform_6(%arg0: i32) -> (i32, i32) {
    %c0_i32 = arith.constant 0 : i32
    %c0_i32_0 = arith.constant 0 : i32
    %c0_i32_1 = arith.constant 0 : i32
    return %c0_i32, %c0_i32_0 : i32, i32
  }
  func.func @transform_7(%arg0: i32) -> (i32, i32) {
    %c0_i32 = arith.constant 0 : i32
    %c0_i32_0 = arith.constant 0 : i32
    %c0_i32_1 = arith.constant 0 : i32
    return %c0_i32, %c0_i32_0 : i32, i32
  }
  func.func @transform_8(%arg0: i32) -> (i32, i32) {
    %c0_i32 = arith.constant 0 : i32
    %c0_i32_0 = arith.constant 0 : i32
    %c0_i32_1 = arith.constant 0 : i32
    return %c0_i32, %c0_i32_0 : i32, i32
  }
  func.func @transform_9(%arg0: i32) -> (i32, i32) {
    %c0_i32 = arith.constant 0 : i32
    %c0_i32_0 = arith.constant 0 : i32
    return %c0_i32, %arg0 : i32, i32
  }
}

</mosaic_0001>

<llo_original>
// kernel: tpu_custom_call.1
$region0: #{tpu_custom_call.1}
  #allocation0 [shape = 'u32[]', space=smem, size = 0x4, offset = 0x4, fixed_abs, tag = 'smem constant byte address 0x4 - core index']
  #allocation1 [shape = 'u32[72,128]{1,0:T(1,128)}', space=vmem, size = 0x9000, scoped, tag = 'internal scratch']
  %s0 = inlined_call_operand.hbm [shape: f32[8,128], index: 0, kind: input, shape index: {}]
  %s1 = inlined_call_operand.hbm [shape: f32[8,128], index: 1, kind: output, shape index: {}]
  %s2 = sld [smem:[#allocation0]]
  $region18: #{tpu_custom_call.1} parent=0
    _
  %s4 = ssub.s32 1, %s2
  %s5 = scalar_select 0, %s4, %s2
  $region1: #{tpu_custom_call.1} parent=0
    #allocation2 [shape = 'u8[4096]{0}', space=vmem, size = 0x1000, scoped, tag = 'input window, operand 0, single buffered']
    #allocation3 [shape = 's32[1]{0}', space=sflag, size = 0x4, scoped, tag = 'scoped memory for tpu_custom_call.1']
    #allocation4 [shape = 's32[1]{0}', space=sflag, size = 0x4, scoped, tag = 'scoped memory for tpu_custom_call.1']
    #allocation5 [shape = 'u8[4096]{0}', space=vmem, size = 0x1000, scoped, tag = 'output window, operand 0, single buffered']
    %6 = vsyncpa [#allocation3], 0
    %7 = vsyncpa [#allocation4], 0
    // Predicated region
    $region2: #{tpu_custom_call.1} parent=1 // pred_check
      _
    $region3: #{tpu_custom_call.1} parent=1 // pred_check_branch
      %9 = sbr.rel (0) target = $region5
    $region4: #{tpu_custom_call.1} parent=1 // pred_region
      %11 = vsyncadd [#allocation3], 0
      %s13 = sshll.u32 %s0, 4
      %s14 = int_to_ptr.hbm [resolvable:$true] %s13
      %s15 = sshll.u32 [#allocation2], 4
      %s16 = int_to_ptr.vmem [resolvable:$true] %s15
      %18 = dma.hbm_to_vmem [thread:$0]  %s14, 128, %s16, [#allocation3]
    $region5: #{tpu_custom_call.1} parent=1 // pred_fallthru
      _
    // Predicated region
    $region6: #{tpu_custom_call.1} parent=1 // pred_check
      _
    $region7: #{tpu_custom_call.1} parent=1 // pred_check_branch
      %20 = sbr.rel (0) target = $region9
    $region8: #{tpu_custom_call.1} parent=1 // pred_region
      %22 = dma.done [#allocation3], 128
    $region9: #{tpu_custom_call.1} parent=1 // pred_fallthru
      _
    %v23 = vld [vmem:[#allocation2] sm:$0xff]
    %v24 = vpack.c.bf16 %v23, %v23
    %v25 = vunpack.i.l.bf16 %v24
    %v27 = vunpack.i.h.bf16 %v24
    %v29 = vand.u32 2147483647, %v25
    %vm30 = vcmp.le.f32.partialorder %v29, 0.7853982
    %vm31 = vcmp.lt.s32.totalorder %v25, 0
    %v32 = vand.u32 %v25, 2139095040
    %v33 = vshrl.u32 %v32, 23
    %v34 = vsub.s32 %v33, 127
    %v35 = vand.u32 2147483647, %v25
    %v36 = vand.u32 %v35, 8388607
    %v37 = vor.u32 %v36, 8388608
    %v38 = vsub.s32 0, %v37
    %v39 = vadd.s32 %v34, 1
    %vm40 = vcmp.gt.s32.totalorder %v39, 0
    %v41 = vsel %vm40, %v39, 0
    %v42 = vshrl.u32 %v41, 5
    %v43 = vand.u32 %v41, 31
    %v44 = vsub.s32 32, %v43
    %v45 = vshrl.u32 683565275, %v44
    %v46 = vshll.u32 683565275, %v43
    %v47 = vshrl.u32 2475754826, %v44
    %v48 = vor.u32 %v46, %v47
    %v49 = vshll.u32 2475754826, %v43
    %v50 = vshrl.u32 2131351028, %v44
    %v51 = vor.u32 %v49, %v50
    %v52 = vshll.u32 2131351028, %v43
    %v53 = vshrl.u32 2102212464, %v44
    %v54 = vor.u32 %v52, %v53
    %v55 = vshll.u32 2102212464, %v43
    %v56 = vshrl.u32 920167782, %v44
    %v57 = vor.u32 %v55, %v56
    %v58 = vshll.u32 920167782, %v43
    %v59 = vshrl.u32 1326507024, %v44
    %v60 = vor.u32 %v58, %v59
    %vm61 = vcmp.lt.s32.totalorder %v42, 1
    %vm62 = vcmp.lt.s32.totalorder %v42, 2
    %vm63 = vcmp.lt.s32.totalorder %v42, 3
    %vm64 = vcmp.lt.s32.totalorder %v42, 4
    %v65 = vsel %vm61, %v45, %v48
    %v66 = vsel %vm64, %v54, 2102212464
    %v67 = vsel %vm63, %v51, %v66
    %v68 = vsel %vm62, %v65, %v67
    %v69 = vsel %vm61, %v48, %v51
    %v70 = vsel %vm64, %v57, 920167782
    %v71 = vsel %vm63, %v54, %v70
    %v72 = vsel %vm62, %v69, %v71
    %v73 = vsel %vm61, %v51, %v54
    %v74 = vsel %vm64, %v60, 1326507024
    %v75 = vsel %vm63, %v57, %v74
    %v76 = vsel %vm62, %v73, %v75
    %v77 = vshll.u32 %v37, 8
    %v78 = vand.u32 %v77, 65535
    %v79 = vshrl.u32 %v77, 16
    %v80 = vand.u32 %v76, 65535
    %v81 = vshrl.u32 %v76, 16
    %v82 = vmul.u32 %v78, %v80
    %v83 = vmul.u32 %v78, %v81
    %v84 = vmul.u32 %v79, %v80
    %v85 = vmul.u32 %v79, %v81
    %v86 = vshll.u32 %v83, 16
    %v87 = vshrl.u32 %v83, 16
    %v88 = vshll.u32 %v84, 16
    %v89 = vshrl.u32 %v84, 16
    %vm90 = vc.u32 %v82, %v86
    %v91 = vsel %vm90, 1, 0
    %v92 = vadd.s32 %v82, %v86
    %v93 = vadd.s32 %v85, %v91
    %vm94 = vc.u32 %v92, %v88
    %v95 = vsel %vm94, 1, 0
    %v96 = vadd.s32 %v92, %v88
    %v97 = vadd.s32 %v93, %v95
    %v98 = vadd.s32 %v97, %v87
    %v99 = vadd.s32 %v98, %v89
    %v100 = vand.u32 %v77, 65535
    %v101 = vshrl.u32 %v77, 16
    %v102 = vand.u32 %v72, 65535
    %v103 = vshrl.u32 %v72, 16
    %v104 = vmul.u32 %v100, %v102
    %v105 = vmul.u32 %v100, %v103
    %v106 = vmul.u32 %v101, %v102
    %v107 = vmul.u32 %v101, %v103
    %v108 = vshll.u32 %v105, 16
    %v109 = vshrl.u32 %v105, 16
    %v110 = vshll.u32 %v106, 16
    %v111 = vshrl.u32 %v106, 16
    %vm112 = vc.u32 %v104, %v108
    %v113 = vsel %vm112, 1, 0
    %v114 = vadd.s32 %v104, %v108
    %v115 = vadd.s32 %v107, %v113
    %vm116 = vc.u32 %v114, %v110
    %v117 = vsel %vm116, 1, 0
    %v118 = vadd.s32 %v114, %v110
    %v119 = vadd.s32 %v115, %v117
    %v120 = vadd.s32 %v119, %v109
    %v121 = vadd.s32 %v120, %v111
    %v122 = vmul.u32 %v77, %v68
    %v123 = vadd.s32 %v99, %v118
    %vm124 = vc.u32 %v99, %v118
    %v125 = vadd.s32 %v121, 1
    %v126 = vsel %vm124, %v125, %v121
    %v127 = vadd.s32 %v122, %v126
    %v128 = vadd.s32 %v127, 536870912
    %v129 = vshrl.u32 %v128, 30
    %v130 = vshll.u32 %v129, 30
    %v131 = vsub.s32 %v127, %v130
    %vm132 = vcmp.lt.s32.totalorder %v131, 0
    %v133 = vsub.s32 0, %v131
    %v134 = vsel %vm132, %v133, %v131
    %v135 = vclz %v134
    %v136 = vsub.s32 %v135, 2
    %vm137 = vcmp.gt.s32.totalorder 0, %v136
    %v138 = vsel %vm137, 0, %v136
    %v139 = vsub.s32 32, %v138
    %v140 = vshll.u32 %v131, %v138
    %v141 = vshrl.u32 %v123, %v139
    %v142 = vor.u32 %v140, %v141
    %v143 = vsub.s32 4294967266, %v138
    %v144 = vadd.s32 %v143, 127
    %v145 = vshll.u32 %v144, 23
    %v146 = vor.u32 4788187, %v145
    %v147 = vand.u32 2147483647, %v146
    %v149 = vcvt.s32.f32 %v142
    %v150 = vmul.f32 %v149, %v147
    %v151 = vxor.u32 %v150, 2147483648
    %v152 = vsel %vm31, %v151, %v150
    %v153 = vsub.s32 4, %v129
    %v154 = vsel %vm31, %v153, %v129
    %v155 = vsel %vm30, %v25, %v152
    %v156 = vsel %vm30, 0, %v154
    %v157 = vand.u32 2147483647, %v27
    %vm158 = vcmp.le.f32.partialorder %v157, 0.7853982
    %vm159 = vcmp.lt.s32.totalorder %v27, 0
    %v160 = vand.u32 %v27, 2139095040
    %v161 = vshrl.u32 %v160, 23
    %v162 = vsub.s32 %v161, 127
    %v163 = vand.u32 2147483647, %v27
    %v164 = vand.u32 %v163, 8388607
    %v165 = vor.u32 %v164, 8388608
    %v166 = vsub.s32 0, %v165
    %v167 = vadd.s32 %v162, 1
    %vm168 = vcmp.gt.s32.totalorder %v167, 0
    %v169 = vsel %vm168, %v167, 0
    %v170 = vshrl.u32 %v169, 5
    %v171 = vand.u32 %v169, 31
    %v172 = vsub.s32 32, %v171
    %v173 = vshrl.u32 683565275, %v172
    %v174 = vshll.u32 683565275, %v171
    %v175 = vshrl.u32 2475754826, %v172
    %v176 = vor.u32 %v174, %v175
    %v177 = vshll.u32 2475754826, %v171
    %v178 = vshrl.u32 2131351028, %v172
    %v179 = vor.u32 %v177, %v178
    %v180 = vshll.u32 2131351028, %v171
    %v181 = vshrl.u32 2102212464, %v172
    %v182 = vor.u32 %v180, %v181
    %v183 = vshll.u32 2102212464, %v171
    %v184 = vshrl.u32 920167782, %v172
    %v185 = vor.u32 %v183, %v184
    %v186 = vshll.u32 920167782, %v171
    %v187 = vshrl.u32 1326507024, %v172
    %v188 = vor.u32 %v186, %v187
    %vm189 = vcmp.lt.s32.totalorder %v170, 1
    %vm190 = vcmp.lt.s32.totalorder %v170, 2
    %vm191 = vcmp.lt.s32.totalorder %v170, 3
    %vm192 = vcmp.lt.s32.totalorder %v170, 4
    %v193 = vsel %vm189, %v173, %v176
    %v194 = vsel %vm192, %v182, 2102212464
    %v195 = vsel %vm191, %v179, %v194
    %v196 = vsel %vm190, %v193, %v195
    %v197 = vsel %vm189, %v176, %v179
    %v198 = vsel %vm192, %v185, 920167782
    %v199 = vsel %vm191, %v182, %v198
    %v200 = vsel %vm190, %v197, %v199
    %v201 = vsel %vm189, %v179, %v182
    %v202 = vsel %vm192, %v188, 1326507024
    %v203 = vsel %vm191, %v185, %v202
    %v204 = vsel %vm190, %v201, %v203
    %v205 = vshll.u32 %v165, 8
    %v206 = vand.u32 %v205, 65535
    %v207 = vshrl.u32 %v205, 16
    %v208 = vand.u32 %v204, 65535
    %v209 = vshrl.u32 %v204, 16
    %v210 = vmul.u32 %v206, %v208
    %v211 = vmul.u32 %v206, %v209
    %v212 = vmul.u32 %v207, %v208
    %v213 = vmul.u32 %v207, %v209
    %v214 = vshll.u32 %v211, 16
    %v215 = vshrl.u32 %v211, 16
    %v216 = vshll.u32 %v212, 16
    %v217 = vshrl.u32 %v212, 16
    %vm218 = vc.u32 %v210, %v214
    %v219 = vsel %vm218, 1, 0
    %v220 = vadd.s32 %v210, %v214
    %v221 = vadd.s32 %v213, %v219
    %vm222 = vc.u32 %v220, %v216
    %v223 = vsel %vm222, 1, 0
    %v224 = vadd.s32 %v220, %v216
    %v225 = vadd.s32 %v221, %v223
    %v226 = vadd.s32 %v225, %v215
    %v227 = vadd.s32 %v226, %v217
    %v228 = vand.u32 %v205, 65535
    %v229 = vshrl.u32 %v205, 16
    %v230 = vand.u32 %v200, 65535
    %v231 = vshrl.u32 %v200, 16
    %v232 = vmul.u32 %v228, %v230
    %v233 = vmul.u32 %v228, %v231
    %v234 = vmul.u32 %v229, %v230
    %v235 = vmul.u32 %v229, %v231
    %v236 = vshll.u32 %v233, 16
    %v237 = vshrl.u32 %v233, 16
    %v238 = vshll.u32 %v234, 16
    %v239 = vshrl.u32 %v234, 16
    %vm240 = vc.u32 %v232, %v236
    %v241 = vsel %vm240, 1, 0
    %v242 = vadd.s32 %v232, %v236
    %v243 = vadd.s32 %v235, %v241
    %vm244 = vc.u32 %v242, %v238
    %v245 = vsel %vm244, 1, 0
    %v246 = vadd.s32 %v242, %v238
    %v247 = vadd.s32 %v243, %v245
    %v248 = vadd.s32 %v247, %v237
    %v249 = vadd.s32 %v248, %v239
    %v250 = vmul.u32 %v205, %v196
    %v251 = vadd.s32 %v227, %v246
    %vm252 = vc.u32 %v227, %v246
    %v253 = vadd.s32 %v249, 1
    %v254 = vsel %vm252, %v253, %v249
    %v255 = vadd.s32 %v250, %v254
    %v256 = vadd.s32 %v255, 536870912
    %v257 = vshrl.u32 %v256, 30
    %v258 = vshll.u32 %v257, 30
    %v259 = vsub.s32 %v255, %v258
    %vm260 = vcmp.lt.s32.totalorder %v259, 0
    %v261 = vsub.s32 0, %v259
    %v262 = vsel %vm260, %v261, %v259
    %v263 = vclz %v262
    %v264 = vsub.s32 %v263, 2
    %vm265 = vcmp.gt.s32.totalorder 0, %v264
    %v266 = vsel %vm265, 0, %v264
    %v267 = vsub.s32 32, %v266
    %v268 = vshll.u32 %v259, %v266
    %v269 = vshrl.u32 %v251, %v267
    %v270 = vor.u32 %v268, %v269
    %v271 = vsub.s32 4294967266, %v266
    %v272 = vadd.s32 %v271, 127
    %v273 = vshll.u32 %v272, 23
    %v274 = vor.u32 4788187, %v273
    %v275 = vand.u32 2147483647, %v274
    %v277 = vcvt.s32.f32 %v270
    %v278 = vmul.f32 %v277, %v275
    %v279 = vxor.u32 %v278, 2147483648
    %v280 = vsel %vm159, %v279, %v278
    %v281 = vsub.s32 4, %v257
    %v282 = vsel %vm159, %v281, %v257
    %v283 = vsel %vm158, %v27, %v280
    %v284 = vsel %vm158, 0, %v282
    %v285 = vmul.f32 %v155, %v155
    %v286 = vmul.f32 %v285, -0.001358992
    %v287 = vadd.f32 %v286, 0.041655596
    %v288 = vmul.f32 %v285, %v287
    %v289 = vadd.f32 %v288, -0.4999988
    %v290 = vmul.f32 %v285, %v289
    %v291 = vadd.f32 1.0, %v290
    %v292 = vmul.f32 %v283, %v283
    %v293 = vmul.f32 %v292, -0.001358992
    %v294 = vadd.f32 %v293, 0.041655596
    %v295 = vmul.f32 %v292, %v294
    %v296 = vadd.f32 %v295, -0.4999988
    %v297 = vmul.f32 %v292, %v296
    %v298 = vadd.f32 1.0, %v297
    %v299 = vmul.f32 %v155, %v155
    %v300 = vmul.f32 %v299, -0.00019511016
    %v301 = vadd.f32 %v300, 0.008332121
    %v302 = vmul.f32 %v299, %v301
    %v303 = vadd.f32 %v302, -0.16666654
    %v304 = vmul.f32 %v299, %v303
    %v305 = vadd.f32 %v304, 1.0
    %v306 = vmul.f32 %v305, %v155
    %v307 = vmul.f32 %v283, %v283
    %v308 = vmul.f32 %v307, -0.00019511016
    %v309 = vadd.f32 %v308, 0.008332121
    %v310 = vmul.f32 %v307, %v309
    %v311 = vadd.f32 %v310, -0.16666654
    %v312 = vmul.f32 %v307, %v311
    %v313 = vadd.f32 %v312, 1.0
    %v314 = vmul.f32 %v313, %v283
    %vm315 = vweird.f32 %v25
    %vm316 = vweird.f32 %v27
    %v317 = vadd.s32 %v156, 3
    %v318 = vand.u32 %v317, 3
    %vm319 = vcmp.lt.s32.totalorder %v318, 2
    %vm320 = vcmp.eq.s32.totalorder %v318, 0
    %v321 = vxor.u32 %v306, 2147483648
    %v322 = vsel %vm320, %v291, %v321
    %vm323 = vcmp.eq.s32.totalorder %v318, 2
    %v324 = vxor.u32 %v291, 2147483648
    %v325 = vsel %vm323, %v324, %v306
    %v326 = vsel %vm319, %v322, %v325
    %v327 = vsel %vm315, nan, %v326
    %v328 = vadd.s32 %v284, 3
    %v329 = vand.u32 %v328, 3
    %vm330 = vcmp.lt.s32.totalorder %v329, 2
    %vm331 = vcmp.eq.s32.totalorder %v329, 0
    %v332 = vxor.u32 %v314, 2147483648
    %v333 = vsel %vm331, %v298, %v332
    %vm334 = vcmp.eq.s32.totalorder %v329, 2
    %v335 = vxor.u32 %v298, 2147483648
    %v336 = vsel %vm334, %v335, %v314
    %v337 = vsel %vm330, %v333, %v336
    %v338 = vsel %vm316, nan, %v337
    %v339 = vpack.i.bf16 %v338, %v327
    %v340 = vunpack.c.l.bf16 %v339
    %341 = vst [vmem:[#allocation5] sm:$0xff] %v340
    // Predicated region
    $region10: #{tpu_custom_call.1} parent=1 // pred_check
      _
    $region11: #{tpu_custom_call.1} parent=1 // pred_check_branch
      %343 = sbr.rel (0) target = $region13
    $region12: #{tpu_custom_call.1} parent=1 // pred_region
      %345 = vsyncadd [#allocation4], 0
      %s347 = sshll.u32 [#allocation5], 4
      %s348 = int_to_ptr.vmem [resolvable:$true] %s347
      %s349 = sshll.u32 %s1, 4
      %s350 = int_to_ptr.hbm [resolvable:$true] %s349
      %352 = dma.vmem_to_hbm [thread:$0]  %s348, 128, %s350, [#allocation4]
    $region13: #{tpu_custom_call.1} parent=1 // pred_fallthru
      _
    // Predicated region
    $region14: #{tpu_custom_call.1} parent=1 // pred_check
      _
    $region15: #{tpu_custom_call.1} parent=1 // pred_check_branch
      %354 = sbr.rel (0) target = $region17
    $region16: #{tpu_custom_call.1} parent=1 // pred_region
      %356 = dma.done [#allocation4], 128
    $region17: #{tpu_custom_call.1} parent=1 // pred_fallthru
      _
    %357 = vsyncpa [#allocation3], 1
    %358 = vsyncpa [#allocation4], 1

// kernel: tpu_custom_call.1
$region0: #{tpu_custom_call.1}
  #allocation0 [shape = 'u32[]', space=smem, size = 0x4, offset = 0x4, fixed_abs, tag = 'smem constant byte address 0x4 - core index']
  #allocation1 [shape = 'u32[72,128]{1,0:T(1,128)}', space=vmem, size = 0x9000, scoped, tag = 'internal scratch']
  #allocation2 [shape = 'f32[1,1]{1,0:T(1,128)S(1)}', space=vmem, size = 0x200, scoped, tag = 'scoped memory for tpu_custom_call.1']
  %s0 = inlined_call_operand.vmem [shape: f32[2,256], index: 0, kind: input, shape index: {}]
  %s1 = inlined_call_operand.vmem [shape: f32[128,2], index: 1, kind: input, shape index: {}]
  %s2 = inlined_call_operand.vmem [shape: f32[128,1], index: 2, kind: input, shape index: {}]
  %s3 = inlined_call_operand.vmem [shape: bf16[136,128], index: 3, kind: input, shape index: {}]
  %s4 = inlined_call_operand.vmem [shape: f32[128,1], index: 4, kind: input, shape index: {}]
  %s5 = inlined_call_operand.vmem [shape: bf16[128,128], index: 5, kind: input, shape index: {}]
  %s6 = inlined_call_operand.vmem [shape: f32[128,1], index: 6, kind: input, shape index: {}]
  %s7 = inlined_call_operand.vmem [shape: bf16[8,128], index: 7, kind: input, shape index: {}]
  %s8 = inlined_call_operand.<no memory space> [shape: f32[1,1], index: 8, kind: input, shape index: {}]
  %s9 = inlined_call_operand.hbm [shape: f32[1,256], index: 9, kind: output, shape index: {}]
  %s10 = sld [smem:[#allocation0]]
  $region46: #{tpu_custom_call.1} parent=0
    _
  %s12 = ssub.s32 1, %s10
  %s13 = scalar_select 0, %s12, %s10
  %v14 = vstv %s8
  %15 = vst [vmem:[#allocation2] sm:$0x1] %v14
  $region1: #{tpu_custom_call.1} parent=0
    #allocation3 [shape = 'u8[1024]{0}', space=vmem, size = 0x400, scoped, tag = 'output window, operand 0, single buffered']
    #allocation4 [shape = 's32[1]{0}', space=sflag, size = 0x4, scoped, tag = 'scoped memory for tpu_custom_call.1']
    %16 = vsyncpa [#allocation4], 0
    // Predicated region
    $region2: #{tpu_custom_call.1} parent=1 // pred_check
      _
    $region3: #{tpu_custom_call.1} parent=1 // pred_check_branch
      %18 = sbr.rel (0) target = $region5
    $region4: #{tpu_custom_call.1} parent=1 // pred_region
      _
    $region5: #{tpu_custom_call.1} parent=1 // pred_fallthru
      _
    // Predicated region
    $region6: #{tpu_custom_call.1} parent=1 // pred_check
      _
    $region7: #{tpu_custom_call.1} parent=1 // pred_check_branch
      %20 = sbr.rel (0) target = $region9
    $region8: #{tpu_custom_call.1} parent=1 // pred_region
      _
    $region9: #{tpu_custom_call.1} parent=1 // pred_fallthru
      _
    // Predicated region
    $region10: #{tpu_custom_call.1} parent=1 // pred_check
      _
    $region11: #{tpu_custom_call.1} parent=1 // pred_check_branch
      %22 = sbr.rel (0) target = $region13
    $region12: #{tpu_custom_call.1} parent=1 // pred_region
      _
    $region13: #{tpu_custom_call.1} parent=1 // pred_fallthru
      _
    // Predicated region
    $region14: #{tpu_custom_call.1} parent=1 // pred_check
      _
    $region15: #{tpu_custom_call.1} parent=1 // pred_check_branch
      %24 = sbr.rel (0) target = $region17
    $region16: #{tpu_custom_call.1} parent=1 // pred_region
      _
    $region17: #{tpu_custom_call.1} parent=1 // pred_fallthru
      _
    // Predicated region
    $region18: #{tpu_custom_call.1} parent=1 // pred_check
      _
    $region19: #{tpu_custom_call.1} parent=1 // pred_check_branch
      %26 = sbr.rel (0) target = $region21
    $region20: #{tpu_custom_call.1} parent=1 // pred_region
      _
    $region21: #{tpu_custom_call.1} parent=1 // pred_fallthru
      _
    // Predicated region
    $region22: #{tpu_custom_call.1} parent=1 // pred_check
      _
    $region23: #{tpu_custom_call.1} parent=1 // pred_check_branch
      %28 = sbr.rel (0) target = $region25
    $region24: #{tpu_custom_call.1} parent=1 // pred_region
      _
    $region25: #{tpu_custom_call.1} parent=1 // pred_fallthru
      _
    // Predicated region
    $region26: #{tpu_custom_call.1} parent=1 // pred_check
      _
    $region27: #{tpu_custom_call.1} parent=1 // pred_check_branch
      %30 = sbr.rel (0) target = $region29
    $region28: #{tpu_custom_call.1} parent=1 // pred_region
      _
    $region29: #{tpu_custom_call.1} parent=1 // pred_fallthru
      _
    // Predicated region
    $region30: #{tpu_custom_call.1} parent=1 // pred_check
      _
    $region31: #{tpu_custom_call.1} parent=1 // pred_check_branch
      %32 = sbr.rel (0) target = $region33
    $region32: #{tpu_custom_call.1} parent=1 // pred_region
      _
    $region33: #{tpu_custom_call.1} parent=1 // pred_fallthru
      _
    // Predicated region
    $region34: #{tpu_custom_call.1} parent=1 // pred_check
      _
    $region35: #{tpu_custom_call.1} parent=1 // pred_check_branch
      %34 = sbr.rel (0) target = $region37
    $region36: #{tpu_custom_call.1} parent=1 // pred_region
      _
    $region37: #{tpu_custom_call.1} parent=1 // pred_fallthru
      _
    %v35 = vld [vmem:[%s0] ss:$2 sm:$0x3]
    %s36 = scalar_lea.vmem %s0, 1
    %v37 = vld [vmem:[%s36] ss:$2 sm:$0x3]
    %v38 = vld [vmem:[%s1] sm:$0xff]
    %v39 = vld [vmem:[%s1 + $0x8] sm:$0xff]
    %v40 = vld [vmem:[%s1 + $0x10] sm:$0xff]
    %v41 = vld [vmem:[%s1 + $0x18] sm:$0xff]
    %v42 = vld [vmem:[%s1 + $0x20] sm:$0xff]
    %v43 = vld [vmem:[%s1 + $0x28] sm:$0xff]
    %v44 = vld [vmem:[%s1 + $0x30] sm:$0xff]
    %v45 = vld [vmem:[%s1 + $0x38] sm:$0xff]
    %v46 = vld [vmem:[%s1 + $0x40] sm:$0xff]
    %v47 = vld [vmem:[%s1 + $0x48] sm:$0xff]
    %v48 = vld [vmem:[%s1 + $0x50] sm:$0xff]
    %v49 = vld [vmem:[%s1 + $0x58] sm:$0xff]
    %v50 = vld [vmem:[%s1 + $0x60] sm:$0xff]
    %v51 = vld [vmem:[%s1 + $0x68] sm:$0xff]
    %v52 = vld [vmem:[%s1 + $0x70] sm:$0xff]
    %v53 = vld [vmem:[%s1 + $0x78] sm:$0xff]
    %55 = vset.pattern.permute.xlu0 0
    %56 = vperm.xlu0 %55, %v38
    %v57 = vpop.permute.xlu0 %56
    %60 = vset.pattern.permute.xlu0 0
    %61 = vperm.xlu0 %60, %v39
    %v62 = vpop.permute.xlu0 %61
    %65 = vset.pattern.permute.xlu0 0
    %66 = vperm.xlu0 %65, %v40
    %v67 = vpop.permute.xlu0 %66
    %70 = vset.pattern.permute.xlu0 0
    %71 = vperm.xlu0 %70, %v41
    %v72 = vpop.permute.xlu0 %71
    %75 = vset.pattern.permute.xlu0 0
    %76 = vperm.xlu0 %75, %v42
    %v77 = vpop.permute.xlu0 %76
    %80 = vset.pattern.permute.xlu0 0
    %81 = vperm.xlu0 %80, %v43
    %v82 = vpop.permute.xlu0 %81
    %85 = vset.pattern.permute.xlu0 0
    %86 = vperm.xlu0 %85, %v44
    %v87 = vpop.permute.xlu0 %86
    %90 = vset.pattern.permute.xlu0 0
    %91 = vperm.xlu0 %90, %v45
    %v92 = vpop.permute.xlu0 %91
    %95 = vset.pattern.permute.xlu0 0
    %96 = vperm.xlu0 %95, %v46
    %v97 = vpop.permute.xlu0 %96
    %100 = vset.pattern.permute.xlu0 0
    %101 = vperm.xlu0 %100, %v47
    %v102 = vpop.permute.xlu0 %101
    %105 = vset.pattern.permute.xlu0 0
    %106 = vperm.xlu0 %105, %v48
    %v107 = vpop.permute.xlu0 %106
    %110 = vset.pattern.permute.xlu0 0
    %111 = vperm.xlu0 %110, %v49
    %v112 = vpop.permute.xlu0 %111
    %115 = vset.pattern.permute.xlu0 0
    %116 = vperm.xlu0 %115, %v50
    %v117 = vpop.permute.xlu0 %116
    %120 = vset.pattern.permute.xlu0 0
    %121 = vperm.xlu0 %120, %v51
    %v122 = vpop.permute.xlu0 %121
    %125 = vset.pattern.permute.xlu0 0
    %126 = vperm.xlu0 %125, %v52
    %v127 = vpop.permute.xlu0 %126
    %130 = vset.pattern.permute.xlu0 0
    %131 = vperm.xlu0 %130, %v53
    %v132 = vpop.permute.xlu0 %131
    %v135 = vperm.slane %v35, 0
    %v136 = vperm.slane %v35, 1
    %v139 = vmul.f32 %v57, %v135
    %v140 = vmul.f32 %v57, %v136
    %v141 = vmul.f32 %v62, %v135
    %v142 = vmul.f32 %v62, %v136
    %v143 = vmul.f32 %v67, %v135
    %v144 = vmul.f32 %v67, %v136
    %v145 = vmul.f32 %v72, %v135
    %v146 = vmul.f32 %v72, %v136
    %v147 = vmul.f32 %v77, %v135
    %v148 = vmul.f32 %v77, %v136
    %v149 = vmul.f32 %v82, %v135
    %v150 = vmul.f32 %v82, %v136
    %v151 = vmul.f32 %v87, %v135
    %v152 = vmul.f32 %v87, %v136
    %v153 = vmul.f32 %v92, %v135
    %v154 = vmul.f32 %v92, %v136
    %v155 = vmul.f32 %v97, %v135
    %v156 = vmul.f32 %v97, %v136
    %v157 = vmul.f32 %v102, %v135
    %v158 = vmul.f32 %v102, %v136
    %v159 = vmul.f32 %v107, %v135
    %v160 = vmul.f32 %v107, %v136
    %v161 = vmul.f32 %v112, %v135
    %v162 = vmul.f32 %v112, %v136
    %v163 = vmul.f32 %v117, %v135
    %v164 = vmul.f32 %v117, %v136
    %v165 = vmul.f32 %v122, %v135
    %v166 = vmul.f32 %v122, %v136
    %v167 = vmul.f32 %v127, %v135
    %v168 = vmul.f32 %v127, %v136
    %v169 = vmul.f32 %v132, %v135
    %v170 = vmul.f32 %v132, %v136
    %171 = vset.pattern.permute.xlu0 1
    %172 = vperm.xlu0 %171, %v38
    %v173 = vpop.permute.xlu0 %172
    %175 = vset.pattern.permute.xlu0 1
    %176 = vperm.xlu0 %175, %v39
    %v177 = vpop.permute.xlu0 %176
    %179 = vset.pattern.permute.xlu0 1
    %180 = vperm.xlu0 %179, %v40
    %v181 = vpop.permute.xlu0 %180
    %183 = vset.pattern.permute.xlu0 1
    %184 = vperm.xlu0 %183, %v41
    %v185 = vpop.permute.xlu0 %184
    %187 = vset.pattern.permute.xlu0 1
    %188 = vperm.xlu0 %187, %v42
    %v189 = vpop.permute.xlu0 %188
    %191 = vset.pattern.permute.xlu0 1
    %192 = vperm.xlu0 %191, %v43
    %v193 = vpop.permute.xlu0 %192
    %195 = vset.pattern.permute.xlu0 1
    %196 = vperm.xlu0 %195, %v44
    %v197 = vpop.permute.xlu0 %196
    %199 = vset.pattern.permute.xlu0 1
    %200 = vperm.xlu0 %199, %v45
    %v201 = vpop.permute.xlu0 %200
    %203 = vset.pattern.permute.xlu0 1
    %204 = vperm.xlu0 %203, %v46
    %v205 = vpop.permute.xlu0 %204
    %207 = vset.pattern.permute.xlu0 1
    %208 = vperm.xlu0 %207, %v47
    %v209 = vpop.permute.xlu0 %208
    %211 = vset.pattern.permute.xlu0 1
    %212 = vperm.xlu0 %211, %v48
    %v213 = vpop.permute.xlu0 %212
    %215 = vset.pattern.permute.xlu0 1
    %216 = vperm.xlu0 %215, %v49
    %v217 = vpop.permute.xlu0 %216
    %219 = vset.pattern.permute.xlu0 1
    %220 = vperm.xlu0 %219, %v50
    %v221 = vpop.permute.xlu0 %220
    %223 = vset.pattern.permute.xlu0 1
    %224 = vperm.xlu0 %223, %v51
    %v225 = vpop.permute.xlu0 %224
    %227 = vset.pattern.permute.xlu0 1
    %228 = vperm.xlu0 %227, %v52
    %v229 = vpop.permute.xlu0 %228
    %231 = vset.pattern.permute.xlu0 1
    %232 = vperm.xlu0 %231, %v53
    %v233 = vpop.permute.xlu0 %232
    %v236 = vperm.slane %v37, 0
    %v237 = vperm.slane %v37, 1
    %v240 = vmul.f32 %v173, %v236
    %v241 = vmul.f32 %v173, %v237
    %v242 = vmul.f32 %v177, %v236
    %v243 = vmul.f32 %v177, %v237
    %v244 = vmul.f32 %v181, %v236
    %v245 = vmul.f32 %v181, %v237
    %v246 = vmul.f32 %v185, %v236
    %v247 = vmul.f32 %v185, %v237
    %v248 = vmul.f32 %v189, %v236
    %v249 = vmul.f32 %v189, %v237
    %v250 = vmul.f32 %v193, %v236
    %v251 = vmul.f32 %v193, %v237
    %v252 = vmul.f32 %v197, %v236
    %v253 = vmul.f32 %v197, %v237
    %v254 = vmul.f32 %v201, %v236
    %v255 = vmul.f32 %v201, %v237
    %v256 = vmul.f32 %v205, %v236
    %v257 = vmul.f32 %v205, %v237
    %v258 = vmul.f32 %v209, %v236
    %v259 = vmul.f32 %v209, %v237
    %v260 = vmul.f32 %v213, %v236
    %v261 = vmul.f32 %v213, %v237
    %v262 = vmul.f32 %v217, %v236
    %v263 = vmul.f32 %v217, %v237
    %v264 = vmul.f32 %v221, %v236
    %v265 = vmul.f32 %v221, %v237
    %v266 = vmul.f32 %v225, %v236
    %v267 = vmul.f32 %v225, %v237
    %v268 = vmul.f32 %v229, %v236
    %v269 = vmul.f32 %v229, %v237
    %v270 = vmul.f32 %v233, %v236
    %v271 = vmul.f32 %v233, %v237
    %v272 = vadd.f32 %v139, %v240
    %v273 = vadd.f32 %v140, %v241
    %v274 = vadd.f32 %v141, %v242
    %v275 = vadd.f32 %v142, %v243
    %v276 = vadd.f32 %v143, %v244
    %v277 = vadd.f32 %v144, %v245
    %v278 = vadd.f32 %v145, %v246
    %v279 = vadd.f32 %v146, %v247
    %v280 = vadd.f32 %v147, %v248
    %v281 = vadd.f32 %v148, %v249
    %v282 = vadd.f32 %v149, %v250
    %v283 = vadd.f32 %v150, %v251
    %v284 = vadd.f32 %v151, %v252
    %v285 = vadd.f32 %v152, %v253
    %v286 = vadd.f32 %v153, %v254
    %v287 = vadd.f32 %v154, %v255
    %v288 = vadd.f32 %v155, %v256
    %v289 = vadd.f32 %v156, %v257
    %v290 = vadd.f32 %v157, %v258
    %v291 = vadd.f32 %v158, %v259
    %v292 = vadd.f32 %v159, %v260
    %v293 = vadd.f32 %v160, %v261
    %v294 = vadd.f32 %v161, %v262
    %v295 = vadd.f32 %v162, %v263
    %v296 = vadd.f32 %v163, %v264
    %v297 = vadd.f32 %v164, %v265
    %v298 = vadd.f32 %v165, %v266
    %v299 = vadd.f32 %v166, %v267
    %v300 = vadd.f32 %v167, %v268
    %v301 = vadd.f32 %v168, %v269
    %v302 = vadd.f32 %v169, %v270
    %v303 = vadd.f32 %v170, %v271
    %v304 = vld [vmem:[%s2] sm:$0xff]
    %v305 = vld [vmem:[%s2 + $0x8] sm:$0xff]
    %v306 = vld [vmem:[%s2 + $0x10] sm:$0xff]
    %v307 = vld [vmem:[%s2 + $0x18] sm:$0xff]
    %v308 = vld [vmem:[%s2 + $0x20] sm:$0xff]
    %v309 = vld [vmem:[%s2 + $0x28] sm:$0xff]
    %v310 = vld [vmem:[%s2 + $0x30] sm:$0xff]
    %v311 = vld [vmem:[%s2 + $0x38] sm:$0xff]
    %v312 = vld [vmem:[%s2 + $0x40] sm:$0xff]
    %v313 = vld [vmem:[%s2 + $0x48] sm:$0xff]
    %v314 = vld [vmem:[%s2 + $0x50] sm:$0xff]
    %v315 = vld [vmem:[%s2 + $0x58] sm:$0xff]
    %v316 = vld [vmem:[%s2 + $0x60] sm:$0xff]
    %v317 = vld [vmem:[%s2 + $0x68] sm:$0xff]
    %v318 = vld [vmem:[%s2 + $0x70] sm:$0xff]
    %v319 = vld [vmem:[%s2 + $0x78] sm:$0xff]
    %321 = vset.pattern.permute.xlu0 0
    %322 = vperm.xlu0 %321, %v304
    %v323 = vpop.permute.xlu0 %322
    %326 = vset.pattern.permute.xlu0 0
    %327 = vperm.xlu0 %326, %v305
    %v328 = vpop.permute.xlu0 %327
    %331 = vset.pattern.permute.xlu0 0
    %332 = vperm.xlu0 %331, %v306
    %v333 = vpop.permute.xlu0 %332
    %336 = vset.pattern.permute.xlu0 0
    %337 = vperm.xlu0 %336, %v307
    %v338 = vpop.permute.xlu0 %337
    %341 = vset.pattern.permute.xlu0 0
    %342 = vperm.xlu0 %341, %v308
    %v343 = vpop.permute.xlu0 %342
    %346 = vset.pattern.permute.xlu0 0
    %347 = vperm.xlu0 %346, %v309
    %v348 = vpop.permute.xlu0 %347
    %351 = vset.pattern.permute.xlu0 0
    %352 = vperm.xlu0 %351, %v310
    %v353 = vpop.permute.xlu0 %352
    %356 = vset.pattern.permute.xlu0 0
    %357 = vperm.xlu0 %356, %v311
    %v358 = vpop.permute.xlu0 %357
    %361 = vset.pattern.permute.xlu0 0
    %362 = vperm.xlu0 %361, %v312
    %v363 = vpop.permute.xlu0 %362
    %366 = vset.pattern.permute.xlu0 0
    %367 = vperm.xlu0 %366, %v313
    %v368 = vpop.permute.xlu0 %367
    %371 = vset.pattern.permute.xlu0 0
    %372 = vperm.xlu0 %371, %v314
    %v373 = vpop.permute.xlu0 %372
    %376 = vset.pattern.permute.xlu0 0
    %377 = vperm.xlu0 %376, %v315
    %v378 = vpop.permute.xlu0 %377
    %381 = vset.pattern.permute.xlu0 0
    %382 = vperm.xlu0 %381, %v316
    %v383 = vpop.permute.xlu0 %382
    %386 = vset.pattern.permute.xlu0 0
    %387 = vperm.xlu0 %386, %v317
    %v388 = vpop.permute.xlu0 %387
    %391 = vset.pattern.permute.xlu0 0
    %392 = vperm.xlu0 %391, %v318
    %v393 = vpop.permute.xlu0 %392
    %396 = vset.pattern.permute.xlu0 0
    %397 = vperm.xlu0 %396, %v319
    %v398 = vpop.permute.xlu0 %397
    %v400 = vadd.f32 %v272, %v323
    %v401 = vadd.f32 %v273, %v323
    %v402 = vadd.f32 %v274, %v328
    %v403 = vadd.f32 %v275, %v328
    %v404 = vadd.f32 %v276, %v333
    %v405 = vadd.f32 %v277, %v333
    %v406 = vadd.f32 %v278, %v338
    %v407 = vadd.f32 %v279, %v338
    %v408 = vadd.f32 %v280, %v343
    %v409 = vadd.f32 %v281, %v343
    %v410 = vadd.f32 %v282, %v348
    %v411 = vadd.f32 %v283, %v348
    %v412 = vadd.f32 %v284, %v353
    %v413 = vadd.f32 %v285, %v353
    %v414 = vadd.f32 %v286, %v358
    %v415 = vadd.f32 %v287, %v358
    %v416 = vadd.f32 %v288, %v363
    %v417 = vadd.f32 %v289, %v363
    %v418 = vadd.f32 %v290, %v368
    %v419 = vadd.f32 %v291, %v368
    %v420 = vadd.f32 %v292, %v373
    %v421 = vadd.f32 %v293, %v373
    %v422 = vadd.f32 %v294, %v378
    %v423 = vadd.f32 %v295, %v378
    %v424 = vadd.f32 %v296, %v383
    %v425 = vadd.f32 %v297, %v383
    %v426 = vadd.f32 %v298, %v388
    %v427 = vadd.f32 %v299, %v388
    %v428 = vadd.f32 %v300, %v393
    %v429 = vadd.f32 %v301, %v393
    %v430 = vadd.f32 %v302, %v398
    %v431 = vadd.f32 %v303, %v398
    %v432 = vand.u32 2147483647, %v400
    %vm433 = vcmp.le.f32.partialorder %v432, 0.7853982
    %vm434 = vcmp.lt.s32.totalorder %v400, 0
    %v435 = vand.u32 %v400, 2139095040
    %v436 = vshrl.u32 %v435, 23
    %v437 = vsub.s32 %v436, 127
    %v438 = vand.u32 2147483647, %v400
    %v439 = vand.u32 %v438, 8388607
    %v440 = vor.u32 %v439, 8388608
    %v441 = vsub.s32 0, %v440
    %v442 = vadd.s32 %v437, 1
    %vm443 = vcmp.gt.s32.totalorder %v442, 0
    %v444 = vsel %vm443, %v442, 0
    %v445 = vshrl.u32 %v444, 5
    %v446 = vand.u32 %v444, 31
    %v447 = vsub.s32 32, %v446
    %v448 = vshrl.u32 683565275, %v447
    %v449 = vshll.u32 683565275, %v446
    %v450 = vshrl.u32 2475754826, %v447
    %v451 = vor.u32 %v449, %v450
    %v452 = vshll.u32 2475754826, %v446
    %v453 = vshrl.u32 2131351028, %v447
    %v454 = vor.u32 %v452, %v453
    %v455 = vshll.u32 2131351028, %v446
    %v456 = vshrl.u32 2102212464, %v447
    %v457 = vor.u32 %v455, %v456
    %v458 = vshll.u32 2102212464, %v446
    %v459 = vshrl.u32 920167782, %v447
    %v460 = vor.u32 %v458, %v459
    %v461 = vshll.u32 920167782, %v446
    %v462 = vshrl.u32 1326507024, %v447
    %v463 = vor.u32 %v461, %v462
    %vm464 = vcmp.lt.s32.totalorder %v445, 1
    %vm465 = vcmp.lt.s32.totalorder %v445, 2
    %vm466 = vcmp.lt.s32.totalorder %v445, 3
    %vm467 = vcmp.lt.s32.totalorder %v445, 4
    %v468 = vsel %vm464, %v448, %v451
    %v469 = vsel %vm467, %v457, 2102212464
    %v470 = vsel %vm466, %v454, %v469
    %v471 = vsel %vm465, %v468, %v470
    %v472 = vsel %vm464, %v451, %v454
    %v473 = vsel %vm467, %v460, 920167782
    %v474 = vsel %vm466, %v457, %v473
    %v475 = vsel %vm465, %v472, %v474
    %v476 = vsel %vm464, %v454, %v457
    %v477 = vsel %vm467, %v463, 1326507024
    %v478 = vsel %vm466, %v460, %v477
    %v479 = vsel %vm465, %v476, %v478
    %v480 = vshll.u32 %v440, 8
    %v481 = vand.u32 %v480, 65535
    %v482 = vshrl.u32 %v480, 16
    %v483 = vand.u32 %v479, 65535
    %v484 = vshrl.u32 %v479, 16
    %v485 = vmul.u32 %v481, %v483
    %v486 = vmul.u32 %v481, %v484
    %v487 = vmul.u32 %v482, %v483
    %v488 = vmul.u32 %v482, %v484
    %v489 = vshll.u32 %v486, 16
    %v490 = vshrl.u32 %v486, 16
    %v491 = vshll.u32 %v487, 16
    %v492 = vshrl.u32 %v487, 16
    %vm493 = vc.u32 %v485, %v489
    %v494 = vsel %vm493, 1, 0
    %v495 = vadd.s32 %v485, %v489
    %v496 = vadd.s32 %v488, %v494
    %vm497 = vc.u32 %v495, %v491
    %v498 = vsel %vm497, 1, 0
    %v499 = vadd.s32 %v495, %v491
    %v500 = vadd.s32 %v496, %v498
    %v501 = vadd.s32 %v500, %v490
    %v502 = vadd.s32 %v501, %v492
    %v503 = vand.u32 %v480, 65535
    %v504 = vshrl.u32 %v480, 16
    %v505 = vand.u32 %v475, 65535
    %v506 = vshrl.u32 %v475, 16
    %v507 = vmul.u32 %v503, %v505
    %v508 = vmul.u32 %v503, %v506
    %v509 = vmul.u32 %v504, %v505
    %v510 = vmul.u32 %v504, %v506
    %v511 = vshll.u32 %v508, 16
    %v512 = vshrl.u32 %v508, 16
    %v513 = vshll.u32 %v509, 16
    %v514 = vshrl.u32 %v509, 16
    %vm515 = vc.u32 %v507, %v511
    %v516 = vsel %vm515, 1, 0
    %v517 = vadd.s32 %v507, %v511
    %v518 = vadd.s32 %v510, %v516
    %vm519 = vc.u32 %v517, %v513
    %v520 = vsel %vm519, 1, 0
    %v521 = vadd.s32 %v517, %v513
    %v522 = vadd.s32 %v518, %v520
    %v523 = vadd.s32 %v522, %v512
    %v524 = vadd.s32 %v523, %v514
    %v525 = vmul.u32 %v480, %v471
    %v526 = vadd.s32 %v502, %v521
    %vm527 = vc.u32 %v502, %v521
    %v528 = vadd.s32 %v524, 1
    %v529 = vsel %vm527, %v528, %v524
    %v530 = vadd.s32 %v525, %v529
    %v531 = vadd.s32 %v530, 536870912
    %v532 = vshrl.u32 %v531, 30
    %v533 = vshll.u32 %v532, 30
    %v534 = vsub.s32 %v530, %v533
    %vm535 = vcmp.lt.s32.totalorder %v534, 0
    %v536 = vsub.s32 0, %v534
    %v537 = vsel %vm535, %v536, %v534
    %v538 = vclz %v537
    %v539 = vsub.s32 %v538, 2
    %vm540 = vcmp.gt.s32.totalorder 0, %v539
    %v541 = vsel %vm540, 0, %v539
    %v542 = vsub.s32 32, %v541
    %v543 = vshll.u32 %v534, %v541
    %v544 = vshrl.u32 %v526, %v542
    %v545 = vor.u32 %v543, %v544
    %v546 = vsub.s32 4294967266, %v541
    %v547 = vadd.s32 %v546, 127
    %v548 = vshll.u32 %v547, 23
    %v549 = vor.u32 4788187, %v548
    %v550 = vand.u32 2147483647, %v549
    %v552 = vcvt.s32.f32 %v545
    %v553 = vmul.f32 %v552, %v550
    %v554 = vxor.u32 %v553, 2147483648
    %v555 = vsel %vm434, %v554, %v553
    %v556 = vsub.s32 4, %v532
    %v557 = vsel %vm434, %v556, %v532
    %v558 = vsel %vm433, %v400, %v555
    %v559 = vsel %vm433, 0, %v557
    %v560 = vmul.f32 %v558, %v558
    %v561 = vmul.f32 %v560, -0.001358992
    %v562 = vadd.f32 %v561, 0.041655596
    %v563 = vmul.f32 %v560, %v562
    %v564 = vadd.f32 %v563, -0.4999988
    %v565 = vmul.f32 %v560, %v564
    %v566 = vadd.f32 1.0, %v565
    %v567 = vmul.f32 %v558, %v558
    %v568 = vmul.f32 %v567, -0.00019511016
    %v569 = vadd.f32 %v568, 0.008332121
    %v570 = vmul.f32 %v567, %v569
    %v571 = vadd.f32 %v570, -0.16666654
    %v572 = vmul.f32 %v567, %v571
    %v573 = vadd.f32 %v572, 1.0
    %v574 = vmul.f32 %v573, %v558
    %vm575 = vweird.f32 %v400
    %v576 = vadd.s32 %v559, 3
    %v577 = vand.u32 %v576, 3
    %vm578 = vcmp.lt.s32.totalorder %v577, 2
    %vm579 = vcmp.eq.s32.totalorder %v577, 0
    %v580 = vxor.u32 %v574, 2147483648
    %v581 = vsel %vm579, %v566, %v580
    %vm582 = vcmp.eq.s32.totalorder %v577, 2
    %v583 = vxor.u32 %v566, 2147483648
    %v584 = vsel %vm582, %v583, %v574
    %v585 = vsel %vm578, %v581, %v584
    %v586 = vsel %vm575, nan, %v585
    %v587 = vand.u32 2147483647, %v401
    %vm588 = vcmp.le.f32.partialorder %v587, 0.7853982
    %vm589 = vcmp.lt.s32.totalorder %v401, 0
    %v590 = vand.u32 %v401, 2139095040
    %v591 = vshrl.u32 %v590, 23
    %v592 = vsub.s32 %v591, 127
    %v593 = vand.u32 2147483647, %v401
    %v594 = vand.u32 %v593, 8388607
    %v595 = vor.u32 %v594, 8388608
    %v596 = vsub.s32 0, %v595
    %v597 = vadd.s32 %v592, 1
    %vm598 = vcmp.gt.s32.totalorder %v597, 0
    %v599 = vsel %vm598, %v597, 0
    %v600 = vshrl.u32 %v599, 5
    %v601 = vand.u32 %v599, 31
    %v602 = vsub.s32 32, %v601
    %v603 = vshrl.u32 683565275, %v602
    %v604 = vshll.u32 683565275, %v601
    %v605 = vshrl.u32 2475754826, %v602
    %v606 = vor.u32 %v604, %v605
    %v607 = vshll.u32 2475754826, %v601
    %v608 = vshrl.u32 2131351028, %v602
    %v609 = vor.u32 %v607, %v608
    %v610 = vshll.u32 2131351028, %v601
    %v611 = vshrl.u32 2102212464, %v602
    %v612 = vor.u32 %v610, %v611
    %v613 = vshll.u32 2102212464, %v601
    %v614 = vshrl.u32 920167782, %v602
    %v615 = vor.u32 %v613, %v614
    %v616 = vshll.u32 920167782, %v601
    %v617 = vshrl.u32 1326507024, %v602
    %v618 = vor.u32 %v616, %v617
    %vm619 = vcmp.lt.s32.totalorder %v600, 1
    %vm620 = vcmp.lt.s32.totalorder %v600, 2
    %vm621 = vcmp.lt.s32.totalorder %v600, 3
    %vm622 = vcmp.lt.s32.totalorder %v600, 4
    %v623 = vsel %vm619, %v603, %v606
    %v624 = vsel %vm622, %v612, 2102212464
    %v625 = vsel %vm621, %v609, %v624
    %v626 = vsel %vm620, %v623, %v625
    %v627 = vsel %vm619, %v606, %v609
    %v628 = vsel %vm622, %v615, 920167782
    %v629 = vsel %vm621, %v612, %v628
    %v630 = vsel %vm620, %v627, %v629
    %v631 = vsel %vm619, %v609, %v612
    %v632 = vsel %vm622, %v618, 1326507024
    %v633 = vsel %vm621, %v615, %v632
    %v634 = vsel %vm620, %v631, %v633
    %v635 = vshll.u32 %v595, 8
    %v636 = vand.u32 %v635, 65535
    %v637 = vshrl.u32 %v635, 16
    %v638 = vand.u32 %v634, 65535
    %v639 = vshrl.u32 %v634, 16
    %v640 = vmul.u32 %v636, %v638
    %v641 = vmul.u32 %v636, %v639
    %v642 = vmul.u32 %v637, %v638
    %v643 = vmul.u32 %v637, %v639
    %v644 = vshll.u32 %v641, 16
    %v645 = vshrl.u32 %v641, 16
    %v646 = vshll.u32 %v642, 16
    %v647 = vshrl.u32 %v642, 16
    %vm648 = vc.u32 %v640, %v644
    %v649 = vsel %vm648, 1, 0
    %v650 = vadd.s32 %v640, %v644
    %v651 = vadd.s32 %v643, %v649
    %vm652 = vc.u32 %v650, %v646
    %v653 = vsel %vm652, 1, 0
    %v654 = vadd.s32 %v650, %v646
    %v655 = vadd.s32 %v651, %v653
    %v656 = vadd.s32 %v655, %v645
    %v657 = vadd.s32 %v656, %v647
    %v658 = vand.u32 %v635, 65535
    %v659 = vshrl.u32 %v635, 16
    %v660 = vand.u32 %v630, 65535
    %v661 = vshrl.u32 %v630, 16
    %v662 = vmul.u32 %v658, %v660
    %v663 = vmul.u32 %v658, %v661
    %v664 = vmul.u32 %v659, %v660
    %v665 = vmul.u32 %v659, %v661
    %v666 = vshll.u32 %v663, 16
    %v667 = vshrl.u32 %v663, 16
    %v668 = vshll.u32 %v664, 16
    %v669 = vshrl.u32 %v664, 16
    %vm670 = vc.u32 %v662, %v666
    %v671 = vsel %vm670, 1, 0
    %v672 = vadd.s32 %v662, %v666
    %v673 = vadd.s32 %v665, %v671
    %vm674 = vc.u32 %v672, %v668
    %v675 = vsel %vm674, 1, 0
    %v676 = vadd.s32 %v672, %v668
    %v677 = vadd.s32 %v673, %v675
    %v678 = vadd.s32 %v677, %v667
    %v679 = vadd.s32 %v678, %v669
    %v680 = vmul.u32 %v635, %v626
    %v681 = vadd.s32 %v657, %v676
    %vm682 = vc.u32 %v657, %v676
    %v683 = vadd.s32 %v679, 1
    %v684 = vsel %vm682, %v683, %v679
    %v685 = vadd.s32 %v680, %v684
    %v686 = vadd.s32 %v685, 536870912
    %v687 = vshrl.u32 %v686, 30
    %v688 = vshll.u32 %v687, 30
    %v689 = vsub.s32 %v685, %v688
    %vm690 = vcmp.lt.s32.totalorder %v689, 0
    %v691 = vsub.s32 0, %v689
    %v692 = vsel %vm690, %v691, %v689
    %v693 = vclz %v692
    %v694 = vsub.s32 %v693, 2
    %vm695 = vcmp.gt.s32.totalorder 0, %v694
    %v696 = vsel %vm695, 0, %v694
    %v697 = vsub.s32 32, %v696
    %v698 = vshll.u32 %v689, %v696
    %v699 = vshrl.u32 %v681, %v697
    %v700 = vor.u32 %v698, %v699
    %v701 = vsub.s32 4294967266, %v696
    %v702 = vadd.s32 %v701, 127
    %v703 = vshll.u32 %v702, 23
    %v704 = vor.u32 4788187, %v703
    %v705 = vand.u32 2147483647, %v704
    %v707 = vcvt.s32.f32 %v700
    %v708 = vmul.f32 %v707, %v705
    %v709 = vxor.u32 %v708, 2147483648
    %v710 = vsel %vm589, %v709, %v708
    %v711 = vsub.s32 4, %v687
    %v712 = vsel %vm589, %v711, %v687
    %v713 = vsel %vm588, %v401, %v710
    %v714 = vsel %vm588, 0, %v712
    %v715 = vmul.f32 %v713, %v713
    %v716 = vmul.f32 %v715, -0.001358992
    %v717 = vadd.f32 %v716, 0.041655596
    %v718 = vmul.f32 %v715, %v717
    %v719 = vadd.f32 %v718, -0.4999988
    %v720 = vmul.f32 %v715, %v719
    %v721 = vadd.f32 1.0, %v720
    %v722 = vmul.f32 %v713, %v713
    %v723 = vmul.f32 %v722, -0.00019511016
    %v724 = vadd.f32 %v723, 0.008332121
    %v725 = vmul.f32 %v722, %v724
    %v726 = vadd.f32 %v725, -0.16666654
    %v727 = vmul.f32 %v722, %v726
    %v728 = vadd.f32 %v727, 1.0
    %v729 = vmul.f32 %v728, %v713
    %vm730 = vweird.f32 %v401
    %v731 = vadd.s32 %v714, 3
    %v732 = vand.u32 %v731, 3
    %vm733 = vcmp.lt.s32.totalorder %v732, 2
    %vm734 = vcmp.eq.s32.totalorder %v732, 0
    %v735 = vxor.u32 %v729, 2147483648
    %v736 = vsel %vm734, %v721, %v735
    %vm737 = vcmp.eq.s32.totalorder %v732, 2
    %v738 = vxor.u32 %v721, 2147483648
    %v739 = vsel %vm737, %v738, %v729
    %v740 = vsel %vm733, %v736, %v739
    %v741 = vsel %vm730, nan, %v740
    %v742 = vand.u32 2147483647, %v402
    %vm743 = vcmp.le.f32.partialorder %v742, 0.7853982
    %vm744 = vcmp.lt.s32.totalorder %v402, 0
    %v745 = vand.u32 %v402, 2139095040
    %v746 = vshrl.u32 %v745, 23
    %v747 = vsub.s32 %v746, 127
    %v748 = vand.u32 2147483647, %v402
    %v749 = vand.u32 %v748, 8388607
    %v750 = vor.u32 %v749, 8388608
    %v751 = vsub.s32 0, %v750
    %v752 = vadd.s32 %v747, 1
    %vm753 = vcmp.gt.s32.totalorder %v752, 0
    %v754 = vsel %vm753, %v752, 0
    %v755 = vshrl.u32 %v754, 5
    %v756 = vand.u32 %v754, 31
    %v757 = vsub.s32 32, %v756
    %v758 = vshrl.u32 683565275, %v757
    %v759 = vshll.u32 683565275, %v756
    %v760 = vshrl.u32 2475754826, %v757
    %v761 = vor.u32 %v759, %v760
    %v762 = vshll.u32 2475754826, %v756
    %v763 = vshrl.u32 2131351028, %v757
    %v764 = vor.u32 %v762, %v763
    %v765 = vshll.u32 2131351028, %v756
    %v766 = vshrl.u32 2102212464, %v757
    %v767 = vor.u32 %v765, %v766
    %v768 = vshll.u32 2102212464, %v756
    %v769 = vshrl.u32 920167782, %v757
    %v770 = vor.u32 %v768, %v769
    %v771 = vshll.u32 920167782, %v756
    %v772 = vshrl.u32 1326507024, %v757
    %v773 = vor.u32 %v771, %v772
    %vm774 = vcmp.lt.s32.totalorder %v755, 1
    %vm775 = vcmp.lt.s32.totalorder %v755, 2
    %vm776 = vcmp.lt.s32.totalorder %v755, 3
    %vm777 = vcmp.lt.s32.totalorder %v755, 4
    %v778 = vsel %vm774, %v758, %v761
    %v779 = vsel %vm777, %v767, 2102212464
    %v780 = vsel %vm776, %v764, %v779
    %v781 = vsel %vm775, %v778, %v780
    %v782 = vsel %vm774, %v761, %v764
    %v783 = vsel %vm777, %v770, 920167782
    %v784 = vsel %vm776, %v767, %v783
    %v785 = vsel %vm775, %v782, %v784
    %v786 = vsel %vm774, %v764, %v767
    %v787 = vsel %vm777, %v773, 1326507024
    %v788 = vsel %vm776, %v770, %v787
    %v789 = vsel %vm775, %v786, %v788
    %v790 = vshll.u32 %v750, 8
    %v791 = vand.u32 %v790, 65535
    %v792 = vshrl.u32 %v790, 16
    %v793 = vand.u32 %v789, 65535
    %v794 = vshrl.u32 %v789, 16
    %v795 = vmul.u32 %v791, %v793
    %v796 = vmul.u32 %v791, %v794
    %v797 = vmul.u32 %v792, %v793
    %v798 = vmul.u32 %v792, %v794
    %v799 = vshll.u32 %v796, 16
    %v800 = vshrl.u32 %v796, 16
    %v801 = vshll.u32 %v797, 16
    %v802 = vshrl.u32 %v797, 16
    %vm803 = vc.u32 %v795, %v799
    %v804 = vsel %vm803, 1, 0
    %v805 = vadd.s32 %v795, %v799
    %v806 = vadd.s32 %v798, %v804
    %vm807 = vc.u32 %v805, %v801
    %v808 = vsel %vm807, 1, 0
    %v809 = vadd.s32 %v805, %v801
    %v810 = vadd.s32 %v806, %v808
    %v811 = vadd.s32 %v810, %v800
    %v812 = vadd.s32 %v811, %v802
    %v813 = vand.u32 %v790, 65535
    %v814 = vshrl.u32 %v790, 16
    %v815 = vand.u32 %v785, 65535
    %v816 = vshrl.u32 %v785, 16
    %v817 = vmul.u32 %v813, %v815
    %v818 = vmul.u32 %v813, %v816
    %v819 = vmul.u32 %v814, %v815
    %v820 = vmul.u32 %v814, %v816
    %v821 = vshll.u32 %v818, 16
    %v822 = vshrl.u32 %v818, 16
    %v823 = vshll.u32 %v819, 16
    %v824 = vshrl.u32 %v819, 16
    %vm825 = vc.u32 %v817, %v821
    %v826 = vsel %vm825, 1, 0
    %v827 = vadd.s32 %v817, %v821
    %v828 = vadd.s32 %v820, %v826
    %vm829 = vc.u32 %v827, %v823
    %v830 = vsel %vm829, 1, 0
    %v831 = vadd.s32 %v827, %v823
    %v832 = vadd.s32 %v828, %v830
    %v833 = vadd.s32 %v832, %v822
    %v834 = vadd.s32 %v833, %v824
    %v835 = vmul.u32 %v790, %v781
    %v836 = vadd.s32 %v812, %v831
    %vm837 = vc.u32 %v812, %v831
    %v838 = vadd.s32 %v834, 1
    %v839 = vsel %vm837, %v838, %v834
    %v840 = vadd.s32 %v835, %v839
    %v841 = vadd.s32 %v840, 536870912
    %v842 = vshrl.u32 %v841, 30
    %v843 = vshll.u32 %v842, 30
    %v844 = vsub.s32 %v840, %v843
    %vm845 = vcmp.lt.s32.totalorder %v844, 0
    %v846 = vsub.s32 0, %v844
    %v847 = vsel %vm845, %v846, %v844
    %v848 = vclz %v847
    %v849 = vsub.s32 %v848, 2
    %vm850 = vcmp.gt.s32.totalorder 0, %v849
    %v851 = vsel %vm850, 0, %v849
    %v852 = vsub.s32 32, %v851
    %v853 = vshll.u32 %v844, %v851
    %v854 = vshrl.u32 %v836, %v852
    %v855 = vor.u32 %v853, %v854
    %v856 = vsub.s32 4294967266, %v851
    %v857 = vadd.s32 %v856, 127
    %v858 = vshll.u32 %v857, 23
    %v859 = vor.u32 4788187, %v858
    %v860 = vand.u32 2147483647, %v859
    %v862 = vcvt.s32.f32 %v855
    %v863 = vmul.f32 %v862, %v860
    %v864 = vxor.u32 %v863, 2147483648
    %v865 = vsel %vm744, %v864, %v863
    %v866 = vsub.s32 4, %v842
    %v867 = vsel %vm744, %v866, %v842
    %v868 = vsel %vm743, %v402, %v865
    %v869 = vsel %vm743, 0, %v867
    %v870 = vmul.f32 %v868, %v868
    %v871 = vmul.f32 %v870, -0.001358992
    %v872 = vadd.f32 %v871, 0.041655596
    %v873 = vmul.f32 %v870, %v872
    %v874 = vadd.f32 %v873, -0.4999988
    %v875 = vmul.f32 %v870, %v874
    %v876 = vadd.f32 1.0, %v875
    %v877 = vmul.f32 %v868, %v868
    %v878 = vmul.f32 %v877, -0.00019511016
    %v879 = vadd.f32 %v878, 0.008332121
    %v880 = vmul.f32 %v877, %v879
    %v881 = vadd.f32 %v880, -0.16666654
    %v882 = vmul.f32 %v877, %v881
    %v883 = vadd.f32 %v882, 1.0
    %v884 = vmul.f32 %v883, %v868
    %vm885 = vweird.f32 %v402
    %v886 = vadd.s32 %v869, 3
    %v887 = vand.u32 %v886, 3
    %vm888 = vcmp.lt.s32.totalorder %v887, 2
    %vm889 = vcmp.eq.s32.totalorder %v887, 0
    %v890 = vxor.u32 %v884, 2147483648
    %v891 = vsel %vm889, %v876, %v890
    %vm892 = vcmp.eq.s32.totalorder %v887, 2
    %v893 = vxor.u32 %v876, 2147483648
    %v894 = vsel %vm892, %v893, %v884
    %v895 = vsel %vm888, %v891, %v894
    %v896 = vsel %vm885, nan, %v895
    %v897 = vand.u32 2147483647, %v403
    %vm898 = vcmp.le.f32.partialorder %v897, 0.7853982
    %vm899 = vcmp.lt.s32.totalorder %v403, 0
    %v900 = vand.u32 %v403, 2139095040
    %v901 = vshrl.u32 %v900, 23
    %v902 = vsub.s32 %v901, 127
    %v903 = vand.u32 2147483647, %v403
    %v904 = vand.u32 %v903, 8388607
    %v905 = vor.u32 %v904, 8388608
    %v906 = vsub.s32 0, %v905
    %v907 = vadd.s32 %v902, 1
    %vm908 = vcmp.gt.s32.totalorder %v907, 0
    %v909 = vsel %vm908, %v907, 0
    %v910 = vshrl.u32 %v909, 5
    %v911 = vand.u32 %v909, 31
    %v912 = vsub.s32 32, %v911
    %v913 = vshrl.u32 683565275, %v912
    %v914 = vshll.u32 683565275, %v911
    %v915 = vshrl.u32 2475754826, %v912
    %v916 = vor.u32 %v914, %v915
    %v917 = vshll.u32 2475754826, %v911
    %v918 = vshrl.u32 2131351028, %v912
    %v919 = vor.u32 %v917, %v918
    %v920 = vshll.u32 2131351028, %v911
    %v921 = vshrl.u32 2102212464, %v912
    %v922 = vor.u32 %v920, %v921
    %v923 = vshll.u32 2102212464, %v911
    %v924 = vshrl.u32 920167782, %v912
    %v925 = vor.u32 %v923, %v924
    %v926 = vshll.u32 920167782, %v911
    %v927 = vshrl.u32 1326507024, %v912
    %v928 = vor.u32 %v926, %v927
    %vm929 = vcmp.lt.s32.totalorder %v910, 1
    %vm930 = vcmp.lt.s32.totalorder %v910, 2
    %vm931 = vcmp.lt.s32.totalorder %v910, 3
    %vm932 = vcmp.lt.s32.totalorder %v910, 4
    %v933 = vsel %vm929, %v913, %v916
    %v934 = vsel %vm932, %v922, 2102212464
    %v935 = vsel %vm931, %v919, %v934
    %v936 = vsel %vm930, %v933, %v935
    %v937 = vsel %vm929, %v916, %v919
    %v938 = vsel %vm932, %v925, 920167782
    %v939 = vsel %vm931, %v922, %v938
    %v940 = vsel %vm930, %v937, %v939
    %v941 = vsel %vm929, %v919, %v922
    %v942 = vsel %vm932, %v928, 1326507024
    %v943 = vsel %vm931, %v925, %v942
    %v944 = vsel %vm930, %v941, %v943
    %v945 = vshll.u32 %v905, 8
    %v946 = vand.u32 %v945, 65535
    %v947 = vshrl.u32 %v945, 16
    %v948 = vand.u32 %v944, 65535
    %v949 = vshrl.u32 %v944, 16
    %v950 = vmul.u32 %v946, %v948
    %v951 = vmul.u32 %v946, %v949
    %v952 = vmul.u32 %v947, %v948
    %v953 = vmul.u32 %v947, %v949
    %v954 = vshll.u32 %v951, 16
    %v955 = vshrl.u32 %v951, 16
    %v956 = vshll.u32 %v952, 16
    %v957 = vshrl.u32 %v952, 16
    %vm958 = vc.u32 %v950, %v954
    %v959 = vsel %vm958, 1, 0
    %v960 = vadd.s32 %v950, %v954
    %v961 = vadd.s32 %v953, %v959
    %vm962 = vc.u32 %v960, %v956
    %v963 = vsel %vm962, 1, 0
    %v964 = vadd.s32 %v960, %v956
    %v965 = vadd.s32 %v961, %v963
    %v966 = vadd.s32 %v965, %v955
    %v967 = vadd.s32 %v966, %v957
    %v968 = vand.u32 %v945, 65535
    %v969 = vshrl.u32 %v945, 16
    %v970 = vand.u32 %v940, 65535
    %v971 = vshrl.u32 %v940, 16
    %v972 = vmul.u32 %v968, %v970
    %v973 = vmul.u32 %v968, %v971
    %v974 = vmul.u32 %v969, %v970
    %v975 = vmul.u32 %v969, %v971
    %v976 = vshll.u32 %v973, 16
    %v977 = vshrl.u32 %v973, 16
    %v978 = vshll.u32 %v974, 16
    %v979 = vshrl.u32 %v974, 16
    %vm980 = vc.u32 %v972, %v976
    %v981 = vsel %vm980, 1, 0
    %v982 = vadd.s32 %v972, %v976
    %v983 = vadd.s32 %v975, %v981
    %vm984 = vc.u32 %v982, %v978
    %v985 = vsel %vm984, 1, 0
    %v986 = vadd.s32 %v982, %v978
    %v987 = vadd.s32 %v983, %v985
    %v988 = vadd.s32 %v987, %v977
    %v989 = vadd.s32 %v988, %v979
    %v990 = vmul.u32 %v945, %v936
    %v991 = vadd.s32 %v967, %v986
    %vm992 = vc.u32 %v967, %v986
    %v993 = vadd.s32 %v989, 1
    %v994 = vsel %vm992, %v993, %v989
    %v995 = vadd.s32 %v990, %v994
    %v996 = vadd.s32 %v995, 536870912
    %v997 = vshrl.u32 %v996, 30
    %v998 = vshll.u32 %v997, 30
    %v999 = vsub.s32 %v995, %v998
    %vm1000 = vcmp.lt.s32.totalorder %v999, 0
    %v1001 = vsub.s32 0, %v999
    %v1002 = vsel %vm1000, %v1001, %v999
    %v1003 = vclz %v1002
    %v1004 = vsub.s32 %v1003, 2
    %vm1005 = vcmp.gt.s32.totalorder 0, %v1004
    %v1006 = vsel %vm1005, 0, %v1004
    %v1007 = vsub.s32 32, %v1006
    %v1008 = vshll.u32 %v999, %v1006
    %v1009 = vshrl.u32 %v991, %v1007
    %v1010 = vor.u32 %v1008, %v1009
    %v1011 = vsub.s32 4294967266, %v1006
    %v1012 = vadd.s32 %v1011, 127
    %v1013 = vshll.u32 %v1012, 23
    %v1014 = vor.u32 4788187, %v1013
    %v1015 = vand.u32 2147483647, %v1014
    %v1017 = vcvt.s32.f32 %v1010
    %v1018 = vmul.f32 %v1017, %v1015
    %v1019 = vxor.u32 %v1018, 2147483648
    %v1020 = vsel %vm899, %v1019, %v1018
    %v1021 = vsub.s32 4, %v997
    %v1022 = vsel %vm899, %v1021, %v997
    %v1023 = vsel %vm898, %v403, %v1020
    %v1024 = vsel %vm898, 0, %v1022
    %v1025 = vmul.f32 %v1023, %v1023
    %v1026 = vmul.f32 %v1025, -0.001358992
    %v1027 = vadd.f32 %v1026, 0.041655596
    %v1028 = vmul.f32 %v1025, %v1027
    %v1029 = vadd.f32 %v1028, -0.4999988
    %v1030 = vmul.f32 %v1025, %v1029
    %v1031 = vadd.f32 1.0, %v1030
    %v1032 = vmul.f32 %v1023, %v1023
    %v1033 = vmul.f32 %v1032, -0.00019511016
    %v1034 = vadd.f32 %v1033, 0.008332121
    %v1035 = vmul.f32 %v1032, %v1034
    %v1036 = vadd.f32 %v1035, -0.16666654
    %v1037 = vmul.f32 %v1032, %v1036
    %v1038 = vadd.f32 %v1037, 1.0
    %v1039 = vmul.f32 %v1038, %v1023
    %vm1040 = vweird.f32 %v403
    %v1041 = vadd.s32 %v1024, 3
    %v1042 = vand.u32 %v1041, 3
    %vm1043 = vcmp.lt.s32.totalorder %v1042, 2
    %vm1044 = vcmp.eq.s32.totalorder %v1042, 0
    %v1045 = vxor.u32 %v1039, 2147483648
    %v1046 = vsel %vm1044, %v1031, %v1045
    %vm1047 = vcmp.eq.s32.totalorder %v1042, 2
    %v1048 = vxor.u32 %v1031, 2147483648
    %v1049 = vsel %vm1047, %v1048, %v1039
    %v1050 = vsel %vm1043, %v1046, %v1049
    %v1051 = vsel %vm1040, nan, %v1050
    %v1052 = vand.u32 2147483647, %v404
    %vm1053 = vcmp.le.f32.partialorder %v1052, 0.7853982
    %vm1054 = vcmp.lt.s32.totalorder %v404, 0
    %v1055 = vand.u32 %v404, 2139095040
    %v1056 = vshrl.u32 %v1055, 23
    %v1057 = vsub.s32 %v1056, 127
    %v1058 = vand.u32 2147483647, %v404
    %v1059 = vand.u32 %v1058, 8388607
    %v1060 = vor.u32 %v1059, 8388608
    %v1061 = vsub.s32 0, %v1060
    %v1062 = vadd.s32 %v1057, 1
    %vm1063 = vcmp.gt.s32.totalorder %v1062, 0
    %v1064 = vsel %vm1063, %v1062, 0
    %v1065 = vshrl.u32 %v1064, 5
    %v1066 = vand.u32 %v1064, 31
    %v1067 = vsub.s32 32, %v1066
    %v1068 = vshrl.u32 683565275, %v1067
    %v1069 = vshll.u32 683565275, %v1066
    %v1070 = vshrl.u32 2475754826, %v1067
    %v1071 = vor.u32 %v1069, %v1070
    %v1072 = vshll.u32 2475754826, %v1066
    %v1073 = vshrl.u32 2131351028, %v1067
    %v1074 = vor.u32 %v1072, %v1073
    %v1075 = vshll.u32 2131351028, %v1066
    %v1076 = vshrl.u32 2102212464, %v1067
    %v1077 = vor.u32 %v1075, %v1076
    %v1078 = vshll.u32 2102212464, %v1066
    %v1079 = vshrl.u32 920167782, %v1067
    %v1080 = vor.u32 %v1078, %v1079
    %v1081 = vshll.u32 920167782, %v1066
    %v1082 = vshrl.u32 1326507024, %v1067
    %v1083 = vor.u32 %v1081, %v1082
    %vm1084 = vcmp.lt.s32.totalorder %v1065, 1
    %vm1085 = vcmp.lt.s32.totalorder %v1065, 2
    %vm1086 = vcmp.lt.s32.totalorder %v1065, 3
    %vm1087 = vcmp.lt.s32.totalorder %v1065, 4
    %v1088 = vsel %vm1084, %v1068, %v1071
    %v1089 = vsel %vm1087, %v1077, 2102212464
    %v1090 = vsel %vm1086, %v1074, %v1089
    %v1091 = vsel %vm1085, %v1088, %v1090
    %v1092 = vsel %vm1084, %v1071, %v1074
    %v1093 = vsel %vm1087, %v1080, 920167782
    %v1094 = vsel %vm1086, %v1077, %v1093
    %v1095 = vsel %vm1085, %v1092, %v1094
    %v1096 = vsel %vm1084, %v1074, %v1077
    %v1097 = vsel %vm1087, %v1083, 1326507024
    %v1098 = vsel %vm1086, %v1080, %v1097
    %v1099 = vsel %vm1085, %v1096, %v1098
    %v1100 = vshll.u32 %v1060, 8
    %v1101 = vand.u32 %v1100, 65535
    %v1102 = vshrl.u32 %v1100, 16
    %v1103 = vand.u32 %v1099, 65535
    %v1104 = vshrl.u32 %v1099, 16
    %v1105 = vmul.u32 %v1101, %v1103
    %v1106 = vmul.u32 %v1101, %v1104
    %v1107 = vmul.u32 %v1102, %v1103
    %v1108 = vmul.u32 %v1102, %v1104
    %v1109 = vshll.u32 %v1106, 16
    %v1110 = vshrl.u32 %v1106, 16
    %v1111 = vshll.u32 %v1107, 16
    %v1112 = vshrl.u32 %v1107, 16
    %vm1113 = vc.u32 %v1105, %v1109
    %v1114 = vsel %vm1113, 1, 0
    %v1115 = vadd.s32 %v1105, %v1109
    %v1116 = vadd.s32 %v1108, %v1114
    %vm1117 = vc.u32 %v1115, %v1111
    %v1118 = vsel %vm1117, 1, 0
    %v1119 = vadd.s32 %v1115, %v1111
    %v1120 = vadd.s32 %v1116, %v1118
    %v1121 = vadd.s32 %v1120, %v1110
    %v1122 = vadd.s32 %v1121, %v1112
    %v1123 = vand.u32 %v1100, 65535
    %v1124 = vshrl.u32 %v1100, 16
    %v1125 = vand.u32 %v1095, 65535
    %v1126 = vshrl.u32 %v1095, 16
    %v1127 = vmul.u32 %v1123, %v1125
    %v1128 = vmul.u32 %v1123, %v1126
    %v1129 = vmul.u32 %v1124, %v1125
    %v1130 = vmul.u32 %v1124, %v1126
    %v1131 = vshll.u32 %v1128, 16
    %v1132 = vshrl.u32 %v1128, 16
    %v1133 = vshll.u32 %v1129, 16
    %v1134 = vshrl.u32 %v1129, 16
    %vm1135 = vc.u32 %v1127, %v1131
    %v1136 = vsel %vm1135, 1, 0
    %v1137 = vadd.s32 %v1127, %v1131
    %v1138 = vadd.s32 %v1130, %v1136
    %vm1139 = vc.u32 %v1137, %v1133
    %v1140 = vsel %vm1139, 1, 0
    %v1141 = vadd.s32 %v1137, %v1133
    %v1142 = vadd.s32 %v1138, %v1140
    %v1143 = vadd.s32 %v1142, %v1132
    %v1144 = vadd.s32 %v1143, %v1134
    %v1145 = vmul.u32 %v1100, %v1091
    %v1146 = vadd.s32 %v1122, %v1141
    %vm1147 = vc.u32 %v1122, %v1141
    %v1148 = vadd.s32 %v1144, 1
    %v1149 = vsel %vm1147, %v1148, %v1144
    %v1150 = vadd.s32 %v1145, %v1149
    %v1151 = vadd.s32 %v1150, 536870912
    %v1152 = vshrl.u32 %v1151, 30
    %v1153 = vshll.u32 %v1152, 30
    %v1154 = vsub.s32 %v1150, %v1153
    %vm1155 = vcmp.lt.s32.totalorder %v1154, 0
    %v1156 = vsub.s32 0, %v1154
    %v1157 = vsel %vm1155, %v1156, %v1154
    %v1158 = vclz %v1157
    %v1159 = vsub.s32 %v1158, 2
    %vm1160 = vcmp.gt.s32.totalorder 0, %v1159
    %v1161 = vsel %vm1160, 0, %v1159
    %v1162 = vsub.s32 32, %v1161
    %v1163 = vshll.u32 %v1154, %v1161
    %v1164 = vshrl.u32 %v1146, %v1162
    %v1165 = vor.u32 %v1163, %v1164
    %v1166 = vsub.s32 4294967266, %v1161
    %v1167 = vadd.s32 %v1166, 127
    %v1168 = vshll.u32 %v1167, 23
    %v1169 = vor.u32 4788187, %v1168
    %v1170 = vand.u32 2147483647, %v1169
    %v1172 = vcvt.s32.f32 %v1165
    %v1173 = vmul.f32 %v1172, %v1170
    %v1174 = vxor.u32 %v1173, 2147483648
    %v1175 = vsel %vm1054, %v1174, %v1173
    %v1176 = vsub.s32 4, %v1152
    %v1177 = vsel %vm1054, %v1176, %v1152
    %v1178 = vsel %vm1053, %v404, %v1175
    %v1179 = vsel %vm1053, 0, %v1177
    %v1180 = vmul.f32 %v1178, %v1178
    %v1181 = vmul.f32 %v1180, -0.001358992
    %v1182 = vadd.f32 %v1181, 0.041655596
    %v1183 = vmul.f32 %v1180, %v1182
    %v1184 = vadd.f32 %v1183, -0.4999988
    %v1185 = vmul.f32 %v1180, %v1184
    %v1186 = vadd.f32 1.0, %v1185
    %v1187 = vmul.f32 %v1178, %v1178
    %v1188 = vmul.f32 %v1187, -0.00019511016
    %v1189 = vadd.f32 %v1188, 0.008332121
    %v1190 = vmul.f32 %v1187, %v1189
    %v1191 = vadd.f32 %v1190, -0.16666654
    %v1192 = vmul.f32 %v1187, %v1191
    %v1193 = vadd.f32 %v1192, 1.0
    %v1194 = vmul.f32 %v1193, %v1178
    %vm1195 = vweird.f32 %v404
    %v1196 = vadd.s32 %v1179, 3
    %v1197 = vand.u32 %v1196, 3
    %vm1198 = vcmp.lt.s32.totalorder %v1197, 2
    %vm1199 = vcmp.eq.s32.totalorder %v1197, 0
    %v1200 = vxor.u32 %v1194, 2147483648
    %v1201 = vsel %vm1199, %v1186, %v1200
    %vm1202 = vcmp.eq.s32.totalorder %v1197, 2
    %v1203 = vxor.u32 %v1186, 2147483648
    %v1204 = vsel %vm1202, %v1203, %v1194
    %v1205 = vsel %vm1198, %v1201, %v1204
    %v1206 = vsel %vm1195, nan, %v1205
    %v1207 = vand.u32 2147483647, %v405
    %vm1208 = vcmp.le.f32.partialorder %v1207, 0.7853982
    %vm1209 = vcmp.lt.s32.totalorder %v405, 0
    %v1210 = vand.u32 %v405, 2139095040
    %v1211 = vshrl.u32 %v1210, 23
    %v1212 = vsub.s32 %v1211, 127
    %v1213 = vand.u32 2147483647, %v405
    %v1214 = vand.u32 %v1213, 8388607
    %v1215 = vor.u32 %v1214, 8388608
    %v1216 = vsub.s32 0, %v1215
    %v1217 = vadd.s32 %v1212, 1
    %vm1218 = vcmp.gt.s32.totalorder %v1217, 0
    %v1219 = vsel %vm1218, %v1217, 0
    %v1220 = vshrl.u32 %v1219, 5
    %v1221 = vand.u32 %v1219, 31
    %v1222 = vsub.s32 32, %v1221
    %v1223 = vshrl.u32 683565275, %v1222
    %v1224 = vshll.u32 683565275, %v1221
    %v1225 = vshrl.u32 2475754826, %v1222
    %v1226 = vor.u32 %v1224, %v1225
    %v1227 = vshll.u32 2475754826, %v1221
    %v1228 = vshrl.u32 2131351028, %v1222
    %v1229 = vor.u32 %v1227, %v1228
    %v1230 = vshll.u32 2131351028, %v1221
    %v1231 = vshrl.u32 2102212464, %v1222
    %v1232 = vor.u32 %v1230, %v1231
    %v1233 = vshll.u32 2102212464, %v1221
    %v1234 = vshrl.u32 920167782, %v1222
    %v1235 = vor.u32 %v1233, %v1234
    %v1236 = vshll.u32 920167782, %v1221
    %v1237 = vshrl.u32 1326507024, %v1222
    %v1238 = vor.u32 %v1236, %v1237
    %vm1239 = vcmp.lt.s32.totalorder %v1220, 1
    %vm1240 = vcmp.lt.s32.totalorder %v1220, 2
    %vm1241 = vcmp.lt.s32.totalorder %v1220, 3
    %vm1242 = vcmp.lt.s32.totalorder %v1220, 4
    %v1243 = vsel %vm1239, %v1223, %v1226
    %v1244 = vsel %vm1242, %v1232, 2102212464
    %v1245 = vsel %vm1241, %v1229, %v1244
    %v1246 = vsel %vm1240, %v1243, %v1245
    %v1247 = vsel %vm1239, %v1226, %v1229
    %v1248 = vsel %vm1242, %v1235, 920167782
    %v1249 = vsel %vm1241, %v1232, %v1248
    %v1250 = vsel %vm1240, %v1247, %v1249
    %v1251 = vsel %vm1239, %v1229, %v1232
    %v1252 = vsel %vm1242, %v1238, 1326507024
    %v1253 = vsel %vm1241, %v1235, %v1252
    %v1254 = vsel %vm1240, %v1251, %v1253
    %v1255 = vshll.u32 %v1215, 8
    %v1256 = vand.u32 %v1255, 65535
    %v1257 = vshrl.u32 %v1255, 16
    %v1258 = vand.u32 %v1254, 65535
    %v1259 = vshrl.u32 %v1254, 16
    %v1260 = vmul.u32 %v1256, %v1258
    %v1261 = vmul.u32 %v1256, %v1259
    %v1262 = vmul.u32 %v1257, %v1258
    %v1263 = vmul.u32 %v1257, %v1259
    %v1264 = vshll.u32 %v1261, 16
    %v1265 = vshrl.u32 %v1261, 16
    %v1266 = vshll.u32 %v1262, 16
    %v1267 = vshrl.u32 %v1262, 16
    %vm1268 = vc.u32 %v1260, %v1264
    %v1269 = vsel %vm1268, 1, 0
    %v1270 = vadd.s32 %v1260, %v1264
    %v1271 = vadd.s32 %v1263, %v1269
    %vm1272 = vc.u32 %v1270, %v1266
    %v1273 = vsel %vm1272, 1, 0
    %v1274 = vadd.s32 %v1270, %v1266
    %v1275 = vadd.s32 %v1271, %v1273
    %v1276 = vadd.s32 %v1275, %v1265
    %v1277 = vadd.s32 %v1276, %v1267
    %v1278 = vand.u32 %v1255, 65535
    %v1279 = vshrl.u32 %v1255, 16
    %v1280 = vand.u32 %v1250, 65535
    %v1281 = vshrl.u32 %v1250, 16
    %v1282 = vmul.u32 %v1278, %v1280
    %v1283 = vmul.u32 %v1278, %v1281
    %v1284 = vmul.u32 %v1279, %v1280
    %v1285 = vmul.u32 %v1279, %v1281
    %v1286 = vshll.u32 %v1283, 16
    %v1287 = vshrl.u32 %v1283, 16
    %v1288 = vshll.u32 %v1284, 16
    %v1289 = vshrl.u32 %v1284, 16
    %vm1290 = vc.u32 %v1282, %v1286
    %v1291 = vsel %vm1290, 1, 0
    %v1292 = vadd.s32 %v1282, %v1286
    %v1293 = vadd.s32 %v1285, %v1291
    %vm1294 = vc.u32 %v1292, %v1288
    %v1295 = vsel %vm1294, 1, 0
    %v1296 = vadd.s32 %v1292, %v1288
    %v1297 = vadd.s32 %v1293, %v1295
    %v1298 = vadd.s32 %v1297, %v1287
    %v1299 = vadd.s32 %v1298, %v1289
    %v1300 = vmul.u32 %v1255, %v1246
    %v1301 = vadd.s32 %v1277, %v1296
    %vm1302 = vc.u32 %v1277, %v1296
    %v1303 = vadd.s32 %v1299, 1
    %v1304 = vsel %vm1302, %v1303, %v1299
    %v1305 = vadd.s32 %v1300, %v1304
    %v1306 = vadd.s32 %v1305, 536870912
    %v1307 = vshrl.u32 %v1306, 30
    %v1308 = vshll.u32 %v1307, 30
    %v1309 = vsub.s32 %v1305, %v1308
    %vm1310 = vcmp.lt.s32.totalorder %v1309, 0
    %v1311 = vsub.s32 0, %v1309
    %v1312 = vsel %vm1310, %v1311, %v1309
    %v1313 = vclz %v1312
    %v1314 = vsub.s32 %v1313, 2
    %vm1315 = vcmp.gt.s32.totalorder 0, %v1314
    %v1316 = vsel %vm1315, 0, %v1314
    %v1317 = vsub.s32 32, %v1316
    %v1318 = vshll.u32 %v1309, %v1316
    %v1319 = vshrl.u32 %v1301, %v1317
    %v1320 = vor.u32 %v1318, %v1319
    %v1321 = vsub.s32 4294967266, %v1316
    %v1322 = vadd.s32 %v1321, 127
    %v1323 = vshll.u32 %v1322, 23
    %v1324 = vor.u32 4788187, %v1323
    %v1325 = vand.u32 2147483647, %v1324
    %v1327 = vcvt.s32.f32 %v1320
    %v1328 = vmul.f32 %v1327, %v1325
    %v1329 = vxor.u32 %v1328, 2147483648
    %v1330 = vsel %vm1209, %v1329, %v1328
    %v1331 = vsub.s32 4, %v1307
    %v1332 = vsel %vm1209, %v1331, %v1307
    %v1333 = vsel %vm1208, %v405, %v1330
    %v1334 = vsel %vm1208, 0, %v1332
    %v1335 = vmul.f32 %v1333, %v1333
    %v1336 = vmul.f32 %v1335, -0.001358992
    %v1337 = vadd.f32 %v1336, 0.041655596
    %v1338 = vmul.f32 %v1335, %v1337
    %v1339 = vadd.f32 %v1338, -0.4999988
    %v1340 = vmul.f32 %v1335, %v1339
    %v1341 = vadd.f32 1.0, %v1340
    %v1342 = vmul.f32 %v1333, %v1333
    %v1343 = vmul.f32 %v1342, -0.00019511016
    %v1344 = vadd.f32 %v1343, 0.008332121
    %v1345 = vmul.f32 %v1342, %v1344
    %v1346 = vadd.f32 %v1345, -0.16666654
    %v1347 = vmul.f32 %v1342, %v1346
    %v1348 = vadd.f32 %v1347, 1.0
    %v1349 = vmul.f32 %v1348, %v1333
    %vm1350 = vweird.f32 %v405
    %v1351 = vadd.s32 %v1334, 3
    %v1352 = vand.u32 %v1351, 3
    %vm1353 = vcmp.lt.s32.totalorder %v1352, 2
    %vm1354 = vcmp.eq.s32.totalorder %v1352, 0
    %v1355 = vxor.u32 %v1349, 2147483648
    %v1356 = vsel %vm1354, %v1341, %v1355
    %vm1357 = vcmp.eq.s32.totalorder %v1352, 2
    %v1358 = vxor.u32 %v1341, 2147483648
    %v1359 = vsel %vm1357, %v1358, %v1349
    %v1360 = vsel %vm1353, %v1356, %v1359
    %v1361 = vsel %vm1350, nan, %v1360
    %v1362 = vand.u32 2147483647, %v406
    %vm1363 = vcmp.le.f32.partialorder %v1362, 0.7853982
    %vm1364 = vcmp.lt.s32.totalorder %v406, 0
    %v1365 = vand.u32 %v406, 2139095040
    %v1366 = vshrl.u32 %v1365, 23
    %v1367 = vsub.s32 %v1366, 127
    %v1368 = vand.u32 2147483647, %v406
    %v1369 = vand.u32 %v1368, 8388607
    %v1370 = vor.u32 %v1369, 8388608
    %v1371 = vsub.s32 0, %v1370
    %v1372 = vadd.s32 %v1367, 1
    %vm1373 = vcmp.gt.s32.totalorder %v1372, 0
    %v1374 = vsel %vm1373, %v1372, 0
    %v1375 = vshrl.u32 %v1374, 5
    %v1376 = vand.u32 %v1374, 31
    %v1377 = vsub.s32 32, %v1376
    %v1378 = vshrl.u32 683565275, %v1377
    %v1379 = vshll.u32 683565275, %v1376
    %v1380 = vshrl.u32 2475754826, %v1377
    %v1381 = vor.u32 %v1379, %v1380
    %v1382 = vshll.u32 2475754826, %v1376
    %v1383 = vshrl.u32 2131351028, %v1377
    %v1384 = vor.u32 %v1382, %v1383
    %v1385 = vshll.u32 2131351028, %v1376
    %v1386 = vshrl.u32 2102212464, %v1377
    %v1387 = vor.u32 %v1385, %v1386
    %v1388 = vshll.u32 2102212464, %v1376
    %v1389 = vshrl.u32 920167782, %v1377
    %v1390 = vor.u32 %v1388, %v1389
    %v1391 = vshll.u32 920167782, %v1376
    %v1392 = vshrl.u32 1326507024, %v1377
    %v1393 = vor.u32 %v1391, %v1392
    %vm1394 = vcmp.lt.s32.totalorder %v1375, 1
    %vm1395 = vcmp.lt.s32.totalorder %v1375, 2
    %vm1396 = vcmp.lt.s32.totalorder %v1375, 3
    %vm1397 = vcmp.lt.s32.totalorder %v1375, 4
    %v1398 = vsel %vm1394, %v1378, %v1381
    %v1399 = vsel %vm1397, %v1387, 2102212464
    %v1400 = vsel %vm1396, %v1384, %v1399
    %v1401 = vsel %vm1395, %v1398, %v1400
    %v1402 = vsel %vm1394, %v1381, %v1384
    %v1403 = vsel %vm1397, %v1390, 920167782
    %v1404 = vsel %vm1396, %v1387, %v1403
    %v1405 = vsel %vm1395, %v1402, %v1404
    %v1406 = vsel %vm1394, %v1384, %v1387
    %v1407 = vsel %vm1397, %v1393, 1326507024
    %v1408 = vsel %vm1396, %v1390, %v1407
    %v1409 = vsel %vm1395, %v1406, %v1408
    %v1410 = vshll.u32 %v1370, 8
    %v1411 = vand.u32 %v1410, 65535
    %v1412 = vshrl.u32 %v1410, 16
    %v1413 = vand.u32 %v1409, 65535
    %v1414 = vshrl.u32 %v1409, 16
    %v1415 = vmul.u32 %v1411, %v1413
    %v1416 = vmul.u32 %v1411, %v1414
    %v1417 = vmul.u32 %v1412, %v1413
    %v1418 = vmul.u32 %v1412, %v1414
    %v1419 = vshll.u32 %v1416, 16
    %v1420 = vshrl.u32 %v1416, 16
    %v1421 = vshll.u32 %v1417, 16
    %v1422 = vshrl.u32 %v1417, 16
    %vm1423 = vc.u32 %v1415, %v1419
    %v1424 = vsel %vm1423, 1, 0
    %v1425 = vadd.s32 %v1415, %v1419
    %v1426 = vadd.s32 %v1418, %v1424
    %vm1427 = vc.u32 %v1425, %v1421
    %v1428 = vsel %vm1427, 1, 0
    %v1429 = vadd.s32 %v1425, %v1421
    %v1430 = vadd.s32 %v1426, %v1428
    %v1431 = vadd.s32 %v1430, %v1420
    %v1432 = vadd.s32 %v1431, %v1422
    %v1433 = vand.u32 %v1410, 65535
    %v1434 = vshrl.u32 %v1410, 16
    %v1435 = vand.u32 %v1405, 65535
    %v1436 = vshrl.u32 %v1405, 16
    %v1437 = vmul.u32 %v1433, %v1435
    %v1438 = vmul.u32 %v1433, %v1436
    %v1439 = vmul.u32 %v1434, %v1435
    %v1440 = vmul.u32 %v1434, %v1436
    %v1441 = vshll.u32 %v1438, 16
    %v1442 = vshrl.u32 %v1438, 16
    %v1443 = vshll.u32 %v1439, 16
    %v1444 = vshrl.u32 %v1439, 16
    %vm1445 = vc.u32 %v1437, %v1441
    %v1446 = vsel %vm1445, 1, 0
    %v1447 = vadd.s32 %v1437, %v1441
    %v1448 = vadd.s32 %v1440, %v1446
    %vm1449 = vc.u32 %v1447, %v1443
    %v1450 = vsel %vm1449, 1, 0
    %v1451 = vadd.s32 %v1447, %v1443
    %v1452 = vadd.s32 %v1448, %v1450
    %v1453 = vadd.s32 %v1452, %v1442
    %v1454 = vadd.s32 %v1453, %v1444
    %v1455 = vmul.u32 %v1410, %v1401
    %v1456 = vadd.s32 %v1432, %v1451
    %vm1457 = vc.u32 %v1432, %v1451
    %v1458 = vadd.s32 %v1454, 1
    %v1459 = vsel %vm1457, %v1458, %v1454
    %v1460 = vadd.s32 %v1455, %v1459
    %v1461 = vadd.s32 %v1460, 536870912
    %v1462 = vshrl.u32 %v1461, 30
    %v1463 = vshll.u32 %v1462, 30
    %v1464 = vsub.s32 %v1460, %v1463
    %vm1465 = vcmp.lt.s32.totalorder %v1464, 0
    %v1466 = vsub.s32 0, %v1464
    %v1467 = vsel %vm1465, %v1466, %v1464
    %v1468 = vclz %v1467
    %v1469 = vsub.s32 %v1468, 2
    %vm1470 = vcmp.gt.s32.totalorder 0, %v1469
    %v1471 = vsel %vm1470, 0, %v1469
    %v1472 = vsub.s32 32, %v1471
    %v1473 = vshll.u32 %v1464, %v1471
    %v1474 = vshrl.u32 %v1456, %v1472
    %v1475 = vor.u32 %v1473, %v1474
    %v1476 = vsub.s32 4294967266, %v1471
    %v1477 = vadd.s32 %v1476, 127
    %v1478 = vshll.u32 %v1477, 23
    %v1479 = vor.u32 4788187, %v1478
    %v1480 = vand.u32 2147483647, %v1479
    %v1482 = vcvt.s32.f32 %v1475
    %v1483 = vmul.f32 %v1482, %v1480
    %v1484 = vxor.u32 %v1483, 2147483648
    %v1485 = vsel %vm1364, %v1484, %v1483
    %v1486 = vsub.s32 4, %v1462
    %v1487 = vsel %vm1364, %v1486, %v1462
    %v1488 = vsel %vm1363, %v406, %v1485
    %v1489 = vsel %vm1363, 0, %v1487
    %v1490 = vmul.f32 %v1488, %v1488
    %v1491 = vmul.f32 %v1490, -0.001358992
    %v1492 = vadd.f32 %v1491, 0.041655596
    %v1493 = vmul.f32 %v1490, %v1492
    %v1494 = vadd.f32 %v1493, -0.4999988
    %v1495 = vmul.f32 %v1490, %v1494
    %v1496 = vadd.f32 1.0, %v1495
    %v1497 = vmul.f32 %v1488, %v1488
    %v1498 = vmul.f32 %v1497, -0.00019511016
    %v1499 = vadd.f32 %v1498, 0.008332121
    %v1500 = vmul.f32 %v1497, %v1499
    %v1501 = vadd.f32 %v1500, -0.16666654
    %v1502 = vmul.f32 %v1497, %v1501
    %v1503 = vadd.f32 %v1502, 1.0
    %v1504 = vmul.f32 %v1503, %v1488
    %vm1505 = vweird.f32 %v406
    %v1506 = vadd.s32 %v1489, 3
    %v1507 = vand.u32 %v1506, 3
    %vm1508 = vcmp.lt.s32.totalorder %v1507, 2
    %vm1509 = vcmp.eq.s32.totalorder %v1507, 0
    %v1510 = vxor.u32 %v1504, 2147483648
    %v1511 = vsel %vm1509, %v1496, %v1510
    %vm1512 = vcmp.eq.s32.totalorder %v1507, 2
    %v1513 = vxor.u32 %v1496, 2147483648
    %v1514 = vsel %vm1512, %v1513, %v1504
    %v1515 = vsel %vm1508, %v1511, %v1514
    %v1516 = vsel %vm1505, nan, %v1515
    %v1517 = vand.u32 2147483647, %v407
    %vm1518 = vcmp.le.f32.partialorder %v1517, 0.7853982
    %vm1519 = vcmp.lt.s32.totalorder %v407, 0
    %v1520 = vand.u32 %v407, 2139095040
    %v1521 = vshrl.u32 %v1520, 23
    %v1522 = vsub.s32 %v1521, 127
    %v1523 = vand.u32 2147483647, %v407
    %v1524 = vand.u32 %v1523, 8388607
    %v1525 = vor.u32 %v1524, 8388608
    %v1526 = vsub.s32 0, %v1525
    %v1527 = vadd.s32 %v1522, 1
    %vm1528 = vcmp.gt.s32.totalorder %v1527, 0
    %v1529 = vsel %vm1528, %v1527, 0
    %v1530 = vshrl.u32 %v1529, 5
    %v1531 = vand.u32 %v1529, 31
    %v1532 = vsub.s32 32, %v1531
    %v1533 = vshrl.u32 683565275, %v1532
    %v1534 = vshll.u32 683565275, %v1531
    %v1535 = vshrl.u32 2475754826, %v1532
    %v1536 = vor.u32 %v1534, %v1535
    %v1537 = vshll.u32 2475754826, %v1531
    %v1538 = vshrl.u32 2131351028, %v1532
    %v1539 = vor.u32 %v1537, %v1538
    %v1540 = vshll.u32 2131351028, %v1531
    %v1541 = vshrl.u32 2102212464, %v1532
    %v1542 = vor.u32 %v1540, %v1541
    %v1543 = vshll.u32 2102212464, %v1531
    %v1544 = vshrl.u32 920167782, %v1532
    %v1545 = vor.u32 %v1543, %v1544
    %v1546 = vshll.u32 920167782, %v1531
    %v1547 = vshrl.u32 1326507024, %v1532
    %v1548 = vor.u32 %v1546, %v1547
    %vm1549 = vcmp.lt.s32.totalorder %v1530, 1
    %vm1550 = vcmp.lt.s32.totalorder %v1530, 2
    %vm1551 = vcmp.lt.s32.totalorder %v1530, 3
    %vm1552 = vcmp.lt.s32.totalorder %v1530, 4
    %v1553 = vsel %vm1549, %v1533, %v1536
    %v1554 = vsel %vm1552, %v1542, 2102212464
    %v1555 = vsel %vm1551, %v1539, %v1554
    %v1556 = vsel %vm1550, %v1553, %v1555
    %v1557 = vsel %vm1549, %v1536, %v1539
    %v1558 = vsel %vm1552, %v1545, 920167782
    %v1559 = vsel %vm1551, %v1542, %v1558
    %v1560 = vsel %vm1550, %v1557, %v1559
    %v1561 = vsel %vm1549, %v1539, %v1542
    %v1562 = vsel %vm1552, %v1548, 1326507024
    %v1563 = vsel %vm1551, %v1545, %v1562
    %v1564 = vsel %vm1550, %v1561, %v1563
    %v1565 = vshll.u32 %v1525, 8
    %v1566 = vand.u32 %v1565, 65535
    %v1567 = vshrl.u32 %v1565, 16
    %v1568 = vand.u32 %v1564, 65535
    %v1569 = vshrl.u32 %v1564, 16
    %v1570 = vmul.u32 %v1566, %v1568
    %v1571 = vmul.u32 %v1566, %v1569
    %v1572 = vmul.u32 %v1567, %v1568
    %v1573 = vmul.u32 %v1567, %v1569
    %v1574 = vshll.u32 %v1571, 16
    %v1575 = vshrl.u32 %v1571, 16
    %v1576 = vshll.u32 %v1572, 16
    %v1577 = vshrl.u32 %v1572, 16
    %vm1578 = vc.u32 %v1570, %v1574
    %v1579 = vsel %vm1578, 1, 0
    %v1580 = vadd.s32 %v1570, %v1574
    %v1581 = vadd.s32 %v1573, %v1579
    %vm1582 = vc.u32 %v1580, %v1576
    %v1583 = vsel %vm1582, 1, 0
    %v1584 = vadd.s32 %v1580, %v1576
    %v1585 = vadd.s32 %v1581, %v1583
    %v1586 = vadd.s32 %v1585, %v1575
    %v1587 = vadd.s32 %v1586, %v1577
    %v1588 = vand.u32 %v1565, 65535
    %v1589 = vshrl.u32 %v1565, 16
    %v1590 = vand.u32 %v1560, 65535
    %v1591 = vshrl.u32 %v1560, 16
    %v1592 = vmul.u32 %v1588, %v1590
    %v1593 = vmul.u32 %v1588, %v1591
    %v1594 = vmul.u32 %v1589, %v1590
    %v1595 = vmul.u32 %v1589, %v1591
    %v1596 = vshll.u32 %v1593, 16
    %v1597 = vshrl.u32 %v1593, 16
    %v1598 = vshll.u32 %v1594, 16
    %v1599 = vshrl.u32 %v1594, 16
    %vm1600 = vc.u32 %v1592, %v1596
    %v1601 = vsel %vm1600, 1, 0
    %v1602 = vadd.s32 %v1592, %v1596
    %v1603 = vadd.s32 %v1595, %v1601
    %vm1604 = vc.u32 %v1602, %v1598
    %v1605 = vsel %vm1604, 1, 0
    %v1606 = vadd.s32 %v1602, %v1598
    %v1607 = vadd.s32 %v1603, %v1605
    %v1608 = vadd.s32 %v1607, %v1597
    %v1609 = vadd.s32 %v1608, %v1599
    %v1610 = vmul.u32 %v1565, %v1556
    %v1611 = vadd.s32 %v1587, %v1606
    %vm1612 = vc.u32 %v1587, %v1606
    %v1613 = vadd.s32 %v1609, 1
    %v1614 = vsel %vm1612, %v1613, %v1609
    %v1615 = vadd.s32 %v1610, %v1614
    %v1616 = vadd.s32 %v1615, 536870912
    %v1617 = vshrl.u32 %v1616, 30
    %v1618 = vshll.u32 %v1617, 30
    %v1619 = vsub.s32 %v1615, %v1618
    %vm1620 = vcmp.lt.s32.totalorder %v1619, 0
    %v1621 = vsub.s32 0, %v1619
    %v1622 = vsel %vm1620, %v1621, %v1619
    %v1623 = vclz %v1622
    %v1624 = vsub.s32 %v1623, 2
    %vm1625 = vcmp.gt.s32.totalorder 0, %v1624
    %v1626 = vsel %vm1625, 0, %v1624
    %v1627 = vsub.s32 32, %v1626
    %v1628 = vshll.u32 %v1619, %v1626
    %v1629 = vshrl.u32 %v1611, %v1627
    %v1630 = vor.u32 %v1628, %v1629
    %v1631 = vsub.s32 4294967266, %v1626
    %v1632 = vadd.s32 %v1631, 127
    %v1633 = vshll.u32 %v1632, 23
    %v1634 = vor.u32 4788187, %v1633
    %v1635 = vand.u32 2147483647, %v1634
    %v1637 = vcvt.s32.f32 %v1630
    %v1638 = vmul.f32 %v1637, %v1635
    %v1639 = vxor.u32 %v1638, 2147483648
    %v1640 = vsel %vm1519, %v1639, %v1638
    %v1641 = vsub.s32 4, %v1617
    %v1642 = vsel %vm1519, %v1641, %v1617
    %v1643 = vsel %vm1518, %v407, %v1640
    %v1644 = vsel %vm1518, 0, %v1642
    %v1645 = vmul.f32 %v1643, %v1643
    %v1646 = vmul.f32 %v1645, -0.001358992
    %v1647 = vadd.f32 %v1646, 0.041655596
    %v1648 = vmul.f32 %v1645, %v1647
    %v1649 = vadd.f32 %v1648, -0.4999988
    %v1650 = vmul.f32 %v1645, %v1649
    %v1651 = vadd.f32 1.0, %v1650
    %v1652 = vmul.f32 %v1643, %v1643
    %v1653 = vmul.f32 %v1652, -0.00019511016
    %v1654 = vadd.f32 %v1653, 0.008332121
    %v1655 = vmul.f32 %v1652, %v1654
    %v1656 = vadd.f32 %v1655, -0.16666654
    %v1657 = vmul.f32 %v1652, %v1656
    %v1658 = vadd.f32 %v1657, 1.0
    %v1659 = vmul.f32 %v1658, %v1643
    %vm1660 = vweird.f32 %v407
    %v1661 = vadd.s32 %v1644, 3
    %v1662 = vand.u32 %v1661, 3
    %vm1663 = vcmp.lt.s32.totalorder %v1662, 2
    %vm1664 = vcmp.eq.s32.totalorder %v1662, 0
    %v1665 = vxor.u32 %v1659, 2147483648
    %v1666 = vsel %vm1664, %v1651, %v1665
    %vm1667 = vcmp.eq.s32.totalorder %v1662, 2
    %v1668 = vxor.u32 %v1651, 2147483648
    %v1669 = vsel %vm1667, %v1668, %v1659
    %v1670 = vsel %vm1663, %v1666, %v1669
    %v1671 = vsel %vm1660, nan, %v1670
    %v1672 = vand.u32 2147483647, %v408
    %vm1673 = vcmp.le.f32.partialorder %v1672, 0.7853982
    %vm1674 = vcmp.lt.s32.totalorder %v408, 0
    %v1675 = vand.u32 %v408, 2139095040
    %v1676 = vshrl.u32 %v1675, 23
    %v1677 = vsub.s32 %v1676, 127
    %v1678 = vand.u32 2147483647, %v408
    %v1679 = vand.u32 %v1678, 8388607
    %v1680 = vor.u32 %v1679, 8388608
    %v1681 = vsub.s32 0, %v1680
    %v1682 = vadd.s32 %v1677, 1
    %vm1683 = vcmp.gt.s32.totalorder %v1682, 0
    %v1684 = vsel %vm1683, %v1682, 0
    %v1685 = vshrl.u32 %v1684, 5
    %v1686 = vand.u32 %v1684, 31
    %v1687 = vsub.s32 32, %v1686
    %v1688 = vshrl.u32 683565275, %v1687
    %v1689 = vshll.u32 683565275, %v1686
    %v1690 = vshrl.u32 2475754826, %v1687
    %v1691 = vor.u32 %v1689, %v1690
    %v1692 = vshll.u32 2475754826, %v1686
    %v1693 = vshrl.u32 2131351028, %v1687
    %v1694 = vor.u32 %v1692, %v1693
    %v1695 = vshll.u32 2131351028, %v1686
    %v1696 = vshrl.u32 2102212464, %v1687
    %v1697 = vor.u32 %v1695, %v1696
    %v1698 = vshll.u32 2102212464, %v1686
    %v1699 = vshrl.u32 920167782, %v1687
    %v1700 = vor.u32 %v1698, %v1699
    %v1701 = vshll.u32 920167782, %v1686
    %v1702 = vshrl.u32 1326507024, %v1687
    %v1703 = vor.u32 %v1701, %v1702
    %vm1704 = vcmp.lt.s32.totalorder %v1685, 1
    %vm1705 = vcmp.lt.s32.totalorder %v1685, 2
    %vm1706 = vcmp.lt.s32.totalorder %v1685, 3
    %vm1707 = vcmp.lt.s32.totalorder %v1685, 4
    %v1708 = vsel %vm1704, %v1688, %v1691
    %v1709 = vsel %vm1707, %v1697, 2102212464
    %v1710 = vsel %vm1706, %v1694, %v1709
    %v1711 = vsel %vm1705, %v1708, %v1710
    %v1712 = vsel %vm1704, %v1691, %v1694
    %v1713 = vsel %vm1707, %v1700, 920167782
    %v1714 = vsel %vm1706, %v1697, %v1713
    %v1715 = vsel %vm1705, %v1712, %v1714
    %v1716 = vsel %vm1704, %v1694, %v1697
    %v1717 = vsel %vm1707, %v1703, 1326507024
    %v1718 = vsel %vm1706, %v1700, %v1717
    %v1719 = vsel %vm1705, %v1716, %v1718
    %v1720 = vshll.u32 %v1680, 8
    %v1721 = vand.u32 %v1720, 65535
    %v1722 = vshrl.u32 %v1720, 16
    %v1723 = vand.u32 %v1719, 65535
    %v1724 = vshrl.u32 %v1719, 16
    %v1725 = vmul.u32 %v1721, %v1723
    %v1726 = vmul.u32 %v1721, %v1724
    %v1727 = vmul.u32 %v1722, %v1723
    %v1728 = vmul.u32 %v1722, %v1724
    %v1729 = vshll.u32 %v1726, 16
    %v1730 = vshrl.u32 %v1726, 16
    %v1731 = vshll.u32 %v1727, 16
    %v1732 = vshrl.u32 %v1727, 16
    %vm1733 = vc.u32 %v1725, %v1729
    %v1734 = vsel %vm1733, 1, 0
    %v1735 = vadd.s32 %v1725, %v1729
    %v1736 = vadd.s32 %v1728, %v1734
    %vm1737 = vc.u32 %v1735, %v1731
    %v1738 = vsel %vm1737, 1, 0
    %v1739 = vadd.s32 %v1735, %v1731
    %v1740 = vadd.s32 %v1736, %v1738
    %v1741 = vadd.s32 %v1740, %v1730
    %v1742 = vadd.s32 %v1741, %v1732
    %v1743 = vand.u32 %v1720, 65535
    %v1744 = vshrl.u32 %v1720, 16
    %v1745 = vand.u32 %v1715, 65535
    %v1746 = vshrl.u32 %v1715, 16
    %v1747 = vmul.u32 %v1743, %v1745
    %v1748 = vmul.u32 %v1743, %v1746
    %v1749 = vmul.u32 %v1744, %v1745
    %v1750 = vmul.u32 %v1744, %v1746
    %v1751 = vshll.u32 %v1748, 16
    %v1752 = vshrl.u32 %v1748, 16
    %v1753 = vshll.u32 %v1749, 16
    %v1754 = vshrl.u32 %v1749, 16
    %vm1755 = vc.u32 %v1747, %v1751
    %v1756 = vsel %vm1755, 1, 0
    %v1757 = vadd.s32 %v1747, %v1751
    %v1758 = vadd.s32 %v1750, %v1756
    %vm1759 = vc.u32 %v1757, %v1753
    %v1760 = vsel %vm1759, 1, 0
    %v1761 = vadd.s32 %v1757, %v1753
    %v1762 = vadd.s32 %v1758, %v1760
    %v1763 = vadd.s32 %v1762, %v1752
    %v1764 = vadd.s32 %v1763, %v1754
    %v1765 = vmul.u32 %v1720, %v1711
    %v1766 = vadd.s32 %v1742, %v1761
    %vm1767 = vc.u32 %v1742, %v1761
    %v1768 = vadd.s32 %v1764, 1
    %v1769 = vsel %vm1767, %v1768, %v1764
    %v1770 = vadd.s32 %v1765, %v1769
    %v1771 = vadd.s32 %v1770, 536870912
    %v1772 = vshrl.u32 %v1771, 30
    %v1773 = vshll.u32 %v1772, 30
    %v1774 = vsub.s32 %v1770, %v1773
    %vm1775 = vcmp.lt.s32.totalorder %v1774, 0
    %v1776 = vsub.s32 0, %v1774
    %v1777 = vsel %vm1775, %v1776, %v1774
    %v1778 = vclz %v1777
    %v1779 = vsub.s32 %v1778, 2
    %vm1780 = vcmp.gt.s32.totalorder 0, %v1779
    %v1781 = vsel %vm1780, 0, %v1779
    %v1782 = vsub.s32 32, %v1781
    %v1783 = vshll.u32 %v1774, %v1781
    %v1784 = vshrl.u32 %v1766, %v1782
    %v1785 = vor.u32 %v1783, %v1784
    %v1786 = vsub.s32 4294967266, %v1781
    %v1787 = vadd.s32 %v1786, 127
    %v1788 = vshll.u32 %v1787, 23
    %v1789 = vor.u32 4788187, %v1788
    %v1790 = vand.u32 2147483647, %v1789
    %v1792 = vcvt.s32.f32 %v1785
    %v1793 = vmul.f32 %v1792, %v1790
    %v1794 = vxor.u32 %v1793, 2147483648
    %v1795 = vsel %vm1674, %v1794, %v1793
    %v1796 = vsub.s32 4, %v1772
    %v1797 = vsel %vm1674, %v1796, %v1772
    %v1798 = vsel %vm1673, %v408, %v1795
    %v1799 = vsel %vm1673, 0, %v1797
    %v1800 = vmul.f32 %v1798, %v1798
    %v1801 = vmul.f32 %v1800, -0.001358992
    %v1802 = vadd.f32 %v1801, 0.041655596
    %v1803 = vmul.f32 %v1800, %v1802
    %v1804 = vadd.f32 %v1803, -0.4999988
    %v1805 = vmul.f32 %v1800, %v1804
    %v1806 = vadd.f32 1.0, %v1805
    %v1807 = vmul.f32 %v1798, %v1798
    %v1808 = vmul.f32 %v1807, -0.00019511016
    %v1809 = vadd.f32 %v1808, 0.008332121
    %v1810 = vmul.f32 %v1807, %v1809
    %v1811 = vadd.f32 %v1810, -0.16666654
    %v1812 = vmul.f32 %v1807, %v1811
    %v1813 = vadd.f32 %v1812, 1.0
    %v1814 = vmul.f32 %v1813, %v1798
    %vm1815 = vweird.f32 %v408
    %v1816 = vadd.s32 %v1799, 3
    %v1817 = vand.u32 %v1816, 3
    %vm1818 = vcmp.lt.s32.totalorder %v1817, 2
    %vm1819 = vcmp.eq.s32.totalorder %v1817, 0
    %v1820 = vxor.u32 %v1814, 2147483648
    %v1821 = vsel %vm1819, %v1806, %v1820
    %vm1822 = vcmp.eq.s32.totalorder %v1817, 2
    %v1823 = vxor.u32 %v1806, 2147483648
    %v1824 = vsel %vm1822, %v1823, %v1814
    %v1825 = vsel %vm1818, %v1821, %v1824
    %v1826 = vsel %vm1815, nan, %v1825
    %v1827 = vand.u32 2147483647, %v409
    %vm1828 = vcmp.le.f32.partialorder %v1827, 0.7853982
    %vm1829 = vcmp.lt.s32.totalorder %v409, 0
    %v1830 = vand.u32 %v409, 2139095040
    %v1831 = vshrl.u32 %v1830, 23
    %v1832 = vsub.s32 %v1831, 127
    %v1833 = vand.u32 2147483647, %v409
    %v1834 = vand.u32 %v1833, 8388607
    %v1835 = vor.u32 %v1834, 8388608
    %v1836 = vsub.s32 0, %v1835
    %v1837 = vadd.s32 %v1832, 1
    %vm1838 = vcmp.gt.s32.totalorder %v1837, 0
    %v1839 = vsel %vm1838, %v1837, 0
    %v1840 = vshrl.u32 %v1839, 5
    %v1841 = vand.u32 %v1839, 31
    %v1842 = vsub.s32 32, %v1841
    %v1843 = vshrl.u32 683565275, %v1842
    %v1844 = vshll.u32 683565275, %v1841
    %v1845 = vshrl.u32 2475754826, %v1842
    %v1846 = vor.u32 %v1844, %v1845
    %v1847 = vshll.u32 2475754826, %v1841
    %v1848 = vshrl.u32 2131351028, %v1842
    %v1849 = vor.u32 %v1847, %v1848
    %v1850 = vshll.u32 2131351028, %v1841
    %v1851 = vshrl.u32 2102212464, %v1842
    %v1852 = vor.u32 %v1850, %v1851
    %v1853 = vshll.u32 2102212464, %v1841
    %v1854 = vshrl.u32 920167782, %v1842
    %v1855 = vor.u32 %v1853, %v1854
    %v1856 = vshll.u32 920167782, %v1841
    %v1857 = vshrl.u32 1326507024, %v1842
    %v1858 = vor.u32 %v1856, %v1857
    %vm1859 = vcmp.lt.s32.totalorder %v1840, 1
    %vm1860 = vcmp.lt.s32.totalorder %v1840, 2
    %vm1861 = vcmp.lt.s32.totalorder %v1840, 3
    %vm1862 = vcmp.lt.s32.totalorder %v1840, 4
    %v1863 = vsel %vm1859, %v1843, %v1846
    %v1864 = vsel %vm1862, %v1852, 2102212464
    %v1865 = vsel %vm1861, %v1849, %v1864
    %v1866 = vsel %vm1860, %v1863, %v1865
    %v1867 = vsel %vm1859, %v1846, %v1849
    %v1868 = vsel %vm1862, %v1855, 920167782
    %v1869 = vsel %vm1861, %v1852, %v1868
    %v1870 = vsel %vm1860, %v1867, %v1869
    %v1871 = vsel %vm1859, %v1849, %v1852
    %v1872 = vsel %vm1862, %v1858, 1326507024
    %v1873 = vsel %vm1861, %v1855, %v1872
    %v1874 = vsel %vm1860, %v1871, %v1873
    %v1875 = vshll.u32 %v1835, 8
    %v1876 = vand.u32 %v1875, 65535
    %v1877 = vshrl.u32 %v1875, 16
    %v1878 = vand.u32 %v1874, 65535
    %v1879 = vshrl.u32 %v1874, 16
    %v1880 = vmul.u32 %v1876, %v1878
    %v1881 = vmul.u32 %v1876, %v1879
    %v1882 = vmul.u32 %v1877, %v1878
    %v1883 = vmul.u32 %v1877, %v1879
    %v1884 = vshll.u32 %v1881, 16
    %v1885 = vshrl.u32 %v1881, 16
    %v1886 = vshll.u32 %v1882, 16
    %v1887 = vshrl.u32 %v1882, 16
    %vm1888 = vc.u32 %v1880, %v1884
    %v1889 = vsel %vm1888, 1, 0
    %v1890 = vadd.s32 %v1880, %v1884
    %v1891 = vadd.s32 %v1883, %v1889
    %vm1892 = vc.u32 %v1890, %v1886
    %v1893 = vsel %vm1892, 1, 0
    %v1894 = vadd.s32 %v1890, %v1886
    %v1895 = vadd.s32 %v1891, %v1893
    %v1896 = vadd.s32 %v1895, %v1885
    %v1897 = vadd.s32 %v1896, %v1887
    %v1898 = vand.u32 %v1875, 65535
    %v1899 = vshrl.u32 %v1875, 16
    %v1900 = vand.u32 %v1870, 65535
    %v1901 = vshrl.u32 %v1870, 16
    %v1902 = vmul.u32 %v1898, %v1900
    %v1903 = vmul.u32 %v1898, %v1901
    %v1904 = vmul.u32 %v1899, %v1900
    %v1905 = vmul.u32 %v1899, %v1901
    %v1906 = vshll.u32 %v1903, 16
    %v1907 = vshrl.u32 %v1903, 16
    %v1908 = vshll.u32 %v1904, 16
    %v1909 = vshrl.u32 %v1904, 16
    %vm1910 = vc.u32 %v1902, %v1906
    %v1911 = vsel %vm1910, 1, 0
    %v1912 = vadd.s32 %v1902, %v1906
    %v1913 = vadd.s32 %v1905, %v1911
    %vm1914 = vc.u32 %v1912, %v1908
    %v1915 = vsel %vm1914, 1, 0
    %v1916 = vadd.s32 %v1912, %v1908
    %v1917 = vadd.s32 %v1913, %v1915
    %v1918 = vadd.s32 %v1917, %v1907
    %v1919 = vadd.s32 %v1918, %v1909
    %v1920 = vmul.u32 %v1875, %v1866
    %v1921 = vadd.s32 %v1897, %v1916
    %vm1922 = vc.u32 %v1897, %v1916
    %v1923 = vadd.s32 %v1919, 1
    %v1924 = vsel %vm1922, %v1923, %v1919
    %v1925 = vadd.s32 %v1920, %v1924
    %v1926 = vadd.s32 %v1925, 536870912
    %v1927 = vshrl.u32 %v1926, 30
    %v1928 = vshll.u32 %v1927, 30
    %v1929 = vsub.s32 %v1925, %v1928
    %vm1930 = vcmp.lt.s32.totalorder %v1929, 0
    %v1931 = vsub.s32 0, %v1929
    %v1932 = vsel %vm1930, %v1931, %v1929
    %v1933 = vclz %v1932
    %v1934 = vsub.s32 %v1933, 2
    %vm1935 = vcmp.gt.s32.totalorder 0, %v1934
    %v1936 = vsel %vm1935, 0, %v1934
    %v1937 = vsub.s32 32, %v1936
    %v1938 = vshll.u32 %v1929, %v1936
    %v1939 = vshrl.u32 %v1921, %v1937
    %v1940 = vor.u32 %v1938, %v1939
    %v1941 = vsub.s32 4294967266, %v1936
    %v1942 = vadd.s32 %v1941, 127
    %v1943 = vshll.u32 %v1942, 23
    %v1944 = vor.u32 4788187, %v1943
    %v1945 = vand.u32 2147483647, %v1944
    %v1947 = vcvt.s32.f32 %v1940
    %v1948 = vmul.f32 %v1947, %v1945
    %v1949 = vxor.u32 %v1948, 2147483648
    %v1950 = vsel %vm1829, %v1949, %v1948
    %v1951 = vsub.s32 4, %v1927
    %v1952 = vsel %vm1829, %v1951, %v1927
    %v1953 = vsel %vm1828, %v409, %v1950
    %v1954 = vsel %vm1828, 0, %v1952
    %v1955 = vmul.f32 %v1953, %v1953
    %v1956 = vmul.f32 %v1955, -0.001358992
    %v1957 = vadd.f32 %v1956, 0.041655596
    %v1958 = vmul.f32 %v1955, %v1957
    %v1959 = vadd.f32 %v1958, -0.4999988
    %v1960 = vmul.f32 %v1955, %v1959
    %v1961 = vadd.f32 1.0, %v1960
    %v1962 = vmul.f32 %v1953, %v1953
    %v1963 = vmul.f32 %v1962, -0.00019511016
    %v1964 = vadd.f32 %v1963, 0.008332121
    %v1965 = vmul.f32 %v1962, %v1964
    %v1966 = vadd.f32 %v1965, -0.16666654
    %v1967 = vmul.f32 %v1962, %v1966
    %v1968 = vadd.f32 %v1967, 1.0
    %v1969 = vmul.f32 %v1968, %v1953
    %vm1970 = vweird.f32 %v409
    %v1971 = vadd.s32 %v1954, 3
    %v1972 = vand.u32 %v1971, 3
    %vm1973 = vcmp.lt.s32.totalorder %v1972, 2
    %vm1974 = vcmp.eq.s32.totalorder %v1972, 0
    %v1975 = vxor.u32 %v1969, 2147483648
    %v1976 = vsel %vm1974, %v1961, %v1975
    %vm1977 = vcmp.eq.s32.totalorder %v1972, 2
    %v1978 = vxor.u32 %v1961, 2147483648
    %v1979 = vsel %vm1977, %v1978, %v1969
    %v1980 = vsel %vm1973, %v1976, %v1979
    %v1981 = vsel %vm1970, nan, %v1980
    %v1982 = vand.u32 2147483647, %v410
    %vm1983 = vcmp.le.f32.partialorder %v1982, 0.7853982
    %vm1984 = vcmp.lt.s32.totalorder %v410, 0
    %v1985 = vand.u32 %v410, 2139095040
    %v1986 = vshrl.u32 %v1985, 23
    %v1987 = vsub.s32 %v1986, 127
    %v1988 = vand.u32 2147483647, %v410
    %v1989 = vand.u32 %v1988, 8388607
    %v1990 = vor.u32 %v1989, 8388608
    %v1991 = vsub.s32 0, %v1990
    %v1992 = vadd.s32 %v1987, 1
    %vm1993 = vcmp.gt.s32.totalorder %v1992, 0
    %v1994 = vsel %vm1993, %v1992, 0
    %v1995 = vshrl.u32 %v1994, 5
    %v1996 = vand.u32 %v1994, 31
    %v1997 = vsub.s32 32, %v1996
    %v1998 = vshrl.u32 683565275, %v1997
    %v1999 = vshll.u32 683565275, %v1996
    %v2000 = vshrl.u32 2475754826, %v1997
    %v2001 = vor.u32 %v1999, %v2000
    %v2002 = vshll.u32 2475754826, %v1996
    %v2003 = vshrl.u32 2131351028, %v1997
    %v2004 = vor.u32 %v2002, %v2003
    %v2005 = vshll.u32 2131351028, %v1996
    %v2006 = vshrl.u32 2102212464, %v1997
    %v2007 = vor.u32 %v2005, %v2006
    %v2008 = vshll.u32 2102212464, %v1996
    %v2009 = vshrl.u32 920167782, %v1997
    %v2010 = vor.u32 %v2008, %v2009
    %v2011 = vshll.u32 920167782, %v1996
    %v2012 = vshrl.u32 1326507024, %v1997
    %v2013 = vor.u32 %v2011, %v2012
    %vm2014 = vcmp.lt.s32.totalorder %v1995, 1
    %vm2015 = vcmp.lt.s32.totalorder %v1995, 2
    %vm2016 = vcmp.lt.s32.totalorder %v1995, 3
    %vm2017 = vcmp.lt.s32.totalorder %v1995, 4
    %v2018 = vsel %vm2014, %v1998, %v2001
    %v2019 = vsel %vm2017, %v2007, 2102212464
    %v2020 = vsel %vm2016, %v2004, %v2019
    %v2021 = vsel %vm2015, %v2018, %v2020
    %v2022 = vsel %vm2014, %v2001, %v2004
    %v2023 = vsel %vm2017, %v2010, 920167782
    %v2024 = vsel %vm2016, %v2007, %v2023
    %v2025 = vsel %vm2015, %v2022, %v2024
    %v2026 = vsel %vm2014, %v2004, %v2007
    %v2027 = vsel %vm2017, %v2013, 1326507024
    %v2028 = vsel %vm2016, %v2010, %v2027
    %v2029 = vsel %vm2015, %v2026, %v2028
    %v2030 = vshll.u32 %v1990, 8
    %v2031 = vand.u32 %v2030, 65535
    %v2032 = vshrl.u32 %v2030, 16
    %v2033 = vand.u32 %v2029, 65535
    %v2034 = vshrl.u32 %v2029, 16
    %v2035 = vmul.u32 %v2031, %v2033
    %v2036 = vmul.u32 %v2031, %v2034
    %v2037 = vmul.u32 %v2032, %v2033
    %v2038 = vmul.u32 %v2032, %v2034
    %v2039 = vshll.u32 %v2036, 16
    %v2040 = vshrl.u32 %v2036, 16
    %v2041 = vshll.u32 %v2037, 16
    %v2042 = vshrl.u32 %v2037, 16
    %vm2043 = vc.u32 %v2035, %v2039
    %v2044 = vsel %vm2043, 1, 0
    %v2045 = vadd.s32 %v2035, %v2039
    %v2046 = vadd.s32 %v2038, %v2044
    %vm2047 = vc.u32 %v2045, %v2041
    %v2048 = vsel %vm2047, 1, 0
    %v2049 = vadd.s32 %v2045, %v2041
    %v2050 = vadd.s32 %v2046, %v2048
    %v2051 = vadd.s32 %v2050, %v2040
    %v2052 = vadd.s32 %v2051, %v2042
    %v2053 = vand.u32 %v2030, 65535
    %v2054 = vshrl.u32 %v2030, 16
    %v2055 = vand.u32 %v2025, 65535
    %v2056 = vshrl.u32 %v2025, 16
    %v2057 = vmul.u32 %v2053, %v2055
    %v2058 = vmul.u32 %v2053, %v2056
    %v2059 = vmul.u32 %v2054, %v2055
    %v2060 = vmul.u32 %v2054, %v2056
    %v2061 = vshll.u32 %v2058, 16
    %v2062 = vshrl.u32 %v2058, 16
    %v2063 = vshll.u32 %v2059, 16
    %v2064 = vshrl.u32 %v2059, 16
    %vm2065 = vc.u32 %v2057, %v2061
    %v2066 = vsel %vm2065, 1, 0
    %v2067 = vadd.s32 %v2057, %v2061
    %v2068 = vadd.s32 %v2060, %v2066
    %vm2069 = vc.u32 %v2067, %v2063
    %v2070 = vsel %vm2069, 1, 0
    %v2071 = vadd.s32 %v2067, %v2063
    %v2072 = vadd.s32 %v2068, %v2070
    %v2073 = vadd.s32 %v2072, %v2062
    %v2074 = vadd.s32 %v2073, %v2064
    %v2075 = vmul.u32 %v2030, %v2021
    %v2076 = vadd.s32 %v2052, %v2071
    %vm2077 = vc.u32 %v2052, %v2071
    %v2078 = vadd.s32 %v2074, 1
    %v2079 = vsel %vm2077, %v2078, %v2074
    %v2080 = vadd.s32 %v2075, %v2079
    %v2081 = vadd.s32 %v2080, 536870912
    %v2082 = vshrl.u32 %v2081, 30
    %v2083 = vshll.u32 %v2082, 30
    %v2084 = vsub.s32 %v2080, %v2083
    %vm2085 = vcmp.lt.s32.totalorder %v2084, 0
    %v2086 = vsub.s32 0, %v2084
    %v2087 = vsel %vm2085, %v2086, %v2084
    %v2088 = vclz %v2087
    %v2089 = vsub.s32 %v2088, 2
    %vm2090 = vcmp.gt.s32.totalorder 0, %v2089
    %v2091 = vsel %vm2090, 0, %v2089
    %v2092 = vsub.s32 32, %v2091
    %v2093 = vshll.u32 %v2084, %v2091
    %v2094 = vshrl.u32 %v2076, %v2092
    %v2095 = vor.u32 %v2093, %v2094
    %v2096 = vsub.s32 4294967266, %v2091
    %v2097 = vadd.s32 %v2096, 127
    %v2098 = vshll.u32 %v2097, 23
    %v2099 = vor.u32 4788187, %v2098
    %v2100 = vand.u32 2147483647, %v2099
    %v2102 = vcvt.s32.f32 %v2095
    %v2103 = vmul.f32 %v2102, %v2100
    %v2104 = vxor.u32 %v2103, 2147483648
    %v2105 = vsel %vm1984, %v2104, %v2103
    %v2106 = vsub.s32 4, %v2082
    %v2107 = vsel %vm1984, %v2106, %v2082
    %v2108 = vsel %vm1983, %v410, %v2105
    %v2109 = vsel %vm1983, 0, %v2107
    %v2110 = vmul.f32 %v2108, %v2108
    %v2111 = vmul.f32 %v2110, -0.001358992
    %v2112 = vadd.f32 %v2111, 0.041655596
    %v2113 = vmul.f32 %v2110, %v2112
    %v2114 = vadd.f32 %v2113, -0.4999988
    %v2115 = vmul.f32 %v2110, %v2114
    %v2116 = vadd.f32 1.0, %v2115
    %v2117 = vmul.f32 %v2108, %v2108
    %v2118 = vmul.f32 %v2117, -0.00019511016
    %v2119 = vadd.f32 %v2118, 0.008332121
    %v2120 = vmul.f32 %v2117, %v2119
    %v2121 = vadd.f32 %v2120, -0.16666654
    %v2122 = vmul.f32 %v2117, %v2121
    %v2123 = vadd.f32 %v2122, 1.0
    %v2124 = vmul.f32 %v2123, %v2108
    %vm2125 = vweird.f32 %v410
    %v2126 = vadd.s32 %v2109, 3
    %v2127 = vand.u32 %v2126, 3
    %vm2128 = vcmp.lt.s32.totalorder %v2127, 2
    %vm2129 = vcmp.eq.s32.totalorder %v2127, 0
    %v2130 = vxor.u32 %v2124, 2147483648
    %v2131 = vsel %vm2129, %v2116, %v2130
    %vm2132 = vcmp.eq.s32.totalorder %v2127, 2
    %v2133 = vxor.u32 %v2116, 2147483648
    %v2134 = vsel %vm2132, %v2133, %v2124
    %v2135 = vsel %vm2128, %v2131, %v2134
    %v2136 = vsel %vm2125, nan, %v2135
    %v2137 = vand.u32 2147483647, %v411
    %vm2138 = vcmp.le.f32.partialorder %v2137, 0.7853982
    %vm2139 = vcmp.lt.s32.totalorder %v411, 0
    %v2140 = vand.u32 %v411, 2139095040
    %v2141 = vshrl.u32 %v2140, 23
    %v2142 = vsub.s32 %v2141, 127
    %v2143 = vand.u32 2147483647, %v411
    %v2144 = vand.u32 %v2143, 8388607
    %v2145 = vor.u32 %v2144, 8388608
    %v2146 = vsub.s32 0, %v2145
    %v2147 = vadd.s32 %v2142, 1
    %vm2148 = vcmp.gt.s32.totalorder %v2147, 0
    %v2149 = vsel %vm2148, %v2147, 0
    %v2150 = vshrl.u32 %v2149, 5
    %v2151 = vand.u32 %v2149, 31
    %v2152 = vsub.s32 32, %v2151
    %v2153 = vshrl.u32 683565275, %v2152
    %v2154 = vshll.u32 683565275, %v2151
    %v2155 = vshrl.u32 2475754826, %v2152
    %v2156 = vor.u32 %v2154, %v2155
    %v2157 = vshll.u32 2475754826, %v2151
    %v2158 = vshrl.u32 2131351028, %v2152
    %v2159 = vor.u32 %v2157, %v2158
    %v2160 = vshll.u32 2131351028, %v2151
    %v2161 = vshrl.u32 2102212464, %v2152
    %v2162 = vor.u32 %v2160, %v2161
    %v2163 = vshll.u32 2102212464, %v2151
    %v2164 = vshrl.u32 920167782, %v2152
    %v2165 = vor.u32 %v2163, %v2164
    %v2166 = vshll.u32 920167782, %v2151
    %v2167 = vshrl.u32 1326507024, %v2152
    %v2168 = vor.u32 %v2166, %v2167
    %vm2169 = vcmp.lt.s32.totalorder %v2150, 1
    %vm2170 = vcmp.lt.s32.totalorder %v2150, 2
    %vm2171 = vcmp.lt.s32.totalorder %v2150, 3
    %vm2172 = vcmp.lt.s32.totalorder %v2150, 4
    %v2173 = vsel %vm2169, %v2153, %v2156
    %v2174 = vsel %vm2172, %v2162, 2102212464
    %v2175 = vsel %vm2171, %v2159, %v2174
    %v2176 = vsel %vm2170, %v2173, %v2175
    %v2177 = vsel %vm2169, %v2156, %v2159
    %v2178 = vsel %vm2172, %v2165, 920167782
    %v2179 = vsel %vm2171, %v2162, %v2178
    %v2180 = vsel %vm2170, %v2177, %v2179
    %v2181 = vsel %vm2169, %v2159, %v2162
    %v2182 = vsel %vm2172, %v2168, 1326507024
    %v2183 = vsel %vm2171, %v2165, %v2182
    %v2184 = vsel %vm2170, %v2181, %v2183
    %v2185 = vshll.u32 %v2145, 8
    %v2186 = vand.u32 %v2185, 65535
    %v2187 = vshrl.u32 %v2185, 16
    %v2188 = vand.u32 %v2184, 65535
    %v2189 = vshrl.u32 %v2184, 16
    %v2190 = vmul.u32 %v2186, %v2188
    %v2191 = vmul.u32 %v2186, %v2189
    %v2192 = vmul.u32 %v2187, %v2188
    %v2193 = vmul.u32 %v2187, %v2189
    %v2194 = vshll.u32 %v2191, 16
    %v2195 = vshrl.u32 %v2191, 16
    %v2196 = vshll.u32 %v2192, 16
    %v2197 = vshrl.u32 %v2192, 16
    %vm2198 = vc.u32 %v2190, %v2194
    %v2199 = vsel %vm2198, 1, 0
    %v2200 = vadd.s32 %v2190, %v2194
    %v2201 = vadd.s32 %v2193, %v2199
    %vm2202 = vc.u32 %v2200, %v2196
    %v2203 = vsel %vm2202, 1, 0
    %v2204 = vadd.s32 %v2200, %v2196
    %v2205 = vadd.s32 %v2201, %v2203
    %v2206 = vadd.s32 %v2205, %v2195
    %v2207 = vadd.s32 %v2206, %v2197
    %v2208 = vand.u32 %v2185, 65535
    %v2209 = vshrl.u32 %v2185, 16
    %v2210 = vand.u32 %v2180, 65535
    %v2211 = vshrl.u32 %v2180, 16
    %v2212 = vmul.u32 %v2208, %v2210
    %v2213 = vmul.u32 %v2208, %v2211
    %v2214 = vmul.u32 %v2209, %v2210
    %v2215 = vmul.u32 %v2209, %v2211
    %v2216 = vshll.u32 %v2213, 16
    %v2217 = vshrl.u32 %v2213, 16
    %v2218 = vshll.u32 %v2214, 16
    %v2219 = vshrl.u32 %v2214, 16
    %vm2220 = vc.u32 %v2212, %v2216
    %v2221 = vsel %vm2220, 1, 0
    %v2222 = vadd.s32 %v2212, %v2216
    %v2223 = vadd.s32 %v2215, %v2221
    %vm2224 = vc.u32 %v2222, %v2218
    %v2225 = vsel %vm2224, 1, 0
    %v2226 = vadd.s32 %v2222, %v2218
    %v2227 = vadd.s32 %v2223, %v2225
    %v2228 = vadd.s32 %v2227, %v2217
    %v2229 = vadd.s32 %v2228, %v2219
    %v2230 = vmul.u32 %v2185, %v2176
    %v2231 = vadd.s32 %v2207, %v2226
    %vm2232 = vc.u32 %v2207, %v2226
    %v2233 = vadd.s32 %v2229, 1
    %v2234 = vsel %vm2232, %v2233, %v2229
    %v2235 = vadd.s32 %v2230, %v2234
    %v2236 = vadd.s32 %v2235, 536870912
    %v2237 = vshrl.u32 %v2236, 30
    %v2238 = vshll.u32 %v2237, 30
    %v2239 = vsub.s32 %v2235, %v2238
    %vm2240 = vcmp.lt.s32.totalorder %v2239, 0
    %v2241 = vsub.s32 0, %v2239
    %v2242 = vsel %vm2240, %v2241, %v2239
    %v2243 = vclz %v2242
    %v2244 = vsub.s32 %v2243, 2
    %vm2245 = vcmp.gt.s32.totalorder 0, %v2244
    %v2246 = vsel %vm2245, 0, %v2244
    %v2247 = vsub.s32 32, %v2246
    %v2248 = vshll.u32 %v2239, %v2246
    %v2249 = vshrl.u32 %v2231, %v2247
    %v2250 = vor.u32 %v2248, %v2249
    %v2251 = vsub.s32 4294967266, %v2246
    %v2252 = vadd.s32 %v2251, 127
    %v2253 = vshll.u32 %v2252, 23
    %v2254 = vor.u32 4788187, %v2253
    %v2255 = vand.u32 2147483647, %v2254
    %v2257 = vcvt.s32.f32 %v2250
    %v2258 = vmul.f32 %v2257, %v2255
    %v2259 = vxor.u32 %v2258, 2147483648
    %v2260 = vsel %vm2139, %v2259, %v2258
    %v2261 = vsub.s32 4, %v2237
    %v2262 = vsel %vm2139, %v2261, %v2237
    %v2263 = vsel %vm2138, %v411, %v2260
    %v2264 = vsel %vm2138, 0, %v2262
    %v2265 = vmul.f32 %v2263, %v2263
    %v2266 = vmul.f32 %v2265, -0.001358992
    %v2267 = vadd.f32 %v2266, 0.041655596
    %v2268 = vmul.f32 %v2265, %v2267
    %v2269 = vadd.f32 %v2268, -0.4999988
    %v2270 = vmul.f32 %v2265, %v2269
    %v2271 = vadd.f32 1.0, %v2270
    %v2272 = vmul.f32 %v2263, %v2263
    %v2273 = vmul.f32 %v2272, -0.00019511016
    %v2274 = vadd.f32 %v2273, 0.008332121
    %v2275 = vmul.f32 %v2272, %v2274
    %v2276 = vadd.f32 %v2275, -0.16666654
    %v2277 = vmul.f32 %v2272, %v2276
    %v2278 = vadd.f32 %v2277, 1.0
    %v2279 = vmul.f32 %v2278, %v2263
    %vm2280 = vweird.f32 %v411
    %v2281 = vadd.s32 %v2264, 3
    %v2282 = vand.u32 %v2281, 3
    %vm2283 = vcmp.lt.s32.totalorder %v2282, 2
    %vm2284 = vcmp.eq.s32.totalorder %v2282, 0
    %v2285 = vxor.u32 %v2279, 2147483648
    %v2286 = vsel %vm2284, %v2271, %v2285
    %vm2287 = vcmp.eq.s32.totalorder %v2282, 2
    %v2288 = vxor.u32 %v2271, 2147483648
    %v2289 = vsel %vm2287, %v2288, %v2279
    %v2290 = vsel %vm2283, %v2286, %v2289
    %v2291 = vsel %vm2280, nan, %v2290
    %v2292 = vand.u32 2147483647, %v412
    %vm2293 = vcmp.le.f32.partialorder %v2292, 0.7853982
    %vm2294 = vcmp.lt.s32.totalorder %v412, 0
    %v2295 = vand.u32 %v412, 2139095040
    %v2296 = vshrl.u32 %v2295, 23
    %v2297 = vsub.s32 %v2296, 127
    %v2298 = vand.u32 2147483647, %v412
    %v2299 = vand.u32 %v2298, 8388607
    %v2300 = vor.u32 %v2299, 8388608
    %v2301 = vsub.s32 0, %v2300
    %v2302 = vadd.s32 %v2297, 1
    %vm2303 = vcmp.gt.s32.totalorder %v2302, 0
    %v2304 = vsel %vm2303, %v2302, 0
    %v2305 = vshrl.u32 %v2304, 5
    %v2306 = vand.u32 %v2304, 31
    %v2307 = vsub.s32 32, %v2306
    %v2308 = vshrl.u32 683565275, %v2307
    %v2309 = vshll.u32 683565275, %v2306
    %v2310 = vshrl.u32 2475754826, %v2307
    %v2311 = vor.u32 %v2309, %v2310
    %v2312 = vshll.u32 2475754826, %v2306
    %v2313 = vshrl.u32 2131351028, %v2307
    %v2314 = vor.u32 %v2312, %v2313
    %v2315 = vshll.u32 2131351028, %v2306
    %v2316 = vshrl.u32 2102212464, %v2307
    %v2317 = vor.u32 %v2315, %v2316
    %v2318 = vshll.u32 2102212464, %v2306
    %v2319 = vshrl.u32 920167782, %v2307
    %v2320 = vor.u32 %v2318, %v2319
    %v2321 = vshll.u32 920167782, %v2306
    %v2322 = vshrl.u32 1326507024, %v2307
    %v2323 = vor.u32 %v2321, %v2322
    %vm2324 = vcmp.lt.s32.totalorder %v2305, 1
    %vm2325 = vcmp.lt.s32.totalorder %v2305, 2
    %vm2326 = vcmp.lt.s32.totalorder %v2305, 3
    %vm2327 = vcmp.lt.s32.totalorder %v2305, 4
    %v2328 = vsel %vm2324, %v2308, %v2311
    %v2329 = vsel %vm2327, %v2317, 2102212464
    %v2330 = vsel %vm2326, %v2314, %v2329
    %v2331 = vsel %vm2325, %v2328, %v2330
    %v2332 = vsel %vm2324, %v2311, %v2314
    %v2333 = vsel %vm2327, %v2320, 920167782
    %v2334 = vsel %vm2326, %v2317, %v2333
    %v2335 = vsel %vm2325, %v2332, %v2334
    %v2336 = vsel %vm2324, %v2314, %v2317
    %v2337 = vsel %vm2327, %v2323, 1326507024
    %v2338 = vsel %vm2326, %v2320, %v2337
    %v2339 = vsel %vm2325, %v2336, %v2338
    %v2340 = vshll.u32 %v2300, 8
    %v2341 = vand.u32 %v2340, 65535
    %v2342 = vshrl.u32 %v2340, 16
    %v2343 = vand.u32 %v2339, 65535
    %v2344 = vshrl.u32 %v2339, 16
    %v2345 = vmul.u32 %v2341, %v2343
    %v2346 = vmul.u32 %v2341, %v2344
    %v2347 = vmul.u32 %v2342, %v2343
    %v2348 = vmul.u32 %v2342, %v2344
    %v2349 = vshll.u32 %v2346, 16
    %v2350 = vshrl.u32 %v2346, 16
    %v2351 = vshll.u32 %v2347, 16
    %v2352 = vshrl.u32 %v2347, 16
    %vm2353 = vc.u32 %v2345, %v2349
    %v2354 = vsel %vm2353, 1, 0
    %v2355 = vadd.s32 %v2345, %v2349
    %v2356 = vadd.s32 %v2348, %v2354
    %vm2357 = vc.u32 %v2355, %v2351
    %v2358 = vsel %vm2357, 1, 0
    %v2359 = vadd.s32 %v2355, %v2351
    %v2360 = vadd.s32 %v2356, %v2358
    %v2361 = vadd.s32 %v2360, %v2350
    %v2362 = vadd.s32 %v2361, %v2352
    %v2363 = vand.u32 %v2340, 65535
    %v2364 = vshrl.u32 %v2340, 16
    %v2365 = vand.u32 %v2335, 65535
    %v2366 = vshrl.u32 %v2335, 16
    %v2367 = vmul.u32 %v2363, %v2365
    %v2368 = vmul.u32 %v2363, %v2366
    %v2369 = vmul.u32 %v2364, %v2365
    %v2370 = vmul.u32 %v2364, %v2366
    %v2371 = vshll.u32 %v2368, 16
    %v2372 = vshrl.u32 %v2368, 16
    %v2373 = vshll.u32 %v2369, 16
    %v2374 = vshrl.u32 %v2369, 16
    %vm2375 = vc.u32 %v2367, %v2371
    %v2376 = vsel %vm2375, 1, 0
    %v2377 = vadd.s32 %v2367, %v2371
    %v2378 = vadd.s32 %v2370, %v2376
    %vm2379 = vc.u32 %v2377, %v2373
    %v2380 = vsel %vm2379, 1, 0
    %v2381 = vadd.s32 %v2377, %v2373
    %v2382 = vadd.s32 %v2378, %v2380
    %v2383 = vadd.s32 %v2382, %v2372
    %v2384 = vadd.s32 %v2383, %v2374
    %v2385 = vmul.u32 %v2340, %v2331
    %v2386 = vadd.s32 %v2362, %v2381
    %vm2387 = vc.u32 %v2362, %v2381
    %v2388 = vadd.s32 %v2384, 1
    %v2389 = vsel %vm2387, %v2388, %v2384
    %v2390 = vadd.s32 %v2385, %v2389
    %v2391 = vadd.s32 %v2390, 536870912
    %v2392 = vshrl.u32 %v2391, 30
    %v2393 = vshll.u32 %v2392, 30
    %v2394 = vsub.s32 %v2390, %v2393
    %vm2395 = vcmp.lt.s32.totalorder %v2394, 0
    %v2396 = vsub.s32 0, %v2394
    %v2397 = vsel %vm2395, %v2396, %v2394
    %v2398 = vclz %v2397
    %v2399 = vsub.s32 %v2398, 2
    %vm2400 = vcmp.gt.s32.totalorder 0, %v2399
    %v2401 = vsel %vm2400, 0, %v2399
    %v2402 = vsub.s32 32, %v2401
    %v2403 = vshll.u32 %v2394, %v2401
    %v2404 = vshrl.u32 %v2386, %v2402
    %v2405 = vor.u32 %v2403, %v2404
    %v2406 = vsub.s32 4294967266, %v2401
    %v2407 = vadd.s32 %v2406, 127
    %v2408 = vshll.u32 %v2407, 23
    %v2409 = vor.u32 4788187, %v2408
    %v2410 = vand.u32 2147483647, %v2409
    %v2412 = vcvt.s32.f32 %v2405
    %v2413 = vmul.f32 %v2412, %v2410
    %v2414 = vxor.u32 %v2413, 2147483648
    %v2415 = vsel %vm2294, %v2414, %v2413
    %v2416 = vsub.s32 4, %v2392
    %v2417 = vsel %vm2294, %v2416, %v2392
    %v2418 = vsel %vm2293, %v412, %v2415
    %v2419 = vsel %vm2293, 0, %v2417
    %v2420 = vmul.f32 %v2418, %v2418
    %v2421 = vmul.f32 %v2420, -0.001358992
    %v2422 = vadd.f32 %v2421, 0.041655596
    %v2423 = vmul.f32 %v2420, %v2422
    %v2424 = vadd.f32 %v2423, -0.4999988
    %v2425 = vmul.f32 %v2420, %v2424
    %v2426 = vadd.f32 1.0, %v2425
    %v2427 = vmul.f32 %v2418, %v2418
    %v2428 = vmul.f32 %v2427, -0.00019511016
    %v2429 = vadd.f32 %v2428, 0.008332121
    %v2430 = vmul.f32 %v2427, %v2429
    %v2431 = vadd.f32 %v2430, -0.16666654
    %v2432 = vmul.f32 %v2427, %v2431
    %v2433 = vadd.f32 %v2432, 1.0
    %v2434 = vmul.f32 %v2433, %v2418
    %vm2435 = vweird.f32 %v412
    %v2436 = vadd.s32 %v2419, 3
    %v2437 = vand.u32 %v2436, 3
    %vm2438 = vcmp.lt.s32.totalorder %v2437, 2
    %vm2439 = vcmp.eq.s32.totalorder %v2437, 0
    %v2440 = vxor.u32 %v2434, 2147483648
    %v2441 = vsel %vm2439, %v2426, %v2440
    %vm2442 = vcmp.eq.s32.totalorder %v2437, 2
    %v2443 = vxor.u32 %v2426, 2147483648
    %v2444 = vsel %vm2442, %v2443, %v2434
    %v2445 = vsel %vm2438, %v2441, %v2444
    %v2446 = vsel %vm2435, nan, %v2445
    %v2447 = vand.u32 2147483647, %v413
    %vm2448 = vcmp.le.f32.partialorder %v2447, 0.7853982
    %vm2449 = vcmp.lt.s32.totalorder %v413, 0
    %v2450 = vand.u32 %v413, 2139095040
    %v2451 = vshrl.u32 %v2450, 23
    %v2452 = vsub.s32 %v2451, 127
    %v2453 = vand.u32 2147483647, %v413
    %v2454 = vand.u32 %v2453, 8388607
    %v2455 = vor.u32 %v2454, 8388608
    %v2456 = vsub.s32 0, %v2455
    %v2457 = vadd.s32 %v2452, 1
    %vm2458 = vcmp.gt.s32.totalorder %v2457, 0
    %v2459 = vsel %vm2458, %v2457, 0
    %v2460 = vshrl.u32 %v2459, 5
    %v2461 = vand.u32 %v2459, 31
    %v2462 = vsub.s32 32, %v2461
    %v2463 = vshrl.u32 683565275, %v2462
    %v2464 = vshll.u32 683565275, %v2461
    %v2465 = vshrl.u32 2475754826, %v2462
    %v2466 = vor.u32 %v2464, %v2465
    %v2467 = vshll.u32 2475754826, %v2461
    %v2468 = vshrl.u32 2131351028, %v2462
    %v2469 = vor.u32 %v2467, %v2468
    %v2470 = vshll.u32 2131351028, %v2461
    %v2471 = vshrl.u32 2102212464, %v2462
    %v2472 = vor.u32 %v2470, %v2471
    %v2473 = vshll.u32 2102212464, %v2461
    %v2474 = vshrl.u32 920167782, %v2462
    %v2475 = vor.u32 %v2473, %v2474
    %v2476 = vshll.u32 920167782, %v2461
    %v2477 = vshrl.u32 1326507024, %v2462
    %v2478 = vor.u32 %v2476, %v2477
    %vm2479 = vcmp.lt.s32.totalorder %v2460, 1
    %vm2480 = vcmp.lt.s32.totalorder %v2460, 2
    %vm2481 = vcmp.lt.s32.totalorder %v2460, 3
    %vm2482 = vcmp.lt.s32.totalorder %v2460, 4
    %v2483 = vsel %vm2479, %v2463, %v2466
    %v2484 = vsel %vm2482, %v2472, 2102212464
    %v2485 = vsel %vm2481, %v2469, %v2484
    %v2486 = vsel %vm2480, %v2483, %v2485
    %v2487 = vsel %vm2479, %v2466, %v2469
    %v2488 = vsel %vm2482, %v2475, 920167782
    %v2489 = vsel %vm2481, %v2472, %v2488
    %v2490 = vsel %vm2480, %v2487, %v2489
    %v2491 = vsel %vm2479, %v2469, %v2472
    %v2492 = vsel %vm2482, %v2478, 1326507024
    %v2493 = vsel %vm2481, %v2475, %v2492
    %v2494 = vsel %vm2480, %v2491, %v2493
    %v2495 = vshll.u32 %v2455, 8
    %v2496 = vand.u32 %v2495, 65535
    %v2497 = vshrl.u32 %v2495, 16
    %v2498 = vand.u32 %v2494, 65535
    %v2499 = vshrl.u32 %v2494, 16
    %v2500 = vmul.u32 %v2496, %v2498
    %v2501 = vmul.u32 %v2496, %v2499
    %v2502 = vmul.u32 %v2497, %v2498
    %v2503 = vmul.u32 %v2497, %v2499
    %v2504 = vshll.u32 %v2501, 16
    %v2505 = vshrl.u32 %v2501, 16
    %v2506 = vshll.u32 %v2502, 16
    %v2507 = vshrl.u32 %v2502, 16
    %vm2508 = vc.u32 %v2500, %v2504
    %v2509 = vsel %vm2508, 1, 0
    %v2510 = vadd.s32 %v2500, %v2504
    %v2511 = vadd.s32 %v2503, %v2509
    %vm2512 = vc.u32 %v2510, %v2506
    %v2513 = vsel %vm2512, 1, 0
    %v2514 = vadd.s32 %v2510, %v2506
    %v2515 = vadd.s32 %v2511, %v2513
    %v2516 = vadd.s32 %v2515, %v2505
    %v2517 = vadd.s32 %v2516, %v2507
    %v2518 = vand.u32 %v2495, 65535
    %v2519 = vshrl.u32 %v2495, 16
    %v2520 = vand.u32 %v2490, 65535
    %v2521 = vshrl.u32 %v2490, 16
    %v2522 = vmul.u32 %v2518, %v2520
    %v2523 = vmul.u32 %v2518, %v2521
    %v2524 = vmul.u32 %v2519, %v2520
    %v2525 = vmul.u32 %v2519, %v2521
    %v2526 = vshll.u32 %v2523, 16
    %v2527 = vshrl.u32 %v2523, 16
    %v2528 = vshll.u32 %v2524, 16
    %v2529 = vshrl.u32 %v2524, 16
    %vm2530 = vc.u32 %v2522, %v2526
    %v2531 = vsel %vm2530, 1, 0
    %v2532 = vadd.s32 %v2522, %v2526
    %v2533 = vadd.s32 %v2525, %v2531
    %vm2534 = vc.u32 %v2532, %v2528
    %v2535 = vsel %vm2534, 1, 0
    %v2536 = vadd.s32 %v2532, %v2528
    %v2537 = vadd.s32 %v2533, %v2535
    %v2538 = vadd.s32 %v2537, %v2527
    %v2539 = vadd.s32 %v2538, %v2529
    %v2540 = vmul.u32 %v2495, %v2486
    %v2541 = vadd.s32 %v2517, %v2536
    %vm2542 = vc.u32 %v2517, %v2536
    %v2543 = vadd.s32 %v2539, 1
    %v2544 = vsel %vm2542, %v2543, %v2539
    %v2545 = vadd.s32 %v2540, %v2544
    %v2546 = vadd.s32 %v2545, 536870912
    %v2547 = vshrl.u32 %v2546, 30
    %v2548 = vshll.u32 %v2547, 30
    %v2549 = vsub.s32 %v2545, %v2548
    %vm2550 = vcmp.lt.s32.totalorder %v2549, 0
    %v2551 = vsub.s32 0, %v2549
    %v2552 = vsel %vm2550, %v2551, %v2549
    %v2553 = vclz %v2552
    %v2554 = vsub.s32 %v2553, 2
    %vm2555 = vcmp.gt.s32.totalorder 0, %v2554
    %v2556 = vsel %vm2555, 0, %v2554
    %v2557 = vsub.s32 32, %v2556
    %v2558 = vshll.u32 %v2549, %v2556
    %v2559 = vshrl.u32 %v2541, %v2557
    %v2560 = vor.u32 %v2558, %v2559
    %v2561 = vsub.s32 4294967266, %v2556
    %v2562 = vadd.s32 %v2561, 127
    %v2563 = vshll.u32 %v2562, 23
    %v2564 = vor.u32 4788187, %v2563
    %v2565 = vand.u32 2147483647, %v2564
    %v2567 = vcvt.s32.f32 %v2560
    %v2568 = vmul.f32 %v2567, %v2565
    %v2569 = vxor.u32 %v2568, 2147483648
    %v2570 = vsel %vm2449, %v2569, %v2568
    %v2571 = vsub.s32 4, %v2547
    %v2572 = vsel %vm2449, %v2571, %v2547
    %v2573 = vsel %vm2448, %v413, %v2570
    %v2574 = vsel %vm2448, 0, %v2572
    %v2575 = vmul.f32 %v2573, %v2573
    %v2576 = vmul.f32 %v2575, -0.001358992
    %v2577 = vadd.f32 %v2576, 0.041655596
    %v2578 = vmul.f32 %v2575, %v2577
    %v2579 = vadd.f32 %v2578, -0.4999988
    %v2580 = vmul.f32 %v2575, %v2579
    %v2581 = vadd.f32 1.0, %v2580
    %v2582 = vmul.f32 %v2573, %v2573
    %v2583 = vmul.f32 %v2582, -0.00019511016
    %v2584 = vadd.f32 %v2583, 0.008332121
    %v2585 = vmul.f32 %v2582, %v2584
    %v2586 = vadd.f32 %v2585, -0.16666654
    %v2587 = vmul.f32 %v2582, %v2586
    %v2588 = vadd.f32 %v2587, 1.0
    %v2589 = vmul.f32 %v2588, %v2573
    %vm2590 = vweird.f32 %v413
    %v2591 = vadd.s32 %v2574, 3
    %v2592 = vand.u32 %v2591, 3
    %vm2593 = vcmp.lt.s32.totalorder %v2592, 2
    %vm2594 = vcmp.eq.s32.totalorder %v2592, 0
    %v2595 = vxor.u32 %v2589, 2147483648
    %v2596 = vsel %vm2594, %v2581, %v2595
    %vm2597 = vcmp.eq.s32.totalorder %v2592, 2
    %v2598 = vxor.u32 %v2581, 2147483648
    %v2599 = vsel %vm2597, %v2598, %v2589
    %v2600 = vsel %vm2593, %v2596, %v2599
    %v2601 = vsel %vm2590, nan, %v2600
    %v2602 = vand.u32 2147483647, %v414
    %vm2603 = vcmp.le.f32.partialorder %v2602, 0.7853982
    %vm2604 = vcmp.lt.s32.totalorder %v414, 0
    %v2605 = vand.u32 %v414, 2139095040
    %v2606 = vshrl.u32 %v2605, 23
    %v2607 = vsub.s32 %v2606, 127
    %v2608 = vand.u32 2147483647, %v414
    %v2609 = vand.u32 %v2608, 8388607
    %v2610 = vor.u32 %v2609, 8388608
    %v2611 = vsub.s32 0, %v2610
    %v2612 = vadd.s32 %v2607, 1
    %vm2613 = vcmp.gt.s32.totalorder %v2612, 0
    %v2614 = vsel %vm2613, %v2612, 0
    %v2615 = vshrl.u32 %v2614, 5
    %v2616 = vand.u32 %v2614, 31
    %v2617 = vsub.s32 32, %v2616
    %v2618 = vshrl.u32 683565275, %v2617
    %v2619 = vshll.u32 683565275, %v2616
    %v2620 = vshrl.u32 2475754826, %v2617
    %v2621 = vor.u32 %v2619, %v2620
    %v2622 = vshll.u32 2475754826, %v2616
    %v2623 = vshrl.u32 2131351028, %v2617
    %v2624 = vor.u32 %v2622, %v2623
    %v2625 = vshll.u32 2131351028, %v2616
    %v2626 = vshrl.u32 2102212464, %v2617
    %v2627 = vor.u32 %v2625, %v2626
    %v2628 = vshll.u32 2102212464, %v2616
    %v2629 = vshrl.u32 920167782, %v2617
    %v2630 = vor.u32 %v2628, %v2629
    %v2631 = vshll.u32 920167782, %v2616
    %v2632 = vshrl.u32 1326507024, %v2617
    %v2633 = vor.u32 %v2631, %v2632
    %vm2634 = vcmp.lt.s32.totalorder %v2615, 1
    %vm2635 = vcmp.lt.s32.totalorder %v2615, 2
    %vm2636 = vcmp.lt.s32.totalorder %v2615, 3
    %vm2637 = vcmp.lt.s32.totalorder %v2615, 4
    %v2638 = vsel %vm2634, %v2618, %v2621
    %v2639 = vsel %vm2637, %v2627, 2102212464
    %v2640 = vsel %vm2636, %v2624, %v2639
    %v2641 = vsel %vm2635, %v2638, %v2640
    %v2642 = vsel %vm2634, %v2621, %v2624
    %v2643 = vsel %vm2637, %v2630, 920167782
    %v2644 = vsel %vm2636, %v2627, %v2643
    %v2645 = vsel %vm2635, %v2642, %v2644
    %v2646 = vsel %vm2634, %v2624, %v2627
    %v2647 = vsel %vm2637, %v2633, 1326507024
    %v2648 = vsel %vm2636, %v2630, %v2647
    %v2649 = vsel %vm2635, %v2646, %v2648
    %v2650 = vshll.u32 %v2610, 8
    %v2651 = vand.u32 %v2650, 65535
    %v2652 = vshrl.u32 %v2650, 16
    %v2653 = vand.u32 %v2649, 65535
    %v2654 = vshrl.u32 %v2649, 16
    %v2655 = vmul.u32 %v2651, %v2653
    %v2656 = vmul.u32 %v2651, %v2654
    %v2657 = vmul.u32 %v2652, %v2653
    %v2658 = vmul.u32 %v2652, %v2654
    %v2659 = vshll.u32 %v2656, 16
    %v2660 = vshrl.u32 %v2656, 16
    %v2661 = vshll.u32 %v2657, 16
    %v2662 = vshrl.u32 %v2657, 16
    %vm2663 = vc.u32 %v2655, %v2659
    %v2664 = vsel %vm2663, 1, 0
    %v2665 = vadd.s32 %v2655, %v2659
    %v2666 = vadd.s32 %v2658, %v2664
    %vm2667 = vc.u32 %v2665, %v2661
    %v2668 = vsel %vm2667, 1, 0
    %v2669 = vadd.s32 %v2665, %v2661
    %v2670 = vadd.s32 %v2666, %v2668
    %v2671 = vadd.s32 %v2670, %v2660
    %v2672 = vadd.s32 %v2671, %v2662
    %v2673 = vand.u32 %v2650, 65535
    %v2674 = vshrl.u32 %v2650, 16
    %v2675 = vand.u32 %v2645, 65535
    %v2676 = vshrl.u32 %v2645, 16
    %v2677 = vmul.u32 %v2673, %v2675
    %v2678 = vmul.u32 %v2673, %v2676
    %v2679 = vmul.u32 %v2674, %v2675
    %v2680 = vmul.u32 %v2674, %v2676
    %v2681 = vshll.u32 %v2678, 16
    %v2682 = vshrl.u32 %v2678, 16
    %v2683 = vshll.u32 %v2679, 16
    %v2684 = vshrl.u32 %v2679, 16
    %vm2685 = vc.u32 %v2677, %v2681
    %v2686 = vsel %vm2685, 1, 0
    %v2687 = vadd.s32 %v2677, %v2681
    %v2688 = vadd.s32 %v2680, %v2686
    %vm2689 = vc.u32 %v2687, %v2683
    %v2690 = vsel %vm2689, 1, 0
    %v2691 = vadd.s32 %v2687, %v2683
    %v2692 = vadd.s32 %v2688, %v2690
    %v2693 = vadd.s32 %v2692, %v2682
    %v2694 = vadd.s32 %v2693, %v2684
    %v2695 = vmul.u32 %v2650, %v2641
    %v2696 = vadd.s32 %v2672, %v2691
    %vm2697 = vc.u32 %v2672, %v2691
    %v2698 = vadd.s32 %v2694, 1
    %v2699 = vsel %vm2697, %v2698, %v2694
    %v2700 = vadd.s32 %v2695, %v2699
    %v2701 = vadd.s32 %v2700, 536870912
    %v2702 = vshrl.u32 %v2701, 30
    %v2703 = vshll.u32 %v2702, 30
    %v2704 = vsub.s32 %v2700, %v2703
    %vm2705 = vcmp.lt.s32.totalorder %v2704, 0
    %v2706 = vsub.s32 0, %v2704
    %v2707 = vsel %vm2705, %v2706, %v2704
    %v2708 = vclz %v2707
    %v2709 = vsub.s32 %v2708, 2
    %vm2710 = vcmp.gt.s32.totalorder 0, %v2709
    %v2711 = vsel %vm2710, 0, %v2709
    %v2712 = vsub.s32 32, %v2711
    %v2713 = vshll.u32 %v2704, %v2711
    %v2714 = vshrl.u32 %v2696, %v2712
    %v2715 = vor.u32 %v2713, %v2714
    %v2716 = vsub.s32 4294967266, %v2711
    %v2717 = vadd.s32 %v2716, 127
    %v2718 = vshll.u32 %v2717, 23
    %v2719 = vor.u32 4788187, %v2718
    %v2720 = vand.u32 2147483647, %v2719
    %v2722 = vcvt.s32.f32 %v2715
    %v2723 = vmul.f32 %v2722, %v2720
    %v2724 = vxor.u32 %v2723, 2147483648
    %v2725 = vsel %vm2604, %v2724, %v2723
    %v2726 = vsub.s32 4, %v2702
    %v2727 = vsel %vm2604, %v2726, %v2702
    %v2728 = vsel %vm2603, %v414, %v2725
    %v2729 = vsel %vm2603, 0, %v2727
    %v2730 = vmul.f32 %v2728, %v2728
    %v2731 = vmul.f32 %v2730, -0.001358992
    %v2732 = vadd.f32 %v2731, 0.041655596
    %v2733 = vmul.f32 %v2730, %v2732
    %v2734 = vadd.f32 %v2733, -0.4999988
    %v2735 = vmul.f32 %v2730, %v2734
    %v2736 = vadd.f32 1.0, %v2735
    %v2737 = vmul.f32 %v2728, %v2728
    %v2738 = vmul.f32 %v2737, -0.00019511016
    %v2739 = vadd.f32 %v2738, 0.008332121
    %v2740 = vmul.f32 %v2737, %v2739
    %v2741 = vadd.f32 %v2740, -0.16666654
    %v2742 = vmul.f32 %v2737, %v2741
    %v2743 = vadd.f32 %v2742, 1.0
    %v2744 = vmul.f32 %v2743, %v2728
    %vm2745 = vweird.f32 %v414
    %v2746 = vadd.s32 %v2729, 3
    %v2747 = vand.u32 %v2746, 3
    %vm2748 = vcmp.lt.s32.totalorder %v2747, 2
    %vm2749 = vcmp.eq.s32.totalorder %v2747, 0
    %v2750 = vxor.u32 %v2744, 2147483648
    %v2751 = vsel %vm2749, %v2736, %v2750
    %vm2752 = vcmp.eq.s32.totalorder %v2747, 2
    %v2753 = vxor.u32 %v2736, 2147483648
    %v2754 = vsel %vm2752, %v2753, %v2744
    %v2755 = vsel %vm2748, %v2751, %v2754
    %v2756 = vsel %vm2745, nan, %v2755
    %v2757 = vand.u32 2147483647, %v415
    %vm2758 = vcmp.le.f32.partialorder %v2757, 0.7853982
    %vm2759 = vcmp.lt.s32.totalorder %v415, 0
    %v2760 = vand.u32 %v415, 2139095040
    %v2761 = vshrl.u32 %v2760, 23
    %v2762 = vsub.s32 %v2761, 127
    %v2763 = vand.u32 2147483647, %v415
    %v2764 = vand.u32 %v2763, 8388607
    %v2765 = vor.u32 %v2764, 8388608
    %v2766 = vsub.s32 0, %v2765
    %v2767 = vadd.s32 %v2762, 1
    %vm2768 = vcmp.gt.s32.totalorder %v2767, 0
    %v2769 = vsel %vm2768, %v2767, 0
    %v2770 = vshrl.u32 %v2769, 5
    %v2771 = vand.u32 %v2769, 31
    %v2772 = vsub.s32 32, %v2771
    %v2773 = vshrl.u32 683565275, %v2772
    %v2774 = vshll.u32 683565275, %v2771
    %v2775 = vshrl.u32 2475754826, %v2772
    %v2776 = vor.u32 %v2774, %v2775
    %v2777 = vshll.u32 2475754826, %v2771
    %v2778 = vshrl.u32 2131351028, %v2772
    %v2779 = vor.u32 %v2777, %v2778
    %v2780 = vshll.u32 2131351028, %v2771
    %v2781 = vshrl.u32 2102212464, %v2772
    %v2782 = vor.u32 %v2780, %v2781
    %v2783 = vshll.u32 2102212464, %v2771
    %v2784 = vshrl.u32 920167782, %v2772
    %v2785 = vor.u32 %v2783, %v2784
    %v2786 = vshll.u32 920167782, %v2771
    %v2787 = vshrl.u32 1326507024, %v2772
    %v2788 = vor.u32 %v2786, %v2787
    %vm2789 = vcmp.lt.s32.totalorder %v2770, 1
    %vm2790 = vcmp.lt.s32.totalorder %v2770, 2
    %vm2791 = vcmp.lt.s32.totalorder %v2770, 3
    %vm2792 = vcmp.lt.s32.totalorder %v2770, 4
    %v2793 = vsel %vm2789, %v2773, %v2776
    %v2794 = vsel %vm2792, %v2782, 2102212464
    %v2795 = vsel %vm2791, %v2779, %v2794
    %v2796 = vsel %vm2790, %v2793, %v2795
    %v2797 = vsel %vm2789, %v2776, %v2779
    %v2798 = vsel %vm2792, %v2785, 920167782
    %v2799 = vsel %vm2791, %v2782, %v2798
    %v2800 = vsel %vm2790, %v2797, %v2799
    %v2801 = vsel %vm2789, %v2779, %v2782
    %v2802 = vsel %vm2792, %v2788, 1326507024
    %v2803 = vsel %vm2791, %v2785, %v2802
    %v2804 = vsel %vm2790, %v2801, %v2803
    %v2805 = vshll.u32 %v2765, 8
    %v2806 = vand.u32 %v2805, 65535
    %v2807 = vshrl.u32 %v2805, 16
    %v2808 = vand.u32 %v2804, 65535
    %v2809 = vshrl.u32 %v2804, 16
    %v2810 = vmul.u32 %v2806, %v2808
    %v2811 = vmul.u32 %v2806, %v2809
    %v2812 = vmul.u32 %v2807, %v2808
    %v2813 = vmul.u32 %v2807, %v2809
    %v2814 = vshll.u32 %v2811, 16
    %v2815 = vshrl.u32 %v2811, 16
    %v2816 = vshll.u32 %v2812, 16
    %v2817 = vshrl.u32 %v2812, 16
    %vm2818 = vc.u32 %v2810, %v2814
    %v2819 = vsel %vm2818, 1, 0
    %v2820 = vadd.s32 %v2810, %v2814
    %v2821 = vadd.s32 %v2813, %v2819
    %vm2822 = vc.u32 %v2820, %v2816
    %v2823 = vsel %vm2822, 1, 0
    %v2824 = vadd.s32 %v2820, %v2816
    %v2825 = vadd.s32 %v2821, %v2823
    %v2826 = vadd.s32 %v2825, %v2815
    %v2827 = vadd.s32 %v2826, %v2817
    %v2828 = vand.u32 %v2805, 65535
    %v2829 = vshrl.u32 %v2805, 16
    %v2830 = vand.u32 %v2800, 65535
    %v2831 = vshrl.u32 %v2800, 16
    %v2832 = vmul.u32 %v2828, %v2830
    %v2833 = vmul.u32 %v2828, %v2831
    %v2834 = vmul.u32 %v2829, %v2830
    %v2835 = vmul.u32 %v2829, %v2831
    %v2836 = vshll.u32 %v2833, 16
    %v2837 = vshrl.u32 %v2833, 16
    %v2838 = vshll.u32 %v2834, 16
    %v2839 = vshrl.u32 %v2834, 16
    %vm2840 = vc.u32 %v2832, %v2836
    %v2841 = vsel %vm2840, 1, 0
    %v2842 = vadd.s32 %v2832, %v2836
    %v2843 = vadd.s32 %v2835, %v2841
    %vm2844 = vc.u32 %v2842, %v2838
    %v2845 = vsel %vm2844, 1, 0
    %v2846 = vadd.s32 %v2842, %v2838
    %v2847 = vadd.s32 %v2843, %v2845
    %v2848 = vadd.s32 %v2847, %v2837
    %v2849 = vadd.s32 %v2848, %v2839
    %v2850 = vmul.u32 %v2805, %v2796
    %v2851 = vadd.s32 %v2827, %v2846
    %vm2852 = vc.u32 %v2827, %v2846
    %v2853 = vadd.s32 %v2849, 1
    %v2854 = vsel %vm2852, %v2853, %v2849
    %v2855 = vadd.s32 %v2850, %v2854
    %v2856 = vadd.s32 %v2855, 536870912
    %v2857 = vshrl.u32 %v2856, 30
    %v2858 = vshll.u32 %v2857, 30
    %v2859 = vsub.s32 %v2855, %v2858
    %vm2860 = vcmp.lt.s32.totalorder %v2859, 0
    %v2861 = vsub.s32 0, %v2859
    %v2862 = vsel %vm2860, %v2861, %v2859
    %v2863 = vclz %v2862
    %v2864 = vsub.s32 %v2863, 2
    %vm2865 = vcmp.gt.s32.totalorder 0, %v2864
    %v2866 = vsel %vm2865, 0, %v2864
    %v2867 = vsub.s32 32, %v2866
    %v2868 = vshll.u32 %v2859, %v2866
    %v2869 = vshrl.u32 %v2851, %v2867
    %v2870 = vor.u32 %v2868, %v2869
    %v2871 = vsub.s32 4294967266, %v2866
    %v2872 = vadd.s32 %v2871, 127
    %v2873 = vshll.u32 %v2872, 23
    %v2874 = vor.u32 4788187, %v2873
    %v2875 = vand.u32 2147483647, %v2874
    %v2877 = vcvt.s32.f32 %v2870
    %v2878 = vmul.f32 %v2877, %v2875
    %v2879 = vxor.u32 %v2878, 2147483648
    %v2880 = vsel %vm2759, %v2879, %v2878
    %v2881 = vsub.s32 4, %v2857
    %v2882 = vsel %vm2759, %v2881, %v2857
    %v2883 = vsel %vm2758, %v415, %v2880
    %v2884 = vsel %vm2758, 0, %v2882
    %v2885 = vmul.f32 %v2883, %v2883
    %v2886 = vmul.f32 %v2885, -0.001358992
    %v2887 = vadd.f32 %v2886, 0.041655596
    %v2888 = vmul.f32 %v2885, %v2887
    %v2889 = vadd.f32 %v2888, -0.4999988
    %v2890 = vmul.f32 %v2885, %v2889
    %v2891 = vadd.f32 1.0, %v2890
    %v2892 = vmul.f32 %v2883, %v2883
    %v2893 = vmul.f32 %v2892, -0.00019511016
    %v2894 = vadd.f32 %v2893, 0.008332121
    %v2895 = vmul.f32 %v2892, %v2894
    %v2896 = vadd.f32 %v2895, -0.16666654
    %v2897 = vmul.f32 %v2892, %v2896
    %v2898 = vadd.f32 %v2897, 1.0
    %v2899 = vmul.f32 %v2898, %v2883
    %vm2900 = vweird.f32 %v415
    %v2901 = vadd.s32 %v2884, 3
    %v2902 = vand.u32 %v2901, 3
    %vm2903 = vcmp.lt.s32.totalorder %v2902, 2
    %vm2904 = vcmp.eq.s32.totalorder %v2902, 0
    %v2905 = vxor.u32 %v2899, 2147483648
    %v2906 = vsel %vm2904, %v2891, %v2905
    %vm2907 = vcmp.eq.s32.totalorder %v2902, 2
    %v2908 = vxor.u32 %v2891, 2147483648
    %v2909 = vsel %vm2907, %v2908, %v2899
    %v2910 = vsel %vm2903, %v2906, %v2909
    %v2911 = vsel %vm2900, nan, %v2910
    %v2912 = vand.u32 2147483647, %v416
    %vm2913 = vcmp.le.f32.partialorder %v2912, 0.7853982
    %vm2914 = vcmp.lt.s32.totalorder %v416, 0
    %v2915 = vand.u32 %v416, 2139095040
    %v2916 = vshrl.u32 %v2915, 23
    %v2917 = vsub.s32 %v2916, 127
    %v2918 = vand.u32 2147483647, %v416
    %v2919 = vand.u32 %v2918, 8388607
    %v2920 = vor.u32 %v2919, 8388608
    %v2921 = vsub.s32 0, %v2920
    %v2922 = vadd.s32 %v2917, 1
    %vm2923 = vcmp.gt.s32.totalorder %v2922, 0
    %v2924 = vsel %vm2923, %v2922, 0
    %v2925 = vshrl.u32 %v2924, 5
    %v2926 = vand.u32 %v2924, 31
    %v2927 = vsub.s32 32, %v2926
    %v2928 = vshrl.u32 683565275, %v2927
    %v2929 = vshll.u32 683565275, %v2926
    %v2930 = vshrl.u32 2475754826, %v2927
    %v2931 = vor.u32 %v2929, %v2930
    %v2932 = vshll.u32 2475754826, %v2926
    %v2933 = vshrl.u32 2131351028, %v2927
    %v2934 = vor.u32 %v2932, %v2933
    %v2935 = vshll.u32 2131351028, %v2926
    %v2936 = vshrl.u32 2102212464, %v2927
    %v2937 = vor.u32 %v2935, %v2936
    %v2938 = vshll.u32 2102212464, %v2926
    %v2939 = vshrl.u32 920167782, %v2927
    %v2940 = vor.u32 %v2938, %v2939
    %v2941 = vshll.u32 920167782, %v2926
    %v2942 = vshrl.u32 1326507024, %v2927
    %v2943 = vor.u32 %v2941, %v2942
    %vm2944 = vcmp.lt.s32.totalorder %v2925, 1
    %vm2945 = vcmp.lt.s32.totalorder %v2925, 2
    %vm2946 = vcmp.lt.s32.totalorder %v2925, 3
    %vm2947 = vcmp.lt.s32.totalorder %v2925, 4
    %v2948 = vsel %vm2944, %v2928, %v2931
    %v2949 = vsel %vm2947, %v2937, 2102212464
    %v2950 = vsel %vm2946, %v2934, %v2949
    %v2951 = vsel %vm2945, %v2948, %v2950
    %v2952 = vsel %vm2944, %v2931, %v2934
    %v2953 = vsel %vm2947, %v2940, 920167782
    %v2954 = vsel %vm2946, %v2937, %v2953
    %v2955 = vsel %vm2945, %v2952, %v2954
    %v2956 = vsel %vm2944, %v2934, %v2937
    %v2957 = vsel %vm2947, %v2943, 1326507024
    %v2958 = vsel %vm2946, %v2940, %v2957
    %v2959 = vsel %vm2945, %v2956, %v2958
    %v2960 = vshll.u32 %v2920, 8
    %v2961 = vand.u32 %v2960, 65535
    %v2962 = vshrl.u32 %v2960, 16
    %v2963 = vand.u32 %v2959, 65535
    %v2964 = vshrl.u32 %v2959, 16
    %v2965 = vmul.u32 %v2961, %v2963
    %v2966 = vmul.u32 %v2961, %v2964
    %v2967 = vmul.u32 %v2962, %v2963
    %v2968 = vmul.u32 %v2962, %v2964
    %v2969 = vshll.u32 %v2966, 16
    %v2970 = vshrl.u32 %v2966, 16
    %v2971 = vshll.u32 %v2967, 16
    %v2972 = vshrl.u32 %v2967, 16
    %vm2973 = vc.u32 %v2965, %v2969
    %v2974 = vsel %vm2973, 1, 0
    %v2975 = vadd.s32 %v2965, %v2969
    %v2976 = vadd.s32 %v2968, %v2974
    %vm2977 = vc.u32 %v2975, %v2971
    %v2978 = vsel %vm2977, 1, 0
    %v2979 = vadd.s32 %v2975, %v2971
    %v2980 = vadd.s32 %v2976, %v2978
    %v2981 = vadd.s32 %v2980, %v2970
    %v2982 = vadd.s32 %v2981, %v2972
    %v2983 = vand.u32 %v2960, 65535
    %v2984 = vshrl.u32 %v2960, 16
    %v2985 = vand.u32 %v2955, 65535
    %v2986 = vshrl.u32 %v2955, 16
    %v2987 = vmul.u32 %v2983, %v2985
    %v2988 = vmul.u32 %v2983, %v2986
    %v2989 = vmul.u32 %v2984, %v2985
    %v2990 = vmul.u32 %v2984, %v2986
    %v2991 = vshll.u32 %v2988, 16
    %v2992 = vshrl.u32 %v2988, 16
    %v2993 = vshll.u32 %v2989, 16
    %v2994 = vshrl.u32 %v2989, 16
    %vm2995 = vc.u32 %v2987, %v2991
    %v2996 = vsel %vm2995, 1, 0
    %v2997 = vadd.s32 %v2987, %v2991
    %v2998 = vadd.s32 %v2990, %v2996
    %vm2999 = vc.u32 %v2997, %v2993
    %v3000 = vsel %vm2999, 1, 0
    %v3001 = vadd.s32 %v2997, %v2993
    %v3002 = vadd.s32 %v2998, %v3000
    %v3003 = vadd.s32 %v3002, %v2992
    %v3004 = vadd.s32 %v3003, %v2994
    %v3005 = vmul.u32 %v2960, %v2951
    %v3006 = vadd.s32 %v2982, %v3001
    %vm3007 = vc.u32 %v2982, %v3001
    %v3008 = vadd.s32 %v3004, 1
    %v3009 = vsel %vm3007, %v3008, %v3004
    %v3010 = vadd.s32 %v3005, %v3009
    %v3011 = vadd.s32 %v3010, 536870912
    %v3012 = vshrl.u32 %v3011, 30
    %v3013 = vshll.u32 %v3012, 30
    %v3014 = vsub.s32 %v3010, %v3013
    %vm3015 = vcmp.lt.s32.totalorder %v3014, 0
    %v3016 = vsub.s32 0, %v3014
    %v3017 = vsel %vm3015, %v3016, %v3014
    %v3018 = vclz %v3017
    %v3019 = vsub.s32 %v3018, 2
    %vm3020 = vcmp.gt.s32.totalorder 0, %v3019
    %v3021 = vsel %vm3020, 0, %v3019
    %v3022 = vsub.s32 32, %v3021
    %v3023 = vshll.u32 %v3014, %v3021
    %v3024 = vshrl.u32 %v3006, %v3022
    %v3025 = vor.u32 %v3023, %v3024
    %v3026 = vsub.s32 4294967266, %v3021
    %v3027 = vadd.s32 %v3026, 127
    %v3028 = vshll.u32 %v3027, 23
    %v3029 = vor.u32 4788187, %v3028
    %v3030 = vand.u32 2147483647, %v3029
    %v3032 = vcvt.s32.f32 %v3025
    %v3033 = vmul.f32 %v3032, %v3030
    %v3034 = vxor.u32 %v3033, 2147483648
    %v3035 = vsel %vm2914, %v3034, %v3033
    %v3036 = vsub.s32 4, %v3012
    %v3037 = vsel %vm2914, %v3036, %v3012
    %v3038 = vsel %vm2913, %v416, %v3035
    %v3039 = vsel %vm2913, 0, %v3037
    %v3040 = vmul.f32 %v3038, %v3038
    %v3041 = vmul.f32 %v3040, -0.001358992
    %v3042 = vadd.f32 %v3041, 0.041655596
    %v3043 = vmul.f32 %v3040, %v3042
    %v3044 = vadd.f32 %v3043, -0.4999988
    %v3045 = vmul.f32 %v3040, %v3044
    %v3046 = vadd.f32 1.0, %v3045
    %v3047 = vmul.f32 %v3038, %v3038
    %v3048 = vmul.f32 %v3047, -0.00019511016
    %v3049 = vadd.f32 %v3048, 0.008332121
    %v3050 = vmul.f32 %v3047, %v3049
    %v3051 = vadd.f32 %v3050, -0.16666654
    %v3052 = vmul.f32 %v3047, %v3051
    %v3053 = vadd.f32 %v3052, 1.0
    %v3054 = vmul.f32 %v3053, %v3038
    %vm3055 = vweird.f32 %v416
    %v3056 = vadd.s32 %v3039, 3
    %v3057 = vand.u32 %v3056, 3
    %vm3058 = vcmp.lt.s32.totalorder %v3057, 2
    %vm3059 = vcmp.eq.s32.totalorder %v3057, 0
    %v3060 = vxor.u32 %v3054, 2147483648
    %v3061 = vsel %vm3059, %v3046, %v3060
    %vm3062 = vcmp.eq.s32.totalorder %v3057, 2
    %v3063 = vxor.u32 %v3046, 2147483648
    %v3064 = vsel %vm3062, %v3063, %v3054
    %v3065 = vsel %vm3058, %v3061, %v3064
    %v3066 = vsel %vm3055, nan, %v3065
    %v3067 = vand.u32 2147483647, %v417
    %vm3068 = vcmp.le.f32.partialorder %v3067, 0.7853982
    %vm3069 = vcmp.lt.s32.totalorder %v417, 0
    %v3070 = vand.u32 %v417, 2139095040
    %v3071 = vshrl.u32 %v3070, 23
    %v3072 = vsub.s32 %v3071, 127
    %v3073 = vand.u32 2147483647, %v417
    %v3074 = vand.u32 %v3073, 8388607
    %v3075 = vor.u32 %v3074, 8388608
    %v3076 = vsub.s32 0, %v3075
    %v3077 = vadd.s32 %v3072, 1
    %vm3078 = vcmp.gt.s32.totalorder %v3077, 0
    %v3079 = vsel %vm3078, %v3077, 0
    %v3080 = vshrl.u32 %v3079, 5
    %v3081 = vand.u32 %v3079, 31
    %v3082 = vsub.s32 32, %v3081
    %v3083 = vshrl.u32 683565275, %v3082
    %v3084 = vshll.u32 683565275, %v3081
    %v3085 = vshrl.u32 2475754826, %v3082
    %v3086 = vor.u32 %v3084, %v3085
    %v3087 = vshll.u32 2475754826, %v3081
    %v3088 = vshrl.u32 2131351028, %v3082
    %v3089 = vor.u32 %v3087, %v3088
    %v3090 = vshll.u32 2131351028, %v3081
    %v3091 = vshrl.u32 2102212464, %v3082
    %v3092 = vor.u32 %v3090, %v3091
    %v3093 = vshll.u32 2102212464, %v3081
    %v3094 = vshrl.u32 920167782, %v3082
    %v3095 = vor.u32 %v3093, %v3094
    %v3096 = vshll.u32 920167782, %v3081
    %v3097 = vshrl.u32 1326507024, %v3082
    %v3098 = vor.u32 %v3096, %v3097
    %vm3099 = vcmp.lt.s32.totalorder %v3080, 1
    %vm3100 = vcmp.lt.s32.totalorder %v3080, 2
    %vm3101 = vcmp.lt.s32.totalorder %v3080, 3
    %vm3102 = vcmp.lt.s32.totalorder %v3080, 4
    %v3103 = vsel %vm3099, %v3083, %v3086
    %v3104 = vsel %vm3102, %v3092, 2102212464
    %v3105 = vsel %vm3101, %v3089, %v3104
    %v3106 = vsel %vm3100, %v3103, %v3105
    %v3107 = vsel %vm3099, %v3086, %v3089
    %v3108 = vsel %vm3102, %v3095, 920167782
    %v3109 = vsel %vm3101, %v3092, %v3108
    %v3110 = vsel %vm3100, %v3107, %v3109
    %v3111 = vsel %vm3099, %v3089, %v3092
    %v3112 = vsel %vm3102, %v3098, 1326507024
    %v3113 = vsel %vm3101, %v3095, %v3112
    %v3114 = vsel %vm3100, %v3111, %v3113
    %v3115 = vshll.u32 %v3075, 8
    %v3116 = vand.u32 %v3115, 65535
    %v3117 = vshrl.u32 %v3115, 16
    %v3118 = vand.u32 %v3114, 65535
    %v3119 = vshrl.u32 %v3114, 16
    %v3120 = vmul.u32 %v3116, %v3118
    %v3121 = vmul.u32 %v3116, %v3119
    %v3122 = vmul.u32 %v3117, %v3118
    %v3123 = vmul.u32 %v3117, %v3119
    %v3124 = vshll.u32 %v3121, 16
    %v3125 = vshrl.u32 %v3121, 16
    %v3126 = vshll.u32 %v3122, 16
    %v3127 = vshrl.u32 %v3122, 16
    %vm3128 = vc.u32 %v3120, %v3124
    %v3129 = vsel %vm3128, 1, 0
    %v3130 = vadd.s32 %v3120, %v3124
    %v3131 = vadd.s32 %v3123, %v3129
    %vm3132 = vc.u32 %v3130, %v3126
    %v3133 = vsel %vm3132, 1, 0
    %v3134 = vadd.s32 %v3130, %v3126
    %v3135 = vadd.s32 %v3131, %v3133
    %v3136 = vadd.s32 %v3135, %v3125
    %v3137 = vadd.s32 %v3136, %v3127
    %v3138 = vand.u32 %v3115, 65535
    %v3139 = vshrl.u32 %v3115, 16
    %v3140 = vand.u32 %v3110, 65535
    %v3141 = vshrl.u32 %v3110, 16
    %v3142 = vmul.u32 %v3138, %v3140
    %v3143 = vmul.u32 %v3138, %v3141
    %v3144 = vmul.u32 %v3139, %v3140
    %v3145 = vmul.u32 %v3139, %v3141
    %v3146 = vshll.u32 %v3143, 16
    %v3147 = vshrl.u32 %v3143, 16
    %v3148 = vshll.u32 %v3144, 16
    %v3149 = vshrl.u32 %v3144, 16
    %vm3150 = vc.u32 %v3142, %v3146
    %v3151 = vsel %vm3150, 1, 0
    %v3152 = vadd.s32 %v3142, %v3146
    %v3153 = vadd.s32 %v3145, %v3151
    %vm3154 = vc.u32 %v3152, %v3148
    %v3155 = vsel %vm3154, 1, 0
    %v3156 = vadd.s32 %v3152, %v3148
    %v3157 = vadd.s32 %v3153, %v3155
    %v3158 = vadd.s32 %v3157, %v3147
    %v3159 = vadd.s32 %v3158, %v3149
    %v3160 = vmul.u32 %v3115, %v3106
    %v3161 = vadd.s32 %v3137, %v3156
    %vm3162 = vc.u32 %v3137, %v3156
    %v3163 = vadd.s32 %v3159, 1
    %v3164 = vsel %vm3162, %v3163, %v3159
    %v3165 = vadd.s32 %v3160, %v3164
    %v3166 = vadd.s32 %v3165, 536870912
    %v3167 = vshrl.u32 %v3166, 30
    %v3168 = vshll.u32 %v3167, 30
    %v3169 = vsub.s32 %v3165, %v3168
    %vm3170 = vcmp.lt.s32.totalorder %v3169, 0
    %v3171 = vsub.s32 0, %v3169
    %v3172 = vsel %vm3170, %v3171, %v3169
    %v3173 = vclz %v3172
    %v3174 = vsub.s32 %v3173, 2
    %vm3175 = vcmp.gt.s32.totalorder 0, %v3174
    %v3176 = vsel %vm3175, 0, %v3174
    %v3177 = vsub.s32 32, %v3176
    %v3178 = vshll.u32 %v3169, %v3176
    %v3179 = vshrl.u32 %v3161, %v3177
    %v3180 = vor.u32 %v3178, %v3179
    %v3181 = vsub.s32 4294967266, %v3176
    %v3182 = vadd.s32 %v3181, 127
    %v3183 = vshll.u32 %v3182, 23
    %v3184 = vor.u32 4788187, %v3183
    %v3185 = vand.u32 2147483647, %v3184
    %v3187 = vcvt.s32.f32 %v3180
    %v3188 = vmul.f32 %v3187, %v3185
    %v3189 = vxor.u32 %v3188, 2147483648
    %v3190 = vsel %vm3069, %v3189, %v3188
    %v3191 = vsub.s32 4, %v3167
    %v3192 = vsel %vm3069, %v3191, %v3167
    %v3193 = vsel %vm3068, %v417, %v3190
    %v3194 = vsel %vm3068, 0, %v3192
    %v3195 = vmul.f32 %v3193, %v3193
    %v3196 = vmul.f32 %v3195, -0.001358992
    %v3197 = vadd.f32 %v3196, 0.041655596
    %v3198 = vmul.f32 %v3195, %v3197
    %v3199 = vadd.f32 %v3198, -0.4999988
    %v3200 = vmul.f32 %v3195, %v3199
    %v3201 = vadd.f32 1.0, %v3200
    %v3202 = vmul.f32 %v3193, %v3193
    %v3203 = vmul.f32 %v3202, -0.00019511016
    %v3204 = vadd.f32 %v3203, 0.008332121
    %v3205 = vmul.f32 %v3202, %v3204
    %v3206 = vadd.f32 %v3205, -0.16666654
    %v3207 = vmul.f32 %v3202, %v3206
    %v3208 = vadd.f32 %v3207, 1.0
    %v3209 = vmul.f32 %v3208, %v3193
    %vm3210 = vweird.f32 %v417
    %v3211 = vadd.s32 %v3194, 3
    %v3212 = vand.u32 %v3211, 3
    %vm3213 = vcmp.lt.s32.totalorder %v3212, 2
    %vm3214 = vcmp.eq.s32.totalorder %v3212, 0
    %v3215 = vxor.u32 %v3209, 2147483648
    %v3216 = vsel %vm3214, %v3201, %v3215
    %vm3217 = vcmp.eq.s32.totalorder %v3212, 2
    %v3218 = vxor.u32 %v3201, 2147483648
    %v3219 = vsel %vm3217, %v3218, %v3209
    %v3220 = vsel %vm3213, %v3216, %v3219
    %v3221 = vsel %vm3210, nan, %v3220
    %v3222 = vand.u32 2147483647, %v418
    %vm3223 = vcmp.le.f32.partialorder %v3222, 0.7853982
    %vm3224 = vcmp.lt.s32.totalorder %v418, 0
    %v3225 = vand.u32 %v418, 2139095040
    %v3226 = vshrl.u32 %v3225, 23
    %v3227 = vsub.s32 %v3226, 127
    %v3228 = vand.u32 2147483647, %v418
    %v3229 = vand.u32 %v3228, 8388607
    %v3230 = vor.u32 %v3229, 8388608
    %v3231 = vsub.s32 0, %v3230
    %v3232 = vadd.s32 %v3227, 1
    %vm3233 = vcmp.gt.s32.totalorder %v3232, 0
    %v3234 = vsel %vm3233, %v3232, 0
    %v3235 = vshrl.u32 %v3234, 5
    %v3236 = vand.u32 %v3234, 31
    %v3237 = vsub.s32 32, %v3236
    %v3238 = vshrl.u32 683565275, %v3237
    %v3239 = vshll.u32 683565275, %v3236
    %v3240 = vshrl.u32 2475754826, %v3237
    %v3241 = vor.u32 %v3239, %v3240
    %v3242 = vshll.u32 2475754826, %v3236
    %v3243 = vshrl.u32 2131351028, %v3237
    %v3244 = vor.u32 %v3242, %v3243
    %v3245 = vshll.u32 2131351028, %v3236
    %v3246 = vshrl.u32 2102212464, %v3237
    %v3247 = vor.u32 %v3245, %v3246
    %v3248 = vshll.u32 2102212464, %v3236
    %v3249 = vshrl.u32 920167782, %v3237
    %v3250 = vor.u32 %v3248, %v3249
    %v3251 = vshll.u32 920167782, %v3236
    %v3252 = vshrl.u32 1326507024, %v3237
    %v3253 = vor.u32 %v3251, %v3252
    %vm3254 = vcmp.lt.s32.totalorder %v3235, 1
    %vm3255 = vcmp.lt.s32.totalorder %v3235, 2
    %vm3256 = vcmp.lt.s32.totalorder %v3235, 3
    %vm3257 = vcmp.lt.s32.totalorder %v3235, 4
    %v3258 = vsel %vm3254, %v3238, %v3241
    %v3259 = vsel %vm3257, %v3247, 2102212464
    %v3260 = vsel %vm3256, %v3244, %v3259
    %v3261 = vsel %vm3255, %v3258, %v3260
    %v3262 = vsel %vm3254, %v3241, %v3244
    %v3263 = vsel %vm3257, %v3250, 920167782
    %v3264 = vsel %vm3256, %v3247, %v3263
    %v3265 = vsel %vm3255, %v3262, %v3264
    %v3266 = vsel %vm3254, %v3244, %v3247
    %v3267 = vsel %vm3257, %v3253, 1326507024
    %v3268 = vsel %vm3256, %v3250, %v3267
    %v3269 = vsel %vm3255, %v3266, %v3268
    %v3270 = vshll.u32 %v3230, 8
    %v3271 = vand.u32 %v3270, 65535
    %v3272 = vshrl.u32 %v3270, 16
    %v3273 = vand.u32 %v3269, 65535
    %v3274 = vshrl.u32 %v3269, 16
    %v3275 = vmul.u32 %v3271, %v3273
    %v3276 = vmul.u32 %v3271, %v3274
    %v3277 = vmul.u32 %v3272, %v3273
    %v3278 = vmul.u32 %v3272, %v3274
    %v3279 = vshll.u32 %v3276, 16
    %v3280 = vshrl.u32 %v3276, 16
    %v3281 = vshll.u32 %v3277, 16
    %v3282 = vshrl.u32 %v3277, 16
    %vm3283 = vc.u32 %v3275, %v3279
    %v3284 = vsel %vm3283, 1, 0
    %v3285 = vadd.s32 %v3275, %v3279
    %v3286 = vadd.s32 %v3278, %v3284
    %vm3287 = vc.u32 %v3285, %v3281
    %v3288 = vsel %vm3287, 1, 0
    %v3289 = vadd.s32 %v3285, %v3281
    %v3290 = vadd.s32 %v3286, %v3288
    %v3291 = vadd.s32 %v3290, %v3280
    %v3292 = vadd.s32 %v3291, %v3282
    %v3293 = vand.u32 %v3270, 65535
    %v3294 = vshrl.u32 %v3270, 16
    %v3295 = vand.u32 %v3265, 65535
    %v3296 = vshrl.u32 %v3265, 16
    %v3297 = vmul.u32 %v3293, %v3295
    %v3298 = vmul.u32 %v3293, %v3296
    %v3299 = vmul.u32 %v3294, %v3295
    %v3300 = vmul.u32 %v3294, %v3296
    %v3301 = vshll.u32 %v3298, 16
    %v3302 = vshrl.u32 %v3298, 16
    %v3303 = vshll.u32 %v3299, 16
    %v3304 = vshrl.u32 %v3299, 16
    %vm3305 = vc.u32 %v3297, %v3301
    %v3306 = vsel %vm3305, 1, 0
    %v3307 = vadd.s32 %v3297, %v3301
    %v3308 = vadd.s32 %v3300, %v3306
    %vm3309 = vc.u32 %v3307, %v3303
    %v3310 = vsel %vm3309, 1, 0
    %v3311 = vadd.s32 %v3307, %v3303
    %v3312 = vadd.s32 %v3308, %v3310
    %v3313 = vadd.s32 %v3312, %v3302
    %v3314 = vadd.s32 %v3313, %v3304
    %v3315 = vmul.u32 %v3270, %v3261
    %v3316 = vadd.s32 %v3292, %v3311
    %vm3317 = vc.u32 %v3292, %v3311
    %v3318 = vadd.s32 %v3314, 1
    %v3319 = vsel %vm3317, %v3318, %v3314
    %v3320 = vadd.s32 %v3315, %v3319
    %v3321 = vadd.s32 %v3320, 536870912
    %v3322 = vshrl.u32 %v3321, 30
    %v3323 = vshll.u32 %v3322, 30
    %v3324 = vsub.s32 %v3320, %v3323
    %vm3325 = vcmp.lt.s32.totalorder %v3324, 0
    %v3326 = vsub.s32 0, %v3324
    %v3327 = vsel %vm3325, %v3326, %v3324
    %v3328 = vclz %v3327
    %v3329 = vsub.s32 %v3328, 2
    %vm3330 = vcmp.gt.s32.totalorder 0, %v3329
    %v3331 = vsel %vm3330, 0, %v3329
    %v3332 = vsub.s32 32, %v3331
    %v3333 = vshll.u32 %v3324, %v3331
    %v3334 = vshrl.u32 %v3316, %v3332
    %v3335 = vor.u32 %v3333, %v3334
    %v3336 = vsub.s32 4294967266, %v3331
    %v3337 = vadd.s32 %v3336, 127
    %v3338 = vshll.u32 %v3337, 23
    %v3339 = vor.u32 4788187, %v3338
    %v3340 = vand.u32 2147483647, %v3339
    %v3342 = vcvt.s32.f32 %v3335
    %v3343 = vmul.f32 %v3342, %v3340
    %v3344 = vxor.u32 %v3343, 2147483648
    %v3345 = vsel %vm3224, %v3344, %v3343
    %v3346 = vsub.s32 4, %v3322
    %v3347 = vsel %vm3224, %v3346, %v3322
    %v3348 = vsel %vm3223, %v418, %v3345
    %v3349 = vsel %vm3223, 0, %v3347
    %v3350 = vmul.f32 %v3348, %v3348
    %v3351 = vmul.f32 %v3350, -0.001358992
    %v3352 = vadd.f32 %v3351, 0.041655596
    %v3353 = vmul.f32 %v3350, %v3352
    %v3354 = vadd.f32 %v3353, -0.4999988
    %v3355 = vmul.f32 %v3350, %v3354
    %v3356 = vadd.f32 1.0, %v3355
    %v3357 = vmul.f32 %v3348, %v3348
    %v3358 = vmul.f32 %v3357, -0.00019511016
    %v3359 = vadd.f32 %v3358, 0.008332121
    %v3360 = vmul.f32 %v3357, %v3359
    %v3361 = vadd.f32 %v3360, -0.16666654
    %v3362 = vmul.f32 %v3357, %v3361
    %v3363 = vadd.f32 %v3362, 1.0
    %v3364 = vmul.f32 %v3363, %v3348
    %vm3365 = vweird.f32 %v418
    %v3366 = vadd.s32 %v3349, 3
    %v3367 = vand.u32 %v3366, 3
    %vm3368 = vcmp.lt.s32.totalorder %v3367, 2
    %vm3369 = vcmp.eq.s32.totalorder %v3367, 0
    %v3370 = vxor.u32 %v3364, 2147483648
    %v3371 = vsel %vm3369, %v3356, %v3370
    %vm3372 = vcmp.eq.s32.totalorder %v3367, 2
    %v3373 = vxor.u32 %v3356, 2147483648
    %v3374 = vsel %vm3372, %v3373, %v3364
    %v3375 = vsel %vm3368, %v3371, %v3374
    %v3376 = vsel %vm3365, nan, %v3375
    %v3377 = vand.u32 2147483647, %v419
    %vm3378 = vcmp.le.f32.partialorder %v3377, 0.7853982
    %vm3379 = vcmp.lt.s32.totalorder %v419, 0
    %v3380 = vand.u32 %v419, 2139095040
    %v3381 = vshrl.u32 %v3380, 23
    %v3382 = vsub.s32 %v3381, 127
    %v3383 = vand.u32 2147483647, %v419
    %v3384 = vand.u32 %v3383, 8388607
    %v3385 = vor.u32 %v3384, 8388608
    %v3386 = vsub.s32 0, %v3385
    %v3387 = vadd.s32 %v3382, 1
    %vm3388 = vcmp.gt.s32.totalorder %v3387, 0
    %v3389 = vsel %vm3388, %v3387, 0
    %v3390 = vshrl.u32 %v3389, 5
    %v3391 = vand.u32 %v3389, 31
    %v3392 = vsub.s32 32, %v3391
    %v3393 = vshrl.u32 683565275, %v3392
    %v3394 = vshll.u32 683565275, %v3391
    %v3395 = vshrl.u32 2475754826, %v3392
    %v3396 = vor.u32 %v3394, %v3395
    %v3397 = vshll.u32 2475754826, %v3391
    %v3398 = vshrl.u32 2131351028, %v3392
    %v3399 = vor.u32 %v3397, %v3398
    %v3400 = vshll.u32 2131351028, %v3391
    %v3401 = vshrl.u32 2102212464, %v3392
    %v3402 = vor.u32 %v3400, %v3401
    %v3403 = vshll.u32 2102212464, %v3391
    %v3404 = vshrl.u32 920167782, %v3392
    %v3405 = vor.u32 %v3403, %v3404
    %v3406 = vshll.u32 920167782, %v3391
    %v3407 = vshrl.u32 1326507024, %v3392
    %v3408 = vor.u32 %v3406, %v3407
    %vm3409 = vcmp.lt.s32.totalorder %v3390, 1
    %vm3410 = vcmp.lt.s32.totalorder %v3390, 2
    %vm3411 = vcmp.lt.s32.totalorder %v3390, 3
    %vm3412 = vcmp.lt.s32.totalorder %v3390, 4
    %v3413 = vsel %vm3409, %v3393, %v3396
    %v3414 = vsel %vm3412, %v3402, 2102212464
    %v3415 = vsel %vm3411, %v3399, %v3414
    %v3416 = vsel %vm3410, %v3413, %v3415
    %v3417 = vsel %vm3409, %v3396, %v3399
    %v3418 = vsel %vm3412, %v3405, 920167782
    %v3419 = vsel %vm3411, %v3402, %v3418
    %v3420 = vsel %vm3410, %v3417, %v3419
    %v3421 = vsel %vm3409, %v3399, %v3402
    %v3422 = vsel %vm3412, %v3408, 1326507024
    %v3423 = vsel %vm3411, %v3405, %v3422
    %v3424 = vsel %vm3410, %v3421, %v3423
    %v3425 = vshll.u32 %v3385, 8
    %v3426 = vand.u32 %v3425, 65535
    %v3427 = vshrl.u32 %v3425, 16
    %v3428 = vand.u32 %v3424, 65535
    %v3429 = vshrl.u32 %v3424, 16
    %v3430 = vmul.u32 %v3426, %v3428
    %v3431 = vmul.u32 %v3426, %v3429
    %v3432 = vmul.u32 %v3427, %v3428
    %v3433 = vmul.u32 %v3427, %v3429
    %v3434 = vshll.u32 %v3431, 16
    %v3435 = vshrl.u32 %v3431, 16
    %v3436 = vshll.u32 %v3432, 16
    %v3437 = vshrl.u32 %v3432, 16
    %vm3438 = vc.u32 %v3430, %v3434
    %v3439 = vsel %vm3438, 1, 0
    %v3440 = vadd.s32 %v3430, %v3434
    %v3441 = vadd.s32 %v3433, %v3439
    %vm3442 = vc.u32 %v3440, %v3436
    %v3443 = vsel %vm3442, 1, 0
    %v3444 = vadd.s32 %v3440, %v3436
    %v3445 = vadd.s32 %v3441, %v3443
    %v3446 = vadd.s32 %v3445, %v3435
    %v3447 = vadd.s32 %v3446, %v3437
    %v3448 = vand.u32 %v3425, 65535
    %v3449 = vshrl.u32 %v3425, 16
    %v3450 = vand.u32 %v3420, 65535
    %v3451 = vshrl.u32 %v3420, 16
    %v3452 = vmul.u32 %v3448, %v3450
    %v3453 = vmul.u32 %v3448, %v3451
    %v3454 = vmul.u32 %v3449, %v3450
    %v3455 = vmul.u32 %v3449, %v3451
    %v3456 = vshll.u32 %v3453, 16
    %v3457 = vshrl.u32 %v3453, 16
    %v3458 = vshll.u32 %v3454, 16
    %v3459 = vshrl.u32 %v3454, 16
    %vm3460 = vc.u32 %v3452, %v3456
    %v3461 = vsel %vm3460, 1, 0
    %v3462 = vadd.s32 %v3452, %v3456
    %v3463 = vadd.s32 %v3455, %v3461
    %vm3464 = vc.u32 %v3462, %v3458
    %v3465 = vsel %vm3464, 1, 0
    %v3466 = vadd.s32 %v3462, %v3458
    %v3467 = vadd.s32 %v3463, %v3465
    %v3468 = vadd.s32 %v3467, %v3457
    %v3469 = vadd.s32 %v3468, %v3459
    %v3470 = vmul.u32 %v3425, %v3416
    %v3471 = vadd.s32 %v3447, %v3466
    %vm3472 = vc.u32 %v3447, %v3466
    %v3473 = vadd.s32 %v3469, 1
    %v3474 = vsel %vm3472, %v3473, %v3469
    %v3475 = vadd.s32 %v3470, %v3474
    %v3476 = vadd.s32 %v3475, 536870912
    %v3477 = vshrl.u32 %v3476, 30
    %v3478 = vshll.u32 %v3477, 30
    %v3479 = vsub.s32 %v3475, %v3478
    %vm3480 = vcmp.lt.s32.totalorder %v3479, 0
    %v3481 = vsub.s32 0, %v3479
    %v3482 = vsel %vm3480, %v3481, %v3479
    %v3483 = vclz %v3482
    %v3484 = vsub.s32 %v3483, 2
    %vm3485 = vcmp.gt.s32.totalorder 0, %v3484
    %v3486 = vsel %vm3485, 0, %v3484
    %v3487 = vsub.s32 32, %v3486
    %v3488 = vshll.u32 %v3479, %v3486
    %v3489 = vshrl.u32 %v3471, %v3487
    %v3490 = vor.u32 %v3488, %v3489
    %v3491 = vsub.s32 4294967266, %v3486
    %v3492 = vadd.s32 %v3491, 127
    %v3493 = vshll.u32 %v3492, 23
    %v3494 = vor.u32 4788187, %v3493
    %v3495 = vand.u32 2147483647, %v3494
    %v3497 = vcvt.s32.f32 %v3490
    %v3498 = vmul.f32 %v3497, %v3495
    %v3499 = vxor.u32 %v3498, 2147483648
    %v3500 = vsel %vm3379, %v3499, %v3498
    %v3501 = vsub.s32 4, %v3477
    %v3502 = vsel %vm3379, %v3501, %v3477
    %v3503 = vsel %vm3378, %v419, %v3500
    %v3504 = vsel %vm3378, 0, %v3502
    %v3505 = vmul.f32 %v3503, %v3503
    %v3506 = vmul.f32 %v3505, -0.001358992
    %v3507 = vadd.f32 %v3506, 0.041655596
    %v3508 = vmul.f32 %v3505, %v3507
    %v3509 = vadd.f32 %v3508, -0.4999988
    %v3510 = vmul.f32 %v3505, %v3509
    %v3511 = vadd.f32 1.0, %v3510
    %v3512 = vmul.f32 %v3503, %v3503
    %v3513 = vmul.f32 %v3512, -0.00019511016
    %v3514 = vadd.f32 %v3513, 0.008332121
    %v3515 = vmul.f32 %v3512, %v3514
    %v3516 = vadd.f32 %v3515, -0.16666654
    %v3517 = vmul.f32 %v3512, %v3516
    %v3518 = vadd.f32 %v3517, 1.0
    %v3519 = vmul.f32 %v3518, %v3503
    %vm3520 = vweird.f32 %v419
    %v3521 = vadd.s32 %v3504, 3
    %v3522 = vand.u32 %v3521, 3
    %vm3523 = vcmp.lt.s32.totalorder %v3522, 2
    %vm3524 = vcmp.eq.s32.totalorder %v3522, 0
    %v3525 = vxor.u32 %v3519, 2147483648
    %v3526 = vsel %vm3524, %v3511, %v3525
    %vm3527 = vcmp.eq.s32.totalorder %v3522, 2
    %v3528 = vxor.u32 %v3511, 2147483648
    %v3529 = vsel %vm3527, %v3528, %v3519
    %v3530 = vsel %vm3523, %v3526, %v3529
    %v3531 = vsel %vm3520, nan, %v3530
    %v3532 = vand.u32 2147483647, %v420
    %vm3533 = vcmp.le.f32.partialorder %v3532, 0.7853982
    %vm3534 = vcmp.lt.s32.totalorder %v420, 0
    %v3535 = vand.u32 %v420, 2139095040
    %v3536 = vshrl.u32 %v3535, 23
    %v3537 = vsub.s32 %v3536, 127
    %v3538 = vand.u32 2147483647, %v420
    %v3539 = vand.u32 %v3538, 8388607
    %v3540 = vor.u32 %v3539, 8388608
    %v3541 = vsub.s32 0, %v3540
    %v3542 = vadd.s32 %v3537, 1
    %vm3543 = vcmp.gt.s32.totalorder %v3542, 0
    %v3544 = vsel %vm3543, %v3542, 0
    %v3545 = vshrl.u32 %v3544, 5
    %v3546 = vand.u32 %v3544, 31
    %v3547 = vsub.s32 32, %v3546
    %v3548 = vshrl.u32 683565275, %v3547
    %v3549 = vshll.u32 683565275, %v3546
    %v3550 = vshrl.u32 2475754826, %v3547
    %v3551 = vor.u32 %v3549, %v3550
    %v3552 = vshll.u32 2475754826, %v3546
    %v3553 = vshrl.u32 2131351028, %v3547
    %v3554 = vor.u32 %v3552, %v3553
    %v3555 = vshll.u32 2131351028, %v3546
    %v3556 = vshrl.u32 2102212464, %v3547
    %v3557 = vor.u32 %v3555, %v3556
    %v3558 = vshll.u32 2102212464, %v3546
    %v3559 = vshrl.u32 920167782, %v3547
    %v3560 = vor.u32 %v3558, %v3559
    %v3561 = vshll.u32 920167782, %v3546
    %v3562 = vshrl.u32 1326507024, %v3547
    %v3563 = vor.u32 %v3561, %v3562
    %vm3564 = vcmp.lt.s32.totalorder %v3545, 1
    %vm3565 = vcmp.lt.s32.totalorder %v3545, 2
    %vm3566 = vcmp.lt.s32.totalorder %v3545, 3
    %vm3567 = vcmp.lt.s32.totalorder %v3545, 4
    %v3568 = vsel %vm3564, %v3548, %v3551
    %v3569 = vsel %vm3567, %v3557, 2102212464
    %v3570 = vsel %vm3566, %v3554, %v3569
    %v3571 = vsel %vm3565, %v3568, %v3570
    %v3572 = vsel %vm3564, %v3551, %v3554
    %v3573 = vsel %vm3567, %v3560, 920167782
    %v3574 = vsel %vm3566, %v3557, %v3573
    %v3575 = vsel %vm3565, %v3572, %v3574
    %v3576 = vsel %vm3564, %v3554, %v3557
    %v3577 = vsel %vm3567, %v3563, 1326507024
    %v3578 = vsel %vm3566, %v3560, %v3577
    %v3579 = vsel %vm3565, %v3576, %v3578
    %v3580 = vshll.u32 %v3540, 8
    %v3581 = vand.u32 %v3580, 65535
    %v3582 = vshrl.u32 %v3580, 16
    %v3583 = vand.u32 %v3579, 65535
    %v3584 = vshrl.u32 %v3579, 16
    %v3585 = vmul.u32 %v3581, %v3583
    %v3586 = vmul.u32 %v3581, %v3584
    %v3587 = vmul.u32 %v3582, %v3583
    %v3588 = vmul.u32 %v3582, %v3584
    %v3589 = vshll.u32 %v3586, 16
    %v3590 = vshrl.u32 %v3586, 16
    %v3591 = vshll.u32 %v3587, 16
    %v3592 = vshrl.u32 %v3587, 16
    %vm3593 = vc.u32 %v3585, %v3589
    %v3594 = vsel %vm3593, 1, 0
    %v3595 = vadd.s32 %v3585, %v3589
    %v3596 = vadd.s32 %v3588, %v3594
    %vm3597 = vc.u32 %v3595, %v3591
    %v3598 = vsel %vm3597, 1, 0
    %v3599 = vadd.s32 %v3595, %v3591
    %v3600 = vadd.s32 %v3596, %v3598
    %v3601 = vadd.s32 %v3600, %v3590
    %v3602 = vadd.s32 %v3601, %v3592
    %v3603 = vand.u32 %v3580, 65535
    %v3604 = vshrl.u32 %v3580, 16
    %v3605 = vand.u32 %v3575, 65535
    %v3606 = vshrl.u32 %v3575, 16
    %v3607 = vmul.u32 %v3603, %v3605
    %v3608 = vmul.u32 %v3603, %v3606
    %v3609 = vmul.u32 %v3604, %v3605
    %v3610 = vmul.u32 %v3604, %v3606
    %v3611 = vshll.u32 %v3608, 16
    %v3612 = vshrl.u32 %v3608, 16
    %v3613 = vshll.u32 %v3609, 16
    %v3614 = vshrl.u32 %v3609, 16
    %vm3615 = vc.u32 %v3607, %v3611
    %v3616 = vsel %vm3615, 1, 0
    %v3617 = vadd.s32 %v3607, %v3611
    %v3618 = vadd.s32 %v3610, %v3616
    %vm3619 = vc.u32 %v3617, %v3613
    %v3620 = vsel %vm3619, 1, 0
    %v3621 = vadd.s32 %v3617, %v3613
    %v3622 = vadd.s32 %v3618, %v3620
    %v3623 = vadd.s32 %v3622, %v3612
    %v3624 = vadd.s32 %v3623, %v3614
    %v3625 = vmul.u32 %v3580, %v3571
    %v3626 = vadd.s32 %v3602, %v3621
    %vm3627 = vc.u32 %v3602, %v3621
    %v3628 = vadd.s32 %v3624, 1
    %v3629 = vsel %vm3627, %v3628, %v3624
    %v3630 = vadd.s32 %v3625, %v3629
    %v3631 = vadd.s32 %v3630, 536870912
    %v3632 = vshrl.u32 %v3631, 30
    %v3633 = vshll.u32 %v3632, 30
    %v3634 = vsub.s32 %v3630, %v3633
    %vm3635 = vcmp.lt.s32.totalorder %v3634, 0
    %v3636 = vsub.s32 0, %v3634
    %v3637 = vsel %vm3635, %v3636, %v3634
    %v3638 = vclz %v3637
    %v3639 = vsub.s32 %v3638, 2
    %vm3640 = vcmp.gt.s32.totalorder 0, %v3639
    %v3641 = vsel %vm3640, 0, %v3639
    %v3642 = vsub.s32 32, %v3641
    %v3643 = vshll.u32 %v3634, %v3641
    %v3644 = vshrl.u32 %v3626, %v3642
    %v3645 = vor.u32 %v3643, %v3644
    %v3646 = vsub.s32 4294967266, %v3641
    %v3647 = vadd.s32 %v3646, 127
    %v3648 = vshll.u32 %v3647, 23
    %v3649 = vor.u32 4788187, %v3648
    %v3650 = vand.u32 2147483647, %v3649
    %v3652 = vcvt.s32.f32 %v3645
    %v3653 = vmul.f32 %v3652, %v3650
    %v3654 = vxor.u32 %v3653, 2147483648
    %v3655 = vsel %vm3534, %v3654, %v3653
    %v3656 = vsub.s32 4, %v3632
    %v3657 = vsel %vm3534, %v3656, %v3632
    %v3658 = vsel %vm3533, %v420, %v3655
    %v3659 = vsel %vm3533, 0, %v3657
    %v3660 = vmul.f32 %v3658, %v3658
    %v3661 = vmul.f32 %v3660, -0.001358992
    %v3662 = vadd.f32 %v3661, 0.041655596
    %v3663 = vmul.f32 %v3660, %v3662
    %v3664 = vadd.f32 %v3663, -0.4999988
    %v3665 = vmul.f32 %v3660, %v3664
    %v3666 = vadd.f32 1.0, %v3665
    %v3667 = vmul.f32 %v3658, %v3658
    %v3668 = vmul.f32 %v3667, -0.00019511016
    %v3669 = vadd.f32 %v3668, 0.008332121
    %v3670 = vmul.f32 %v3667, %v3669
    %v3671 = vadd.f32 %v3670, -0.16666654
    %v3672 = vmul.f32 %v3667, %v3671
    %v3673 = vadd.f32 %v3672, 1.0
    %v3674 = vmul.f32 %v3673, %v3658
    %vm3675 = vweird.f32 %v420
    %v3676 = vadd.s32 %v3659, 3
    %v3677 = vand.u32 %v3676, 3
    %vm3678 = vcmp.lt.s32.totalorder %v3677, 2
    %vm3679 = vcmp.eq.s32.totalorder %v3677, 0
    %v3680 = vxor.u32 %v3674, 2147483648
    %v3681 = vsel %vm3679, %v3666, %v3680
    %vm3682 = vcmp.eq.s32.totalorder %v3677, 2
    %v3683 = vxor.u32 %v3666, 2147483648
    %v3684 = vsel %vm3682, %v3683, %v3674
    %v3685 = vsel %vm3678, %v3681, %v3684
    %v3686 = vsel %vm3675, nan, %v3685
    %v3687 = vand.u32 2147483647, %v421
    %vm3688 = vcmp.le.f32.partialorder %v3687, 0.7853982
    %vm3689 = vcmp.lt.s32.totalorder %v421, 0
    %v3690 = vand.u32 %v421, 2139095040
    %v3691 = vshrl.u32 %v3690, 23
    %v3692 = vsub.s32 %v3691, 127
    %v3693 = vand.u32 2147483647, %v421
    %v3694 = vand.u32 %v3693, 8388607
    %v3695 = vor.u32 %v3694, 8388608
    %v3696 = vsub.s32 0, %v3695
    %v3697 = vadd.s32 %v3692, 1
    %vm3698 = vcmp.gt.s32.totalorder %v3697, 0
    %v3699 = vsel %vm3698, %v3697, 0
    %v3700 = vshrl.u32 %v3699, 5
    %v3701 = vand.u32 %v3699, 31
    %v3702 = vsub.s32 32, %v3701
    %v3703 = vshrl.u32 683565275, %v3702
    %v3704 = vshll.u32 683565275, %v3701
    %v3705 = vshrl.u32 2475754826, %v3702
    %v3706 = vor.u32 %v3704, %v3705
    %v3707 = vshll.u32 2475754826, %v3701
    %v3708 = vshrl.u32 2131351028, %v3702
    %v3709 = vor.u32 %v3707, %v3708
    %v3710 = vshll.u32 2131351028, %v3701
    %v3711 = vshrl.u32 2102212464, %v3702
    %v3712 = vor.u32 %v3710, %v3711
    %v3713 = vshll.u32 2102212464, %v3701
    %v3714 = vshrl.u32 920167782, %v3702
    %v3715 = vor.u32 %v3713, %v3714
    %v3716 = vshll.u32 920167782, %v3701
    %v3717 = vshrl.u32 1326507024, %v3702
    %v3718 = vor.u32 %v3716, %v3717
    %vm3719 = vcmp.lt.s32.totalorder %v3700, 1
    %vm3720 = vcmp.lt.s32.totalorder %v3700, 2
    %vm3721 = vcmp.lt.s32.totalorder %v3700, 3
    %vm3722 = vcmp.lt.s32.totalorder %v3700, 4
    %v3723 = vsel %vm3719, %v3703, %v3706
    %v3724 = vsel %vm3722, %v3712, 2102212464
    %v3725 = vsel %vm3721, %v3709, %v3724
    %v3726 = vsel %vm3720, %v3723, %v3725
    %v3727 = vsel %vm3719, %v3706, %v3709
    %v3728 = vsel %vm3722, %v3715, 920167782
    %v3729 = vsel %vm3721, %v3712, %v3728
    %v3730 = vsel %vm3720, %v3727, %v3729
    %v3731 = vsel %vm3719, %v3709, %v3712
    %v3732 = vsel %vm3722, %v3718, 1326507024
    %v3733 = vsel %vm3721, %v3715, %v3732
    %v3734 = vsel %vm3720, %v3731, %v3733
    %v3735 = vshll.u32 %v3695, 8
    %v3736 = vand.u32 %v3735, 65535
    %v3737 = vshrl.u32 %v3735, 16
    %v3738 = vand.u32 %v3734, 65535
    %v3739 = vshrl.u32 %v3734, 16
    %v3740 = vmul.u32 %v3736, %v3738
    %v3741 = vmul.u32 %v3736, %v3739
    %v3742 = vmul.u32 %v3737, %v3738
    %v3743 = vmul.u32 %v3737, %v3739
    %v3744 = vshll.u32 %v3741, 16
    %v3745 = vshrl.u32 %v3741, 16
    %v3746 = vshll.u32 %v3742, 16
    %v3747 = vshrl.u32 %v3742, 16
    %vm3748 = vc.u32 %v3740, %v3744
    %v3749 = vsel %vm3748, 1, 0
    %v3750 = vadd.s32 %v3740, %v3744
    %v3751 = vadd.s32 %v3743, %v3749
    %vm3752 = vc.u32 %v3750, %v3746
    %v3753 = vsel %vm3752, 1, 0
    %v3754 = vadd.s32 %v3750, %v3746
    %v3755 = vadd.s32 %v3751, %v3753
    %v3756 = vadd.s32 %v3755, %v3745
    %v3757 = vadd.s32 %v3756, %v3747
    %v3758 = vand.u32 %v3735, 65535
    %v3759 = vshrl.u32 %v3735, 16
    %v3760 = vand.u32 %v3730, 65535
    %v3761 = vshrl.u32 %v3730, 16
    %v3762 = vmul.u32 %v3758, %v3760
    %v3763 = vmul.u32 %v3758, %v3761
    %v3764 = vmul.u32 %v3759, %v3760
    %v3765 = vmul.u32 %v3759, %v3761
    %v3766 = vshll.u32 %v3763, 16
    %v3767 = vshrl.u32 %v3763, 16
    %v3768 = vshll.u32 %v3764, 16
    %v3769 = vshrl.u32 %v3764, 16
    %vm3770 = vc.u32 %v3762, %v3766
    %v3771 = vsel %vm3770, 1, 0
    %v3772 = vadd.s32 %v3762, %v3766
    %v3773 = vadd.s32 %v3765, %v3771
    %vm3774 = vc.u32 %v3772, %v3768
    %v3775 = vsel %vm3774, 1, 0
    %v3776 = vadd.s32 %v3772, %v3768
    %v3777 = vadd.s32 %v3773, %v3775
    %v3778 = vadd.s32 %v3777, %v3767
    %v3779 = vadd.s32 %v3778, %v3769
    %v3780 = vmul.u32 %v3735, %v3726
    %v3781 = vadd.s32 %v3757, %v3776
    %vm3782 = vc.u32 %v3757, %v3776
    %v3783 = vadd.s32 %v3779, 1
    %v3784 = vsel %vm3782, %v3783, %v3779
    %v3785 = vadd.s32 %v3780, %v3784
    %v3786 = vadd.s32 %v3785, 536870912
    %v3787 = vshrl.u32 %v3786, 30
    %v3788 = vshll.u32 %v3787, 30
    %v3789 = vsub.s32 %v3785, %v3788
    %vm3790 = vcmp.lt.s32.totalorder %v3789, 0
    %v3791 = vsub.s32 0, %v3789
    %v3792 = vsel %vm3790, %v3791, %v3789
    %v3793 = vclz %v3792
    %v3794 = vsub.s32 %v3793, 2
    %vm3795 = vcmp.gt.s32.totalorder 0, %v3794
    %v3796 = vsel %vm3795, 0, %v3794
    %v3797 = vsub.s32 32, %v3796
    %v3798 = vshll.u32 %v3789, %v3796
    %v3799 = vshrl.u32 %v3781, %v3797
    %v3800 = vor.u32 %v3798, %v3799
    %v3801 = vsub.s32 4294967266, %v3796
    %v3802 = vadd.s32 %v3801, 127
    %v3803 = vshll.u32 %v3802, 23
    %v3804 = vor.u32 4788187, %v3803
    %v3805 = vand.u32 2147483647, %v3804
    %v3807 = vcvt.s32.f32 %v3800
    %v3808 = vmul.f32 %v3807, %v3805
    %v3809 = vxor.u32 %v3808, 2147483648
    %v3810 = vsel %vm3689, %v3809, %v3808
    %v3811 = vsub.s32 4, %v3787
    %v3812 = vsel %vm3689, %v3811, %v3787
    %v3813 = vsel %vm3688, %v421, %v3810
    %v3814 = vsel %vm3688, 0, %v3812
    %v3815 = vmul.f32 %v3813, %v3813
    %v3816 = vmul.f32 %v3815, -0.001358992
    %v3817 = vadd.f32 %v3816, 0.041655596
    %v3818 = vmul.f32 %v3815, %v3817
    %v3819 = vadd.f32 %v3818, -0.4999988
    %v3820 = vmul.f32 %v3815, %v3819
    %v3821 = vadd.f32 1.0, %v3820
    %v3822 = vmul.f32 %v3813, %v3813
    %v3823 = vmul.f32 %v3822, -0.00019511016
    %v3824 = vadd.f32 %v3823, 0.008332121
    %v3825 = vmul.f32 %v3822, %v3824
    %v3826 = vadd.f32 %v3825, -0.16666654
    %v3827 = vmul.f32 %v3822, %v3826
    %v3828 = vadd.f32 %v3827, 1.0
    %v3829 = vmul.f32 %v3828, %v3813
    %vm3830 = vweird.f32 %v421
    %v3831 = vadd.s32 %v3814, 3
    %v3832 = vand.u32 %v3831, 3
    %vm3833 = vcmp.lt.s32.totalorder %v3832, 2
    %vm3834 = vcmp.eq.s32.totalorder %v3832, 0
    %v3835 = vxor.u32 %v3829, 2147483648
    %v3836 = vsel %vm3834, %v3821, %v3835
    %vm3837 = vcmp.eq.s32.totalorder %v3832, 2
    %v3838 = vxor.u32 %v3821, 2147483648
    %v3839 = vsel %vm3837, %v3838, %v3829
    %v3840 = vsel %vm3833, %v3836, %v3839
    %v3841 = vsel %vm3830, nan, %v3840
    %v3842 = vand.u32 2147483647, %v422
    %vm3843 = vcmp.le.f32.partialorder %v3842, 0.7853982
    %vm3844 = vcmp.lt.s32.totalorder %v422, 0
    %v3845 = vand.u32 %v422, 2139095040
    %v3846 = vshrl.u32 %v3845, 23
    %v3847 = vsub.s32 %v3846, 127
    %v3848 = vand.u32 2147483647, %v422
    %v3849 = vand.u32 %v3848, 8388607
    %v3850 = vor.u32 %v3849, 8388608
    %v3851 = vsub.s32 0, %v3850
    %v3852 = vadd.s32 %v3847, 1
    %vm3853 = vcmp.gt.s32.totalorder %v3852, 0
    %v3854 = vsel %vm3853, %v3852, 0
    %v3855 = vshrl.u32 %v3854, 5
    %v3856 = vand.u32 %v3854, 31
    %v3857 = vsub.s32 32, %v3856
    %v3858 = vshrl.u32 683565275, %v3857
    %v3859 = vshll.u32 683565275, %v3856
    %v3860 = vshrl.u32 2475754826, %v3857
    %v3861 = vor.u32 %v3859, %v3860
    %v3862 = vshll.u32 2475754826, %v3856
    %v3863 = vshrl.u32 2131351028, %v3857
    %v3864 = vor.u32 %v3862, %v3863
    %v3865 = vshll.u32 2131351028, %v3856
    %v3866 = vshrl.u32 2102212464, %v3857
    %v3867 = vor.u32 %v3865, %v3866
    %v3868 = vshll.u32 2102212464, %v3856
    %v3869 = vshrl.u32 920167782, %v3857
    %v3870 = vor.u32 %v3868, %v3869
    %v3871 = vshll.u32 920167782, %v3856
    %v3872 = vshrl.u32 1326507024, %v3857
    %v3873 = vor.u32 %v3871, %v3872
    %vm3874 = vcmp.lt.s32.totalorder %v3855, 1
    %vm3875 = vcmp.lt.s32.totalorder %v3855, 2
    %vm3876 = vcmp.lt.s32.totalorder %v3855, 3
    %vm3877 = vcmp.lt.s32.totalorder %v3855, 4
    %v3878 = vsel %vm3874, %v3858, %v3861
    %v3879 = vsel %vm3877, %v3867, 2102212464
    %v3880 = vsel %vm3876, %v3864, %v3879
    %v3881 = vsel %vm3875, %v3878, %v3880
    %v3882 = vsel %vm3874, %v3861, %v3864
    %v3883 = vsel %vm3877, %v3870, 920167782
    %v3884 = vsel %vm3876, %v3867, %v3883
    %v3885 = vsel %vm3875, %v3882, %v3884
    %v3886 = vsel %vm3874, %v3864, %v3867
    %v3887 = vsel %vm3877, %v3873, 1326507024
    %v3888 = vsel %vm3876, %v3870, %v3887
    %v3889 = vsel %vm3875, %v3886, %v3888
    %v3890 = vshll.u32 %v3850, 8
    %v3891 = vand.u32 %v3890, 65535
    %v3892 = vshrl.u32 %v3890, 16
    %v3893 = vand.u32 %v3889, 65535
    %v3894 = vshrl.u32 %v3889, 16
    %v3895 = vmul.u32 %v3891, %v3893
    %v3896 = vmul.u32 %v3891, %v3894
    %v3897 = vmul.u32 %v3892, %v3893
    %v3898 = vmul.u32 %v3892, %v3894
    %v3899 = vshll.u32 %v3896, 16
    %v3900 = vshrl.u32 %v3896, 16
    %v3901 = vshll.u32 %v3897, 16
    %v3902 = vshrl.u32 %v3897, 16
    %vm3903 = vc.u32 %v3895, %v3899
    %v3904 = vsel %vm3903, 1, 0
    %v3905 = vadd.s32 %v3895, %v3899
    %v3906 = vadd.s32 %v3898, %v3904
    %vm3907 = vc.u32 %v3905, %v3901
    %v3908 = vsel %vm3907, 1, 0
    %v3909 = vadd.s32 %v3905, %v3901
    %v3910 = vadd.s32 %v3906, %v3908
    %v3911 = vadd.s32 %v3910, %v3900
    %v3912 = vadd.s32 %v3911, %v3902
    %v3913 = vand.u32 %v3890, 65535
    %v3914 = vshrl.u32 %v3890, 16
    %v3915 = vand.u32 %v3885, 65535
    %v3916 = vshrl.u32 %v3885, 16
    %v3917 = vmul.u32 %v3913, %v3915
    %v3918 = vmul.u32 %v3913, %v3916
    %v3919 = vmul.u32 %v3914, %v3915
    %v3920 = vmul.u32 %v3914, %v3916
    %v3921 = vshll.u32 %v3918, 16
    %v3922 = vshrl.u32 %v3918, 16
    %v3923 = vshll.u32 %v3919, 16
    %v3924 = vshrl.u32 %v3919, 16
    %vm3925 = vc.u32 %v3917, %v3921
    %v3926 = vsel %vm3925, 1, 0
    %v3927 = vadd.s32 %v3917, %v3921
    %v3928 = vadd.s32 %v3920, %v3926
    %vm3929 = vc.u32 %v3927, %v3923
    %v3930 = vsel %vm3929, 1, 0
    %v3931 = vadd.s32 %v3927, %v3923
    %v3932 = vadd.s32 %v3928, %v3930
    %v3933 = vadd.s32 %v3932, %v3922
    %v3934 = vadd.s32 %v3933, %v3924
    %v3935 = vmul.u32 %v3890, %v3881
    %v3936 = vadd.s32 %v3912, %v3931
    %vm3937 = vc.u32 %v3912, %v3931
    %v3938 = vadd.s32 %v3934, 1
    %v3939 = vsel %vm3937, %v3938, %v3934
    %v3940 = vadd.s32 %v3935, %v3939
    %v3941 = vadd.s32 %v3940, 536870912
    %v3942 = vshrl.u32 %v3941, 30
    %v3943 = vshll.u32 %v3942, 30
    %v3944 = vsub.s32 %v3940, %v3943
    %vm3945 = vcmp.lt.s32.totalorder %v3944, 0
    %v3946 = vsub.s32 0, %v3944
    %v3947 = vsel %vm3945, %v3946, %v3944
    %v3948 = vclz %v3947
    %v3949 = vsub.s32 %v3948, 2
    %vm3950 = vcmp.gt.s32.totalorder 0, %v3949
    %v3951 = vsel %vm3950, 0, %v3949
    %v3952 = vsub.s32 32, %v3951
    %v3953 = vshll.u32 %v3944, %v3951
    %v3954 = vshrl.u32 %v3936, %v3952
    %v3955 = vor.u32 %v3953, %v3954
    %v3956 = vsub.s32 4294967266, %v3951
    %v3957 = vadd.s32 %v3956, 127
    %v3958 = vshll.u32 %v3957, 23
    %v3959 = vor.u32 4788187, %v3958
    %v3960 = vand.u32 2147483647, %v3959
    %v3962 = vcvt.s32.f32 %v3955
    %v3963 = vmul.f32 %v3962, %v3960
    %v3964 = vxor.u32 %v3963, 2147483648
    %v3965 = vsel %vm3844, %v3964, %v3963
    %v3966 = vsub.s32 4, %v3942
    %v3967 = vsel %vm3844, %v3966, %v3942
    %v3968 = vsel %vm3843, %v422, %v3965
    %v3969 = vsel %vm3843, 0, %v3967
    %v3970 = vmul.f32 %v3968, %v3968
    %v3971 = vmul.f32 %v3970, -0.001358992
    %v3972 = vadd.f32 %v3971, 0.041655596
    %v3973 = vmul.f32 %v3970, %v3972
    %v3974 = vadd.f32 %v3973, -0.4999988
    %v3975 = vmul.f32 %v3970, %v3974
    %v3976 = vadd.f32 1.0, %v3975
    %v3977 = vmul.f32 %v3968, %v3968
    %v3978 = vmul.f32 %v3977, -0.00019511016
    %v3979 = vadd.f32 %v3978, 0.008332121
    %v3980 = vmul.f32 %v3977, %v3979
    %v3981 = vadd.f32 %v3980, -0.16666654
    %v3982 = vmul.f32 %v3977, %v3981
    %v3983 = vadd.f32 %v3982, 1.0
    %v3984 = vmul.f32 %v3983, %v3968
    %vm3985 = vweird.f32 %v422
    %v3986 = vadd.s32 %v3969, 3
    %v3987 = vand.u32 %v3986, 3
    %vm3988 = vcmp.lt.s32.totalorder %v3987, 2
    %vm3989 = vcmp.eq.s32.totalorder %v3987, 0
    %v3990 = vxor.u32 %v3984, 2147483648
    %v3991 = vsel %vm3989, %v3976, %v3990
    %vm3992 = vcmp.eq.s32.totalorder %v3987, 2
    %v3993 = vxor.u32 %v3976, 2147483648
    %v3994 = vsel %vm3992, %v3993, %v3984
    %v3995 = vsel %vm3988, %v3991, %v3994
    %v3996 = vsel %vm3985, nan, %v3995
    %v3997 = vand.u32 2147483647, %v423
    %vm3998 = vcmp.le.f32.partialorder %v3997, 0.7853982
    %vm3999 = vcmp.lt.s32.totalorder %v423, 0
    %v4000 = vand.u32 %v423, 2139095040
    %v4001 = vshrl.u32 %v4000, 23
    %v4002 = vsub.s32 %v4001, 127
    %v4003 = vand.u32 2147483647, %v423
    %v4004 = vand.u32 %v4003, 8388607
    %v4005 = vor.u32 %v4004, 8388608
    %v4006 = vsub.s32 0, %v4005
    %v4007 = vadd.s32 %v4002, 1
    %vm4008 = vcmp.gt.s32.totalorder %v4007, 0
    %v4009 = vsel %vm4008, %v4007, 0
    %v4010 = vshrl.u32 %v4009, 5
    %v4011 = vand.u32 %v4009, 31
    %v4012 = vsub.s32 32, %v4011
    %v4013 = vshrl.u32 683565275, %v4012
    %v4014 = vshll.u32 683565275, %v4011
    %v4015 = vshrl.u32 2475754826, %v4012
    %v4016 = vor.u32 %v4014, %v4015
    %v4017 = vshll.u32 2475754826, %v4011
    %v4018 = vshrl.u32 2131351028, %v4012
    %v4019 = vor.u32 %v4017, %v4018
    %v4020 = vshll.u32 2131351028, %v4011
    %v4021 = vshrl.u32 2102212464, %v4012
    %v4022 = vor.u32 %v4020, %v4021
    %v4023 = vshll.u32 2102212464, %v4011
    %v4024 = vshrl.u32 920167782, %v4012
    %v4025 = vor.u32 %v4023, %v4024
    %v4026 = vshll.u32 920167782, %v4011
    %v4027 = vshrl.u32 1326507024, %v4012
    %v4028 = vor.u32 %v4026, %v4027
    %vm4029 = vcmp.lt.s32.totalorder %v4010, 1
    %vm4030 = vcmp.lt.s32.totalorder %v4010, 2
    %vm4031 = vcmp.lt.s32.totalorder %v4010, 3
    %vm4032 = vcmp.lt.s32.totalorder %v4010, 4
    %v4033 = vsel %vm4029, %v4013, %v4016
    %v4034 = vsel %vm4032, %v4022, 2102212464
    %v4035 = vsel %vm4031, %v4019, %v4034
    %v4036 = vsel %vm4030, %v4033, %v4035
    %v4037 = vsel %vm4029, %v4016, %v4019
    %v4038 = vsel %vm4032, %v4025, 920167782
    %v4039 = vsel %vm4031, %v4022, %v4038
    %v4040 = vsel %vm4030, %v4037, %v4039
    %v4041 = vsel %vm4029, %v4019, %v4022
    %v4042 = vsel %vm4032, %v4028, 1326507024
    %v4043 = vsel %vm4031, %v4025, %v4042
    %v4044 = vsel %vm4030, %v4041, %v4043
    %v4045 = vshll.u32 %v4005, 8
    %v4046 = vand.u32 %v4045, 65535
    %v4047 = vshrl.u32 %v4045, 16
    %v4048 = vand.u32 %v4044, 65535
    %v4049 = vshrl.u32 %v4044, 16
    %v4050 = vmul.u32 %v4046, %v4048
    %v4051 = vmul.u32 %v4046, %v4049
    %v4052 = vmul.u32 %v4047, %v4048
    %v4053 = vmul.u32 %v4047, %v4049
    %v4054 = vshll.u32 %v4051, 16
    %v4055 = vshrl.u32 %v4051, 16
    %v4056 = vshll.u32 %v4052, 16
    %v4057 = vshrl.u32 %v4052, 16
    %vm4058 = vc.u32 %v4050, %v4054
    %v4059 = vsel %vm4058, 1, 0
    %v4060 = vadd.s32 %v4050, %v4054
    %v4061 = vadd.s32 %v4053, %v4059
    %vm4062 = vc.u32 %v4060, %v4056
    %v4063 = vsel %vm4062, 1, 0
    %v4064 = vadd.s32 %v4060, %v4056
    %v4065 = vadd.s32 %v4061, %v4063
    %v4066 = vadd.s32 %v4065, %v4055
    %v4067 = vadd.s32 %v4066, %v4057
    %v4068 = vand.u32 %v4045, 65535
    %v4069 = vshrl.u32 %v4045, 16
    %v4070 = vand.u32 %v4040, 65535
    %v4071 = vshrl.u32 %v4040, 16
    %v4072 = vmul.u32 %v4068, %v4070
    %v4073 = vmul.u32 %v4068, %v4071
    %v4074 = vmul.u32 %v4069, %v4070
    %v4075 = vmul.u32 %v4069, %v4071
    %v4076 = vshll.u32 %v4073, 16
    %v4077 = vshrl.u32 %v4073, 16
    %v4078 = vshll.u32 %v4074, 16
    %v4079 = vshrl.u32 %v4074, 16
    %vm4080 = vc.u32 %v4072, %v4076
    %v4081 = vsel %vm4080, 1, 0
    %v4082 = vadd.s32 %v4072, %v4076
    %v4083 = vadd.s32 %v4075, %v4081
    %vm4084 = vc.u32 %v4082, %v4078
    %v4085 = vsel %vm4084, 1, 0
    %v4086 = vadd.s32 %v4082, %v4078
    %v4087 = vadd.s32 %v4083, %v4085
    %v4088 = vadd.s32 %v4087, %v4077
    %v4089 = vadd.s32 %v4088, %v4079
    %v4090 = vmul.u32 %v4045, %v4036
    %v4091 = vadd.s32 %v4067, %v4086
    %vm4092 = vc.u32 %v4067, %v4086
    %v4093 = vadd.s32 %v4089, 1
    %v4094 = vsel %vm4092, %v4093, %v4089
    %v4095 = vadd.s32 %v4090, %v4094
    %v4096 = vadd.s32 %v4095, 536870912
    %v4097 = vshrl.u32 %v4096, 30
    %v4098 = vshll.u32 %v4097, 30
    %v4099 = vsub.s32 %v4095, %v4098
    %vm4100 = vcmp.lt.s32.totalorder %v4099, 0
    %v4101 = vsub.s32 0, %v4099
    %v4102 = vsel %vm4100, %v4101, %v4099
    %v4103 = vclz %v4102
    %v4104 = vsub.s32 %v4103, 2
    %vm4105 = vcmp.gt.s32.totalorder 0, %v4104
    %v4106 = vsel %vm4105, 0, %v4104
    %v4107 = vsub.s32 32, %v4106
    %v4108 = vshll.u32 %v4099, %v4106
    %v4109 = vshrl.u32 %v4091, %v4107
    %v4110 = vor.u32 %v4108, %v4109
    %v4111 = vsub.s32 4294967266, %v4106
    %v4112 = vadd.s32 %v4111, 127
    %v4113 = vshll.u32 %v4112, 23
    %v4114 = vor.u32 4788187, %v4113
    %v4115 = vand.u32 2147483647, %v4114
    %v4117 = vcvt.s32.f32 %v4110
    %v4118 = vmul.f32 %v4117, %v4115
    %v4119 = vxor.u32 %v4118, 2147483648
    %v4120 = vsel %vm3999, %v4119, %v4118
    %v4121 = vsub.s32 4, %v4097
    %v4122 = vsel %vm3999, %v4121, %v4097
    %v4123 = vsel %vm3998, %v423, %v4120
    %v4124 = vsel %vm3998, 0, %v4122
    %v4125 = vmul.f32 %v4123, %v4123
    %v4126 = vmul.f32 %v4125, -0.001358992
    %v4127 = vadd.f32 %v4126, 0.041655596
    %v4128 = vmul.f32 %v4125, %v4127
    %v4129 = vadd.f32 %v4128, -0.4999988
    %v4130 = vmul.f32 %v4125, %v4129
    %v4131 = vadd.f32 1.0, %v4130
    %v4132 = vmul.f32 %v4123, %v4123
    %v4133 = vmul.f32 %v4132, -0.00019511016
    %v4134 = vadd.f32 %v4133, 0.008332121
    %v4135 = vmul.f32 %v4132, %v4134
    %v4136 = vadd.f32 %v4135, -0.16666654
    %v4137 = vmul.f32 %v4132, %v4136
    %v4138 = vadd.f32 %v4137, 1.0
    %v4139 = vmul.f32 %v4138, %v4123
    %vm4140 = vweird.f32 %v423
    %v4141 = vadd.s32 %v4124, 3
    %v4142 = vand.u32 %v4141, 3
    %vm4143 = vcmp.lt.s32.totalorder %v4142, 2
    %vm4144 = vcmp.eq.s32.totalorder %v4142, 0
    %v4145 = vxor.u32 %v4139, 2147483648
    %v4146 = vsel %vm4144, %v4131, %v4145
    %vm4147 = vcmp.eq.s32.totalorder %v4142, 2
    %v4148 = vxor.u32 %v4131, 2147483648
    %v4149 = vsel %vm4147, %v4148, %v4139
    %v4150 = vsel %vm4143, %v4146, %v4149
    %v4151 = vsel %vm4140, nan, %v4150
    %v4152 = vand.u32 2147483647, %v424
    %vm4153 = vcmp.le.f32.partialorder %v4152, 0.7853982
    %vm4154 = vcmp.lt.s32.totalorder %v424, 0
    %v4155 = vand.u32 %v424, 2139095040
    %v4156 = vshrl.u32 %v4155, 23
    %v4157 = vsub.s32 %v4156, 127
    %v4158 = vand.u32 2147483647, %v424
    %v4159 = vand.u32 %v4158, 8388607
    %v4160 = vor.u32 %v4159, 8388608
    %v4161 = vsub.s32 0, %v4160
    %v4162 = vadd.s32 %v4157, 1
    %vm4163 = vcmp.gt.s32.totalorder %v4162, 0
    %v4164 = vsel %vm4163, %v4162, 0
    %v4165 = vshrl.u32 %v4164, 5
    %v4166 = vand.u32 %v4164, 31
    %v4167 = vsub.s32 32, %v4166
    %v4168 = vshrl.u32 683565275, %v4167
    %v4169 = vshll.u32 683565275, %v4166
    %v4170 = vshrl.u32 2475754826, %v4167
    %v4171 = vor.u32 %v4169, %v4170
    %v4172 = vshll.u32 2475754826, %v4166
    %v4173 = vshrl.u32 2131351028, %v4167
    %v4174 = vor.u32 %v4172, %v4173
    %v4175 = vshll.u32 2131351028, %v4166
    %v4176 = vshrl.u32 2102212464, %v4167
    %v4177 = vor.u32 %v4175, %v4176
    %v4178 = vshll.u32 2102212464, %v4166
    %v4179 = vshrl.u32 920167782, %v4167
    %v4180 = vor.u32 %v4178, %v4179
    %v4181 = vshll.u32 920167782, %v4166
    %v4182 = vshrl.u32 1326507024, %v4167
    %v4183 = vor.u32 %v4181, %v4182
    %vm4184 = vcmp.lt.s32.totalorder %v4165, 1
    %vm4185 = vcmp.lt.s32.totalorder %v4165, 2
    %vm4186 = vcmp.lt.s32.totalorder %v4165, 3
    %vm4187 = vcmp.lt.s32.totalorder %v4165, 4
    %v4188 = vsel %vm4184, %v4168, %v4171
    %v4189 = vsel %vm4187, %v4177, 2102212464
    %v4190 = vsel %vm4186, %v4174, %v4189
    %v4191 = vsel %vm4185, %v4188, %v4190
    %v4192 = vsel %vm4184, %v4171, %v4174
    %v4193 = vsel %vm4187, %v4180, 920167782
    %v4194 = vsel %vm4186, %v4177, %v4193
    %v4195 = vsel %vm4185, %v4192, %v4194
    %v4196 = vsel %vm4184, %v4174, %v4177
    %v4197 = vsel %vm4187, %v4183, 1326507024
    %v4198 = vsel %vm4186, %v4180, %v4197
    %v4199 = vsel %vm4185, %v4196, %v4198
    %v4200 = vshll.u32 %v4160, 8
    %v4201 = vand.u32 %v4200, 65535
    %v4202 = vshrl.u32 %v4200, 16
    %v4203 = vand.u32 %v4199, 65535
    %v4204 = vshrl.u32 %v4199, 16
    %v4205 = vmul.u32 %v4201, %v4203
    %v4206 = vmul.u32 %v4201, %v4204
    %v4207 = vmul.u32 %v4202, %v4203
    %v4208 = vmul.u32 %v4202, %v4204
    %v4209 = vshll.u32 %v4206, 16
    %v4210 = vshrl.u32 %v4206, 16
    %v4211 = vshll.u32 %v4207, 16
    %v4212 = vshrl.u32 %v4207, 16
    %vm4213 = vc.u32 %v4205, %v4209
    %v4214 = vsel %vm4213, 1, 0
    %v4215 = vadd.s32 %v4205, %v4209
    %v4216 = vadd.s32 %v4208, %v4214
    %vm4217 = vc.u32 %v4215, %v4211
    %v4218 = vsel %vm4217, 1, 0
    %v4219 = vadd.s32 %v4215, %v4211
    %v4220 = vadd.s32 %v4216, %v4218
    %v4221 = vadd.s32 %v4220, %v4210
    %v4222 = vadd.s32 %v4221, %v4212
    %v4223 = vand.u32 %v4200, 65535
    %v4224 = vshrl.u32 %v4200, 16
    %v4225 = vand.u32 %v4195, 65535
    %v4226 = vshrl.u32 %v4195, 16
    %v4227 = vmul.u32 %v4223, %v4225
    %v4228 = vmul.u32 %v4223, %v4226
    %v4229 = vmul.u32 %v4224, %v4225
    %v4230 = vmul.u32 %v4224, %v4226
    %v4231 = vshll.u32 %v4228, 16
    %v4232 = vshrl.u32 %v4228, 16
    %v4233 = vshll.u32 %v4229, 16
    %v4234 = vshrl.u32 %v4229, 16
    %vm4235 = vc.u32 %v4227, %v4231
    %v4236 = vsel %vm4235, 1, 0
    %v4237 = vadd.s32 %v4227, %v4231
    %v4238 = vadd.s32 %v4230, %v4236
    %vm4239 = vc.u32 %v4237, %v4233
    %v4240 = vsel %vm4239, 1, 0
    %v4241 = vadd.s32 %v4237, %v4233
    %v4242 = vadd.s32 %v4238, %v4240
    %v4243 = vadd.s32 %v4242, %v4232
    %v4244 = vadd.s32 %v4243, %v4234
    %v4245 = vmul.u32 %v4200, %v4191
    %v4246 = vadd.s32 %v4222, %v4241
    %vm4247 = vc.u32 %v4222, %v4241
    %v4248 = vadd.s32 %v4244, 1
    %v4249 = vsel %vm4247, %v4248, %v4244
    %v4250 = vadd.s32 %v4245, %v4249
    %v4251 = vadd.s32 %v4250, 536870912
    %v4252 = vshrl.u32 %v4251, 30
    %v4253 = vshll.u32 %v4252, 30
    %v4254 = vsub.s32 %v4250, %v4253
    %vm4255 = vcmp.lt.s32.totalorder %v4254, 0
    %v4256 = vsub.s32 0, %v4254
    %v4257 = vsel %vm4255, %v4256, %v4254
    %v4258 = vclz %v4257
    %v4259 = vsub.s32 %v4258, 2
    %vm4260 = vcmp.gt.s32.totalorder 0, %v4259
    %v4261 = vsel %vm4260, 0, %v4259
    %v4262 = vsub.s32 32, %v4261
    %v4263 = vshll.u32 %v4254, %v4261
    %v4264 = vshrl.u32 %v4246, %v4262
    %v4265 = vor.u32 %v4263, %v4264
    %v4266 = vsub.s32 4294967266, %v4261
    %v4267 = vadd.s32 %v4266, 127
    %v4268 = vshll.u32 %v4267, 23
    %v4269 = vor.u32 4788187, %v4268
    %v4270 = vand.u32 2147483647, %v4269
    %v4272 = vcvt.s32.f32 %v4265
    %v4273 = vmul.f32 %v4272, %v4270
    %v4274 = vxor.u32 %v4273, 2147483648
    %v4275 = vsel %vm4154, %v4274, %v4273
    %v4276 = vsub.s32 4, %v4252
    %v4277 = vsel %vm4154, %v4276, %v4252
    %v4278 = vsel %vm4153, %v424, %v4275
    %v4279 = vsel %vm4153, 0, %v4277
    %v4280 = vmul.f32 %v4278, %v4278
    %v4281 = vmul.f32 %v4280, -0.001358992
    %v4282 = vadd.f32 %v4281, 0.041655596
    %v4283 = vmul.f32 %v4280, %v4282
    %v4284 = vadd.f32 %v4283, -0.4999988
    %v4285 = vmul.f32 %v4280, %v4284
    %v4286 = vadd.f32 1.0, %v4285
    %v4287 = vmul.f32 %v4278, %v4278
    %v4288 = vmul.f32 %v4287, -0.00019511016
    %v4289 = vadd.f32 %v4288, 0.008332121
    %v4290 = vmul.f32 %v4287, %v4289
    %v4291 = vadd.f32 %v4290, -0.16666654
    %v4292 = vmul.f32 %v4287, %v4291
    %v4293 = vadd.f32 %v4292, 1.0
    %v4294 = vmul.f32 %v4293, %v4278
    %vm4295 = vweird.f32 %v424
    %v4296 = vadd.s32 %v4279, 3
    %v4297 = vand.u32 %v4296, 3
    %vm4298 = vcmp.lt.s32.totalorder %v4297, 2
    %vm4299 = vcmp.eq.s32.totalorder %v4297, 0
    %v4300 = vxor.u32 %v4294, 2147483648
    %v4301 = vsel %vm4299, %v4286, %v4300
    %vm4302 = vcmp.eq.s32.totalorder %v4297, 2
    %v4303 = vxor.u32 %v4286, 2147483648
    %v4304 = vsel %vm4302, %v4303, %v4294
    %v4305 = vsel %vm4298, %v4301, %v4304
    %v4306 = vsel %vm4295, nan, %v4305
    %v4307 = vand.u32 2147483647, %v425
    %vm4308 = vcmp.le.f32.partialorder %v4307, 0.7853982
    %vm4309 = vcmp.lt.s32.totalorder %v425, 0
    %v4310 = vand.u32 %v425, 2139095040
    %v4311 = vshrl.u32 %v4310, 23
    %v4312 = vsub.s32 %v4311, 127
    %v4313 = vand.u32 2147483647, %v425
    %v4314 = vand.u32 %v4313, 8388607
    %v4315 = vor.u32 %v4314, 8388608
    %v4316 = vsub.s32 0, %v4315
    %v4317 = vadd.s32 %v4312, 1
    %vm4318 = vcmp.gt.s32.totalorder %v4317, 0
    %v4319 = vsel %vm4318, %v4317, 0
    %v4320 = vshrl.u32 %v4319, 5
    %v4321 = vand.u32 %v4319, 31
    %v4322 = vsub.s32 32, %v4321
    %v4323 = vshrl.u32 683565275, %v4322
    %v4324 = vshll.u32 683565275, %v4321
    %v4325 = vshrl.u32 2475754826, %v4322
    %v4326 = vor.u32 %v4324, %v4325
    %v4327 = vshll.u32 2475754826, %v4321
    %v4328 = vshrl.u32 2131351028, %v4322
    %v4329 = vor.u32 %v4327, %v4328
    %v4330 = vshll.u32 2131351028, %v4321
    %v4331 = vshrl.u32 2102212464, %v4322
    %v4332 = vor.u32 %v4330, %v4331
    %v4333 = vshll.u32 2102212464, %v4321
    %v4334 = vshrl.u32 920167782, %v4322
    %v4335 = vor.u32 %v4333, %v4334
    %v4336 = vshll.u32 920167782, %v4321
    %v4337 = vshrl.u32 1326507024, %v4322
    %v4338 = vor.u32 %v4336, %v4337
    %vm4339 = vcmp.lt.s32.totalorder %v4320, 1
    %vm4340 = vcmp.lt.s32.totalorder %v4320, 2
    %vm4341 = vcmp.lt.s32.totalorder %v4320, 3
    %vm4342 = vcmp.lt.s32.totalorder %v4320, 4
    %v4343 = vsel %vm4339, %v4323, %v4326
    %v4344 = vsel %vm4342, %v4332, 2102212464
    %v4345 = vsel %vm4341, %v4329, %v4344
    %v4346 = vsel %vm4340, %v4343, %v4345
    %v4347 = vsel %vm4339, %v4326, %v4329
    %v4348 = vsel %vm4342, %v4335, 920167782
    %v4349 = vsel %vm4341, %v4332, %v4348
    %v4350 = vsel %vm4340, %v4347, %v4349
    %v4351 = vsel %vm4339, %v4329, %v4332
    %v4352 = vsel %vm4342, %v4338, 1326507024
    %v4353 = vsel %vm4341, %v4335, %v4352
    %v4354 = vsel %vm4340, %v4351, %v4353
    %v4355 = vshll.u32 %v4315, 8
    %v4356 = vand.u32 %v4355, 65535
    %v4357 = vshrl.u32 %v4355, 16
    %v4358 = vand.u32 %v4354, 65535
    %v4359 = vshrl.u32 %v4354, 16
    %v4360 = vmul.u32 %v4356, %v4358
    %v4361 = vmul.u32 %v4356, %v4359
    %v4362 = vmul.u32 %v4357, %v4358
    %v4363 = vmul.u32 %v4357, %v4359
    %v4364 = vshll.u32 %v4361, 16
    %v4365 = vshrl.u32 %v4361, 16
    %v4366 = vshll.u32 %v4362, 16
    %v4367 = vshrl.u32 %v4362, 16
    %vm4368 = vc.u32 %v4360, %v4364
    %v4369 = vsel %vm4368, 1, 0
    %v4370 = vadd.s32 %v4360, %v4364
    %v4371 = vadd.s32 %v4363, %v4369
    %vm4372 = vc.u32 %v4370, %v4366
    %v4373 = vsel %vm4372, 1, 0
    %v4374 = vadd.s32 %v4370, %v4366
    %v4375 = vadd.s32 %v4371, %v4373
    %v4376 = vadd.s32 %v4375, %v4365
    %v4377 = vadd.s32 %v4376, %v4367
    %v4378 = vand.u32 %v4355, 65535
    %v4379 = vshrl.u32 %v4355, 16
    %v4380 = vand.u32 %v4350, 65535
    %v4381 = vshrl.u32 %v4350, 16
    %v4382 = vmul.u32 %v4378, %v4380
    %v4383 = vmul.u32 %v4378, %v4381
    %v4384 = vmul.u32 %v4379, %v4380
    %v4385 = vmul.u32 %v4379, %v4381
    %v4386 = vshll.u32 %v4383, 16
    %v4387 = vshrl.u32 %v4383, 16
    %v4388 = vshll.u32 %v4384, 16
    %v4389 = vshrl.u32 %v4384, 16
    %vm4390 = vc.u32 %v4382, %v4386
    %v4391 = vsel %vm4390, 1, 0
    %v4392 = vadd.s32 %v4382, %v4386
    %v4393 = vadd.s32 %v4385, %v4391
    %vm4394 = vc.u32 %v4392, %v4388
    %v4395 = vsel %vm4394, 1, 0
    %v4396 = vadd.s32 %v4392, %v4388
    %v4397 = vadd.s32 %v4393, %v4395
    %v4398 = vadd.s32 %v4397, %v4387
    %v4399 = vadd.s32 %v4398, %v4389
    %v4400 = vmul.u32 %v4355, %v4346
    %v4401 = vadd.s32 %v4377, %v4396
    %vm4402 = vc.u32 %v4377, %v4396
    %v4403 = vadd.s32 %v4399, 1
    %v4404 = vsel %vm4402, %v4403, %v4399
    %v4405 = vadd.s32 %v4400, %v4404
    %v4406 = vadd.s32 %v4405, 536870912
    %v4407 = vshrl.u32 %v4406, 30
    %v4408 = vshll.u32 %v4407, 30
    %v4409 = vsub.s32 %v4405, %v4408
    %vm4410 = vcmp.lt.s32.totalorder %v4409, 0
    %v4411 = vsub.s32 0, %v4409
    %v4412 = vsel %vm4410, %v4411, %v4409
    %v4413 = vclz %v4412
    %v4414 = vsub.s32 %v4413, 2
    %vm4415 = vcmp.gt.s32.totalorder 0, %v4414
    %v4416 = vsel %vm4415, 0, %v4414
    %v4417 = vsub.s32 32, %v4416
    %v4418 = vshll.u32 %v4409, %v4416
    %v4419 = vshrl.u32 %v4401, %v4417
    %v4420 = vor.u32 %v4418, %v4419
    %v4421 = vsub.s32 4294967266, %v4416
    %v4422 = vadd.s32 %v4421, 127
    %v4423 = vshll.u32 %v4422, 23
    %v4424 = vor.u32 4788187, %v4423
    %v4425 = vand.u32 2147483647, %v4424
    %v4427 = vcvt.s32.f32 %v4420
    %v4428 = vmul.f32 %v4427, %v4425
    %v4429 = vxor.u32 %v4428, 2147483648
    %v4430 = vsel %vm4309, %v4429, %v4428
    %v4431 = vsub.s32 4, %v4407
    %v4432 = vsel %vm4309, %v4431, %v4407
    %v4433 = vsel %vm4308, %v425, %v4430
    %v4434 = vsel %vm4308, 0, %v4432
    %v4435 = vmul.f32 %v4433, %v4433
    %v4436 = vmul.f32 %v4435, -0.001358992
    %v4437 = vadd.f32 %v4436, 0.041655596
    %v4438 = vmul.f32 %v4435, %v4437
    %v4439 = vadd.f32 %v4438, -0.4999988
    %v4440 = vmul.f32 %v4435, %v4439
    %v4441 = vadd.f32 1.0, %v4440
    %v4442 = vmul.f32 %v4433, %v4433
    %v4443 = vmul.f32 %v4442, -0.00019511016
    %v4444 = vadd.f32 %v4443, 0.008332121
    %v4445 = vmul.f32 %v4442, %v4444
    %v4446 = vadd.f32 %v4445, -0.16666654
    %v4447 = vmul.f32 %v4442, %v4446
    %v4448 = vadd.f32 %v4447, 1.0
    %v4449 = vmul.f32 %v4448, %v4433
    %vm4450 = vweird.f32 %v425
    %v4451 = vadd.s32 %v4434, 3
    %v4452 = vand.u32 %v4451, 3
    %vm4453 = vcmp.lt.s32.totalorder %v4452, 2
    %vm4454 = vcmp.eq.s32.totalorder %v4452, 0
    %v4455 = vxor.u32 %v4449, 2147483648
    %v4456 = vsel %vm4454, %v4441, %v4455
    %vm4457 = vcmp.eq.s32.totalorder %v4452, 2
    %v4458 = vxor.u32 %v4441, 2147483648
    %v4459 = vsel %vm4457, %v4458, %v4449
    %v4460 = vsel %vm4453, %v4456, %v4459
    %v4461 = vsel %vm4450, nan, %v4460
    %v4462 = vand.u32 2147483647, %v426
    %vm4463 = vcmp.le.f32.partialorder %v4462, 0.7853982
    %vm4464 = vcmp.lt.s32.totalorder %v426, 0
    %v4465 = vand.u32 %v426, 2139095040
    %v4466 = vshrl.u32 %v4465, 23
    %v4467 = vsub.s32 %v4466, 127
    %v4468 = vand.u32 2147483647, %v426
    %v4469 = vand.u32 %v4468, 8388607
    %v4470 = vor.u32 %v4469, 8388608
    %v4471 = vsub.s32 0, %v4470
    %v4472 = vadd.s32 %v4467, 1
    %vm4473 = vcmp.gt.s32.totalorder %v4472, 0
    %v4474 = vsel %vm4473, %v4472, 0
    %v4475 = vshrl.u32 %v4474, 5
    %v4476 = vand.u32 %v4474, 31
    %v4477 = vsub.s32 32, %v4476
    %v4478 = vshrl.u32 683565275, %v4477
    %v4479 = vshll.u32 683565275, %v4476
    %v4480 = vshrl.u32 2475754826, %v4477
    %v4481 = vor.u32 %v4479, %v4480
    %v4482 = vshll.u32 2475754826, %v4476
    %v4483 = vshrl.u32 2131351028, %v4477
    %v4484 = vor.u32 %v4482, %v4483
    %v4485 = vshll.u32 2131351028, %v4476
    %v4486 = vshrl.u32 2102212464, %v4477
    %v4487 = vor.u32 %v4485, %v4486
    %v4488 = vshll.u32 2102212464, %v4476
    %v4489 = vshrl.u32 920167782, %v4477
    %v4490 = vor.u32 %v4488, %v4489
    %v4491 = vshll.u32 920167782, %v4476
    %v4492 = vshrl.u32 1326507024, %v4477
    %v4493 = vor.u32 %v4491, %v4492
    %vm4494 = vcmp.lt.s32.totalorder %v4475, 1
    %vm4495 = vcmp.lt.s32.totalorder %v4475, 2
    %vm4496 = vcmp.lt.s32.totalorder %v4475, 3
    %vm4497 = vcmp.lt.s32.totalorder %v4475, 4
    %v4498 = vsel %vm4494, %v4478, %v4481
    %v4499 = vsel %vm4497, %v4487, 2102212464
    %v4500 = vsel %vm4496, %v4484, %v4499
    %v4501 = vsel %vm4495, %v4498, %v4500
    %v4502 = vsel %vm4494, %v4481, %v4484
    %v4503 = vsel %vm4497, %v4490, 920167782
    %v4504 = vsel %vm4496, %v4487, %v4503
    %v4505 = vsel %vm4495, %v4502, %v4504
    %v4506 = vsel %vm4494, %v4484, %v4487
    %v4507 = vsel %vm4497, %v4493, 1326507024
    %v4508 = vsel %vm4496, %v4490, %v4507
    %v4509 = vsel %vm4495, %v4506, %v4508
    %v4510 = vshll.u32 %v4470, 8
    %v4511 = vand.u32 %v4510, 65535
    %v4512 = vshrl.u32 %v4510, 16
    %v4513 = vand.u32 %v4509, 65535
    %v4514 = vshrl.u32 %v4509, 16
    %v4515 = vmul.u32 %v4511, %v4513
    %v4516 = vmul.u32 %v4511, %v4514
    %v4517 = vmul.u32 %v4512, %v4513
    %v4518 = vmul.u32 %v4512, %v4514
    %v4519 = vshll.u32 %v4516, 16
    %v4520 = vshrl.u32 %v4516, 16
    %v4521 = vshll.u32 %v4517, 16
    %v4522 = vshrl.u32 %v4517, 16
    %vm4523 = vc.u32 %v4515, %v4519
    %v4524 = vsel %vm4523, 1, 0
    %v4525 = vadd.s32 %v4515, %v4519
    %v4526 = vadd.s32 %v4518, %v4524
    %vm4527 = vc.u32 %v4525, %v4521
    %v4528 = vsel %vm4527, 1, 0
    %v4529 = vadd.s32 %v4525, %v4521
    %v4530 = vadd.s32 %v4526, %v4528
    %v4531 = vadd.s32 %v4530, %v4520
    %v4532 = vadd.s32 %v4531, %v4522
    %v4533 = vand.u32 %v4510, 65535
    %v4534 = vshrl.u32 %v4510, 16
    %v4535 = vand.u32 %v4505, 65535
    %v4536 = vshrl.u32 %v4505, 16
    %v4537 = vmul.u32 %v4533, %v4535
    %v4538 = vmul.u32 %v4533, %v4536
    %v4539 = vmul.u32 %v4534, %v4535
    %v4540 = vmul.u32 %v4534, %v4536
    %v4541 = vshll.u32 %v4538, 16
    %v4542 = vshrl.u32 %v4538, 16
    %v4543 = vshll.u32 %v4539, 16
    %v4544 = vshrl.u32 %v4539, 16
    %vm4545 = vc.u32 %v4537, %v4541
    %v4546 = vsel %vm4545, 1, 0
    %v4547 = vadd.s32 %v4537, %v4541
    %v4548 = vadd.s32 %v4540, %v4546
    %vm4549 = vc.u32 %v4547, %v4543
    %v4550 = vsel %vm4549, 1, 0
    %v4551 = vadd.s32 %v4547, %v4543
    %v4552 = vadd.s32 %v4548, %v4550
    %v4553 = vadd.s32 %v4552, %v4542
    %v4554 = vadd.s32 %v4553, %v4544
    %v4555 = vmul.u32 %v4510, %v4501
    %v4556 = vadd.s32 %v4532, %v4551
    %vm4557 = vc.u32 %v4532, %v4551
    %v4558 = vadd.s32 %v4554, 1
    %v4559 = vsel %vm4557, %v4558, %v4554
    %v4560 = vadd.s32 %v4555, %v4559
    %v4561 = vadd.s32 %v4560, 536870912
    %v4562 = vshrl.u32 %v4561, 30
    %v4563 = vshll.u32 %v4562, 30
    %v4564 = vsub.s32 %v4560, %v4563
    %vm4565 = vcmp.lt.s32.totalorder %v4564, 0
    %v4566 = vsub.s32 0, %v4564
    %v4567 = vsel %vm4565, %v4566, %v4564
    %v4568 = vclz %v4567
    %v4569 = vsub.s32 %v4568, 2
    %vm4570 = vcmp.gt.s32.totalorder 0, %v4569
    %v4571 = vsel %vm4570, 0, %v4569
    %v4572 = vsub.s32 32, %v4571
    %v4573 = vshll.u32 %v4564, %v4571
    %v4574 = vshrl.u32 %v4556, %v4572
    %v4575 = vor.u32 %v4573, %v4574
    %v4576 = vsub.s32 4294967266, %v4571
    %v4577 = vadd.s32 %v4576, 127
    %v4578 = vshll.u32 %v4577, 23
    %v4579 = vor.u32 4788187, %v4578
    %v4580 = vand.u32 2147483647, %v4579
    %v4582 = vcvt.s32.f32 %v4575
    %v4583 = vmul.f32 %v4582, %v4580
    %v4584 = vxor.u32 %v4583, 2147483648
    %v4585 = vsel %vm4464, %v4584, %v4583
    %v4586 = vsub.s32 4, %v4562
    %v4587 = vsel %vm4464, %v4586, %v4562
    %v4588 = vsel %vm4463, %v426, %v4585
    %v4589 = vsel %vm4463, 0, %v4587
    %v4590 = vmul.f32 %v4588, %v4588
    %v4591 = vmul.f32 %v4590, -0.001358992
    %v4592 = vadd.f32 %v4591, 0.041655596
    %v4593 = vmul.f32 %v4590, %v4592
    %v4594 = vadd.f32 %v4593, -0.4999988
    %v4595 = vmul.f32 %v4590, %v4594
    %v4596 = vadd.f32 1.0, %v4595
    %v4597 = vmul.f32 %v4588, %v4588
    %v4598 = vmul.f32 %v4597, -0.00019511016
    %v4599 = vadd.f32 %v4598, 0.008332121
    %v4600 = vmul.f32 %v4597, %v4599
    %v4601 = vadd.f32 %v4600, -0.16666654
    %v4602 = vmul.f32 %v4597, %v4601
    %v4603 = vadd.f32 %v4602, 1.0
    %v4604 = vmul.f32 %v4603, %v4588
    %vm4605 = vweird.f32 %v426
    %v4606 = vadd.s32 %v4589, 3
    %v4607 = vand.u32 %v4606, 3
    %vm4608 = vcmp.lt.s32.totalorder %v4607, 2
    %vm4609 = vcmp.eq.s32.totalorder %v4607, 0
    %v4610 = vxor.u32 %v4604, 2147483648
    %v4611 = vsel %vm4609, %v4596, %v4610
    %vm4612 = vcmp.eq.s32.totalorder %v4607, 2
    %v4613 = vxor.u32 %v4596, 2147483648
    %v4614 = vsel %vm4612, %v4613, %v4604
    %v4615 = vsel %vm4608, %v4611, %v4614
    %v4616 = vsel %vm4605, nan, %v4615
    %v4617 = vand.u32 2147483647, %v427
    %vm4618 = vcmp.le.f32.partialorder %v4617, 0.7853982
    %vm4619 = vcmp.lt.s32.totalorder %v427, 0
    %v4620 = vand.u32 %v427, 2139095040
    %v4621 = vshrl.u32 %v4620, 23
    %v4622 = vsub.s32 %v4621, 127
    %v4623 = vand.u32 2147483647, %v427
    %v4624 = vand.u32 %v4623, 8388607
    %v4625 = vor.u32 %v4624, 8388608
    %v4626 = vsub.s32 0, %v4625
    %v4627 = vadd.s32 %v4622, 1
    %vm4628 = vcmp.gt.s32.totalorder %v4627, 0
    %v4629 = vsel %vm4628, %v4627, 0
    %v4630 = vshrl.u32 %v4629, 5
    %v4631 = vand.u32 %v4629, 31
    %v4632 = vsub.s32 32, %v4631
    %v4633 = vshrl.u32 683565275, %v4632
    %v4634 = vshll.u32 683565275, %v4631
    %v4635 = vshrl.u32 2475754826, %v4632
    %v4636 = vor.u32 %v4634, %v4635
    %v4637 = vshll.u32 2475754826, %v4631
    %v4638 = vshrl.u32 2131351028, %v4632
    %v4639 = vor.u32 %v4637, %v4638
    %v4640 = vshll.u32 2131351028, %v4631
    %v4641 = vshrl.u32 2102212464, %v4632
    %v4642 = vor.u32 %v4640, %v4641
    %v4643 = vshll.u32 2102212464, %v4631
    %v4644 = vshrl.u32 920167782, %v4632
    %v4645 = vor.u32 %v4643, %v4644
    %v4646 = vshll.u32 920167782, %v4631
    %v4647 = vshrl.u32 1326507024, %v4632
    %v4648 = vor.u32 %v4646, %v4647
    %vm4649 = vcmp.lt.s32.totalorder %v4630, 1
    %vm4650 = vcmp.lt.s32.totalorder %v4630, 2
    %vm4651 = vcmp.lt.s32.totalorder %v4630, 3
    %vm4652 = vcmp.lt.s32.totalorder %v4630, 4
    %v4653 = vsel %vm4649, %v4633, %v4636
    %v4654 = vsel %vm4652, %v4642, 2102212464
    %v4655 = vsel %vm4651, %v4639, %v4654
    %v4656 = vsel %vm4650, %v4653, %v4655
    %v4657 = vsel %vm4649, %v4636, %v4639
    %v4658 = vsel %vm4652, %v4645, 920167782
    %v4659 = vsel %vm4651, %v4642, %v4658
    %v4660 = vsel %vm4650, %v4657, %v4659
    %v4661 = vsel %vm4649, %v4639, %v4642
    %v4662 = vsel %vm4652, %v4648, 1326507024
    %v4663 = vsel %vm4651, %v4645, %v4662
    %v4664 = vsel %vm4650, %v4661, %v4663
    %v4665 = vshll.u32 %v4625, 8
    %v4666 = vand.u32 %v4665, 65535
    %v4667 = vshrl.u32 %v4665, 16
    %v4668 = vand.u32 %v4664, 65535
    %v4669 = vshrl.u32 %v4664, 16
    %v4670 = vmul.u32 %v4666, %v4668
    %v4671 = vmul.u32 %v4666, %v4669
    %v4672 = vmul.u32 %v4667, %v4668
    %v4673 = vmul.u32 %v4667, %v4669
    %v4674 = vshll.u32 %v4671, 16
    %v4675 = vshrl.u32 %v4671, 16
    %v4676 = vshll.u32 %v4672, 16
    %v4677 = vshrl.u32 %v4672, 16
    %vm4678 = vc.u32 %v4670, %v4674
    %v4679 = vsel %vm4678, 1, 0
    %v4680 = vadd.s32 %v4670, %v4674
    %v4681 = vadd.s32 %v4673, %v4679
    %vm4682 = vc.u32 %v4680, %v4676
    %v4683 = vsel %vm4682, 1, 0
    %v4684 = vadd.s32 %v4680, %v4676
    %v4685 = vadd.s32 %v4681, %v4683
    %v4686 = vadd.s32 %v4685, %v4675
    %v4687 = vadd.s32 %v4686, %v4677
    %v4688 = vand.u32 %v4665, 65535
    %v4689 = vshrl.u32 %v4665, 16
    %v4690 = vand.u32 %v4660, 65535
    %v4691 = vshrl.u32 %v4660, 16
    %v4692 = vmul.u32 %v4688, %v4690
    %v4693 = vmul.u32 %v4688, %v4691
    %v4694 = vmul.u32 %v4689, %v4690
    %v4695 = vmul.u32 %v4689, %v4691
    %v4696 = vshll.u32 %v4693, 16
    %v4697 = vshrl.u32 %v4693, 16
    %v4698 = vshll.u32 %v4694, 16
    %v4699 = vshrl.u32 %v4694, 16
    %vm4700 = vc.u32 %v4692, %v4696
    %v4701 = vsel %vm4700, 1, 0
    %v4702 = vadd.s32 %v4692, %v4696
    %v4703 = vadd.s32 %v4695, %v4701
    %vm4704 = vc.u32 %v4702, %v4698
    %v4705 = vsel %vm4704, 1, 0
    %v4706 = vadd.s32 %v4702, %v4698
    %v4707 = vadd.s32 %v4703, %v4705
    %v4708 = vadd.s32 %v4707, %v4697
    %v4709 = vadd.s32 %v4708, %v4699
    %v4710 = vmul.u32 %v4665, %v4656
    %v4711 = vadd.s32 %v4687, %v4706
    %vm4712 = vc.u32 %v4687, %v4706
    %v4713 = vadd.s32 %v4709, 1
    %v4714 = vsel %vm4712, %v4713, %v4709
    %v4715 = vadd.s32 %v4710, %v4714
    %v4716 = vadd.s32 %v4715, 536870912
    %v4717 = vshrl.u32 %v4716, 30
    %v4718 = vshll.u32 %v4717, 30
    %v4719 = vsub.s32 %v4715, %v4718
    %vm4720 = vcmp.lt.s32.totalorder %v4719, 0
    %v4721 = vsub.s32 0, %v4719
    %v4722 = vsel %vm4720, %v4721, %v4719
    %v4723 = vclz %v4722
    %v4724 = vsub.s32 %v4723, 2
    %vm4725 = vcmp.gt.s32.totalorder 0, %v4724
    %v4726 = vsel %vm4725, 0, %v4724
    %v4727 = vsub.s32 32, %v4726
    %v4728 = vshll.u32 %v4719, %v4726
    %v4729 = vshrl.u32 %v4711, %v4727
    %v4730 = vor.u32 %v4728, %v4729
    %v4731 = vsub.s32 4294967266, %v4726
    %v4732 = vadd.s32 %v4731, 127
    %v4733 = vshll.u32 %v4732, 23
    %v4734 = vor.u32 4788187, %v4733
    %v4735 = vand.u32 2147483647, %v4734
    %v4737 = vcvt.s32.f32 %v4730
    %v4738 = vmul.f32 %v4737, %v4735
    %v4739 = vxor.u32 %v4738, 2147483648
    %v4740 = vsel %vm4619, %v4739, %v4738
    %v4741 = vsub.s32 4, %v4717
    %v4742 = vsel %vm4619, %v4741, %v4717
    %v4743 = vsel %vm4618, %v427, %v4740
    %v4744 = vsel %vm4618, 0, %v4742
    %v4745 = vmul.f32 %v4743, %v4743
    %v4746 = vmul.f32 %v4745, -0.001358992
    %v4747 = vadd.f32 %v4746, 0.041655596
    %v4748 = vmul.f32 %v4745, %v4747
    %v4749 = vadd.f32 %v4748, -0.4999988
    %v4750 = vmul.f32 %v4745, %v4749
    %v4751 = vadd.f32 1.0, %v4750
    %v4752 = vmul.f32 %v4743, %v4743
    %v4753 = vmul.f32 %v4752, -0.00019511016
    %v4754 = vadd.f32 %v4753, 0.008332121
    %v4755 = vmul.f32 %v4752, %v4754
    %v4756 = vadd.f32 %v4755, -0.16666654
    %v4757 = vmul.f32 %v4752, %v4756
    %v4758 = vadd.f32 %v4757, 1.0
    %v4759 = vmul.f32 %v4758, %v4743
    %vm4760 = vweird.f32 %v427
    %v4761 = vadd.s32 %v4744, 3
    %v4762 = vand.u32 %v4761, 3
    %vm4763 = vcmp.lt.s32.totalorder %v4762, 2
    %vm4764 = vcmp.eq.s32.totalorder %v4762, 0
    %v4765 = vxor.u32 %v4759, 2147483648
    %v4766 = vsel %vm4764, %v4751, %v4765
    %vm4767 = vcmp.eq.s32.totalorder %v4762, 2
    %v4768 = vxor.u32 %v4751, 2147483648
    %v4769 = vsel %vm4767, %v4768, %v4759
    %v4770 = vsel %vm4763, %v4766, %v4769
    %v4771 = vsel %vm4760, nan, %v4770
    %v4772 = vand.u32 2147483647, %v428
    %vm4773 = vcmp.le.f32.partialorder %v4772, 0.7853982
    %vm4774 = vcmp.lt.s32.totalorder %v428, 0
    %v4775 = vand.u32 %v428, 2139095040
    %v4776 = vshrl.u32 %v4775, 23
    %v4777 = vsub.s32 %v4776, 127
    %v4778 = vand.u32 2147483647, %v428
    %v4779 = vand.u32 %v4778, 8388607
    %v4780 = vor.u32 %v4779, 8388608
    %v4781 = vsub.s32 0, %v4780
    %v4782 = vadd.s32 %v4777, 1
    %vm4783 = vcmp.gt.s32.totalorder %v4782, 0
    %v4784 = vsel %vm4783, %v4782, 0
    %v4785 = vshrl.u32 %v4784, 5
    %v4786 = vand.u32 %v4784, 31
    %v4787 = vsub.s32 32, %v4786
    %v4788 = vshrl.u32 683565275, %v4787
    %v4789 = vshll.u32 683565275, %v4786
    %v4790 = vshrl.u32 2475754826, %v4787
    %v4791 = vor.u32 %v4789, %v4790
    %v4792 = vshll.u32 2475754826, %v4786
    %v4793 = vshrl.u32 2131351028, %v4787
    %v4794 = vor.u32 %v4792, %v4793
    %v4795 = vshll.u32 2131351028, %v4786
    %v4796 = vshrl.u32 2102212464, %v4787
    %v4797 = vor.u32 %v4795, %v4796
    %v4798 = vshll.u32 2102212464, %v4786
    %v4799 = vshrl.u32 920167782, %v4787
    %v4800 = vor.u32 %v4798, %v4799
    %v4801 = vshll.u32 920167782, %v4786
    %v4802 = vshrl.u32 1326507024, %v4787
    %v4803 = vor.u32 %v4801, %v4802
    %vm4804 = vcmp.lt.s32.totalorder %v4785, 1
    %vm4805 = vcmp.lt.s32.totalorder %v4785, 2
    %vm4806 = vcmp.lt.s32.totalorder %v4785, 3
    %vm4807 = vcmp.lt.s32.totalorder %v4785, 4
    %v4808 = vsel %vm4804, %v4788, %v4791
    %v4809 = vsel %vm4807, %v4797, 2102212464
    %v4810 = vsel %vm4806, %v4794, %v4809
    %v4811 = vsel %vm4805, %v4808, %v4810
    %v4812 = vsel %vm4804, %v4791, %v4794
    %v4813 = vsel %vm4807, %v4800, 920167782
    %v4814 = vsel %vm4806, %v4797, %v4813
    %v4815 = vsel %vm4805, %v4812, %v4814
    %v4816 = vsel %vm4804, %v4794, %v4797
    %v4817 = vsel %vm4807, %v4803, 1326507024
    %v4818 = vsel %vm4806, %v4800, %v4817
    %v4819 = vsel %vm4805, %v4816, %v4818
    %v4820 = vshll.u32 %v4780, 8
    %v4821 = vand.u32 %v4820, 65535
    %v4822 = vshrl.u32 %v4820, 16
    %v4823 = vand.u32 %v4819, 65535
    %v4824 = vshrl.u32 %v4819, 16
    %v4825 = vmul.u32 %v4821, %v4823
    %v4826 = vmul.u32 %v4821, %v4824
    %v4827 = vmul.u32 %v4822, %v4823
    %v4828 = vmul.u32 %v4822, %v4824
    %v4829 = vshll.u32 %v4826, 16
    %v4830 = vshrl.u32 %v4826, 16
    %v4831 = vshll.u32 %v4827, 16
    %v4832 = vshrl.u32 %v4827, 16
    %vm4833 = vc.u32 %v4825, %v4829
    %v4834 = vsel %vm4833, 1, 0
    %v4835 = vadd.s32 %v4825, %v4829
    %v4836 = vadd.s32 %v4828, %v4834
    %vm4837 = vc.u32 %v4835, %v4831
    %v4838 = vsel %vm4837, 1, 0
    %v4839 = vadd.s32 %v4835, %v4831
    %v4840 = vadd.s32 %v4836, %v4838
    %v4841 = vadd.s32 %v4840, %v4830
    %v4842 = vadd.s32 %v4841, %v4832
    %v4843 = vand.u32 %v4820, 65535
    %v4844 = vshrl.u32 %v4820, 16
    %v4845 = vand.u32 %v4815, 65535
    %v4846 = vshrl.u32 %v4815, 16
    %v4847 = vmul.u32 %v4843, %v4845
    %v4848 = vmul.u32 %v4843, %v4846
    %v4849 = vmul.u32 %v4844, %v4845
    %v4850 = vmul.u32 %v4844, %v4846
    %v4851 = vshll.u32 %v4848, 16
    %v4852 = vshrl.u32 %v4848, 16
    %v4853 = vshll.u32 %v4849, 16
    %v4854 = vshrl.u32 %v4849, 16
    %vm4855 = vc.u32 %v4847, %v4851
    %v4856 = vsel %vm4855, 1, 0
    %v4857 = vadd.s32 %v4847, %v4851
    %v4858 = vadd.s32 %v4850, %v4856
    %vm4859 = vc.u32 %v4857, %v4853
    %v4860 = vsel %vm4859, 1, 0
    %v4861 = vadd.s32 %v4857, %v4853
    %v4862 = vadd.s32 %v4858, %v4860
    %v4863 = vadd.s32 %v4862, %v4852
    %v4864 = vadd.s32 %v4863, %v4854
    %v4865 = vmul.u32 %v4820, %v4811
    %v4866 = vadd.s32 %v4842, %v4861
    %vm4867 = vc.u32 %v4842, %v4861
    %v4868 = vadd.s32 %v4864, 1
    %v4869 = vsel %vm4867, %v4868, %v4864
    %v4870 = vadd.s32 %v4865, %v4869
    %v4871 = vadd.s32 %v4870, 536870912
    %v4872 = vshrl.u32 %v4871, 30
    %v4873 = vshll.u32 %v4872, 30
    %v4874 = vsub.s32 %v4870, %v4873
    %vm4875 = vcmp.lt.s32.totalorder %v4874, 0
    %v4876 = vsub.s32 0, %v4874
    %v4877 = vsel %vm4875, %v4876, %v4874
    %v4878 = vclz %v4877
    %v4879 = vsub.s32 %v4878, 2
    %vm4880 = vcmp.gt.s32.totalorder 0, %v4879
    %v4881 = vsel %vm4880, 0, %v4879
    %v4882 = vsub.s32 32, %v4881
    %v4883 = vshll.u32 %v4874, %v4881
    %v4884 = vshrl.u32 %v4866, %v4882
    %v4885 = vor.u32 %v4883, %v4884
    %v4886 = vsub.s32 4294967266, %v4881
    %v4887 = vadd.s32 %v4886, 127
    %v4888 = vshll.u32 %v4887, 23
    %v4889 = vor.u32 4788187, %v4888
    %v4890 = vand.u32 2147483647, %v4889
    %v4892 = vcvt.s32.f32 %v4885
    %v4893 = vmul.f32 %v4892, %v4890
    %v4894 = vxor.u32 %v4893, 2147483648
    %v4895 = vsel %vm4774, %v4894, %v4893
    %v4896 = vsub.s32 4, %v4872
    %v4897 = vsel %vm4774, %v4896, %v4872
    %v4898 = vsel %vm4773, %v428, %v4895
    %v4899 = vsel %vm4773, 0, %v4897
    %v4900 = vmul.f32 %v4898, %v4898
    %v4901 = vmul.f32 %v4900, -0.001358992
    %v4902 = vadd.f32 %v4901, 0.041655596
    %v4903 = vmul.f32 %v4900, %v4902
    %v4904 = vadd.f32 %v4903, -0.4999988
    %v4905 = vmul.f32 %v4900, %v4904
    %v4906 = vadd.f32 1.0, %v4905
    %v4907 = vmul.f32 %v4898, %v4898
    %v4908 = vmul.f32 %v4907, -0.00019511016
    %v4909 = vadd.f32 %v4908, 0.008332121
    %v4910 = vmul.f32 %v4907, %v4909
    %v4911 = vadd.f32 %v4910, -0.16666654
    %v4912 = vmul.f32 %v4907, %v4911
    %v4913 = vadd.f32 %v4912, 1.0
    %v4914 = vmul.f32 %v4913, %v4898
    %vm4915 = vweird.f32 %v428
    %v4916 = vadd.s32 %v4899, 3
    %v4917 = vand.u32 %v4916, 3
    %vm4918 = vcmp.lt.s32.totalorder %v4917, 2
    %vm4919 = vcmp.eq.s32.totalorder %v4917, 0
    %v4920 = vxor.u32 %v4914, 2147483648
    %v4921 = vsel %vm4919, %v4906, %v4920
    %vm4922 = vcmp.eq.s32.totalorder %v4917, 2
    %v4923 = vxor.u32 %v4906, 2147483648
    %v4924 = vsel %vm4922, %v4923, %v4914
    %v4925 = vsel %vm4918, %v4921, %v4924
    %v4926 = vsel %vm4915, nan, %v4925
    %v4927 = vand.u32 2147483647, %v429
    %vm4928 = vcmp.le.f32.partialorder %v4927, 0.7853982
    %vm4929 = vcmp.lt.s32.totalorder %v429, 0
    %v4930 = vand.u32 %v429, 2139095040
    %v4931 = vshrl.u32 %v4930, 23
    %v4932 = vsub.s32 %v4931, 127
    %v4933 = vand.u32 2147483647, %v429
    %v4934 = vand.u32 %v4933, 8388607
    %v4935 = vor.u32 %v4934, 8388608
    %v4936 = vsub.s32 0, %v4935
    %v4937 = vadd.s32 %v4932, 1
    %vm4938 = vcmp.gt.s32.totalorder %v4937, 0
    %v4939 = vsel %vm4938, %v4937, 0
    %v4940 = vshrl.u32 %v4939, 5
    %v4941 = vand.u32 %v4939, 31
    %v4942 = vsub.s32 32, %v4941
    %v4943 = vshrl.u32 683565275, %v4942
    %v4944 = vshll.u32 683565275, %v4941
    %v4945 = vshrl.u32 2475754826, %v4942
    %v4946 = vor.u32 %v4944, %v4945
    %v4947 = vshll.u32 2475754826, %v4941
    %v4948 = vshrl.u32 2131351028, %v4942
    %v4949 = vor.u32 %v4947, %v4948
    %v4950 = vshll.u32 2131351028, %v4941
    %v4951 = vshrl.u32 2102212464, %v4942
    %v4952 = vor.u32 %v4950, %v4951
    %v4953 = vshll.u32 2102212464, %v4941
    %v4954 = vshrl.u32 920167782, %v4942
    %v4955 = vor.u32 %v4953, %v4954
    %v4956 = vshll.u32 920167782, %v4941
    %v4957 = vshrl.u32 1326507024, %v4942
    %v4958 = vor.u32 %v4956, %v4957
    %vm4959 = vcmp.lt.s32.totalorder %v4940, 1
    %vm4960 = vcmp.lt.s32.totalorder %v4940, 2
    %vm4961 = vcmp.lt.s32.totalorder %v4940, 3
    %vm4962 = vcmp.lt.s32.totalorder %v4940, 4
    %v4963 = vsel %vm4959, %v4943, %v4946
    %v4964 = vsel %vm4962, %v4952, 2102212464
    %v4965 = vsel %vm4961, %v4949, %v4964
    %v4966 = vsel %vm4960, %v4963, %v4965
    %v4967 = vsel %vm4959, %v4946, %v4949
    %v4968 = vsel %vm4962, %v4955, 920167782
    %v4969 = vsel %vm4961, %v4952, %v4968
    %v4970 = vsel %vm4960, %v4967, %v4969
    %v4971 = vsel %vm4959, %v4949, %v4952
    %v4972 = vsel %vm4962, %v4958, 1326507024
    %v4973 = vsel %vm4961, %v4955, %v4972
    %v4974 = vsel %vm4960, %v4971, %v4973
    %v4975 = vshll.u32 %v4935, 8
    %v4976 = vand.u32 %v4975, 65535
    %v4977 = vshrl.u32 %v4975, 16
    %v4978 = vand.u32 %v4974, 65535
    %v4979 = vshrl.u32 %v4974, 16
    %v4980 = vmul.u32 %v4976, %v4978
    %v4981 = vmul.u32 %v4976, %v4979
    %v4982 = vmul.u32 %v4977, %v4978
    %v4983 = vmul.u32 %v4977, %v4979
    %v4984 = vshll.u32 %v4981, 16
    %v4985 = vshrl.u32 %v4981, 16
    %v4986 = vshll.u32 %v4982, 16
    %v4987 = vshrl.u32 %v4982, 16
    %vm4988 = vc.u32 %v4980, %v4984
    %v4989 = vsel %vm4988, 1, 0
    %v4990 = vadd.s32 %v4980, %v4984
    %v4991 = vadd.s32 %v4983, %v4989
    %vm4992 = vc.u32 %v4990, %v4986
    %v4993 = vsel %vm4992, 1, 0
    %v4994 = vadd.s32 %v4990, %v4986
    %v4995 = vadd.s32 %v4991, %v4993
    %v4996 = vadd.s32 %v4995, %v4985
    %v4997 = vadd.s32 %v4996, %v4987
    %v4998 = vand.u32 %v4975, 65535
    %v4999 = vshrl.u32 %v4975, 16
    %v5000 = vand.u32 %v4970, 65535
    %v5001 = vshrl.u32 %v4970, 16
    %v5002 = vmul.u32 %v4998, %v5000
    %v5003 = vmul.u32 %v4998, %v5001
    %v5004 = vmul.u32 %v4999, %v5000
    %v5005 = vmul.u32 %v4999, %v5001
    %v5006 = vshll.u32 %v5003, 16
    %v5007 = vshrl.u32 %v5003, 16
    %v5008 = vshll.u32 %v5004, 16
    %v5009 = vshrl.u32 %v5004, 16
    %vm5010 = vc.u32 %v5002, %v5006
    %v5011 = vsel %vm5010, 1, 0
    %v5012 = vadd.s32 %v5002, %v5006
    %v5013 = vadd.s32 %v5005, %v5011
    %vm5014 = vc.u32 %v5012, %v5008
    %v5015 = vsel %vm5014, 1, 0
    %v5016 = vadd.s32 %v5012, %v5008
    %v5017 = vadd.s32 %v5013, %v5015
    %v5018 = vadd.s32 %v5017, %v5007
    %v5019 = vadd.s32 %v5018, %v5009
    %v5020 = vmul.u32 %v4975, %v4966
    %v5021 = vadd.s32 %v4997, %v5016
    %vm5022 = vc.u32 %v4997, %v5016
    %v5023 = vadd.s32 %v5019, 1
    %v5024 = vsel %vm5022, %v5023, %v5019
    %v5025 = vadd.s32 %v5020, %v5024
    %v5026 = vadd.s32 %v5025, 536870912
    %v5027 = vshrl.u32 %v5026, 30
    %v5028 = vshll.u32 %v5027, 30
    %v5029 = vsub.s32 %v5025, %v5028
    %vm5030 = vcmp.lt.s32.totalorder %v5029, 0
    %v5031 = vsub.s32 0, %v5029
    %v5032 = vsel %vm5030, %v5031, %v5029
    %v5033 = vclz %v5032
    %v5034 = vsub.s32 %v5033, 2
    %vm5035 = vcmp.gt.s32.totalorder 0, %v5034
    %v5036 = vsel %vm5035, 0, %v5034
    %v5037 = vsub.s32 32, %v5036
    %v5038 = vshll.u32 %v5029, %v5036
    %v5039 = vshrl.u32 %v5021, %v5037
    %v5040 = vor.u32 %v5038, %v5039
    %v5041 = vsub.s32 4294967266, %v5036
    %v5042 = vadd.s32 %v5041, 127
    %v5043 = vshll.u32 %v5042, 23
    %v5044 = vor.u32 4788187, %v5043
    %v5045 = vand.u32 2147483647, %v5044
    %v5047 = vcvt.s32.f32 %v5040
    %v5048 = vmul.f32 %v5047, %v5045
    %v5049 = vxor.u32 %v5048, 2147483648
    %v5050 = vsel %vm4929, %v5049, %v5048
    %v5051 = vsub.s32 4, %v5027
    %v5052 = vsel %vm4929, %v5051, %v5027
    %v5053 = vsel %vm4928, %v429, %v5050
    %v5054 = vsel %vm4928, 0, %v5052
    %v5055 = vmul.f32 %v5053, %v5053
    %v5056 = vmul.f32 %v5055, -0.001358992
    %v5057 = vadd.f32 %v5056, 0.041655596
    %v5058 = vmul.f32 %v5055, %v5057
    %v5059 = vadd.f32 %v5058, -0.4999988
    %v5060 = vmul.f32 %v5055, %v5059
    %v5061 = vadd.f32 1.0, %v5060
    %v5062 = vmul.f32 %v5053, %v5053
    %v5063 = vmul.f32 %v5062, -0.00019511016
    %v5064 = vadd.f32 %v5063, 0.008332121
    %v5065 = vmul.f32 %v5062, %v5064
    %v5066 = vadd.f32 %v5065, -0.16666654
    %v5067 = vmul.f32 %v5062, %v5066
    %v5068 = vadd.f32 %v5067, 1.0
    %v5069 = vmul.f32 %v5068, %v5053
    %vm5070 = vweird.f32 %v429
    %v5071 = vadd.s32 %v5054, 3
    %v5072 = vand.u32 %v5071, 3
    %vm5073 = vcmp.lt.s32.totalorder %v5072, 2
    %vm5074 = vcmp.eq.s32.totalorder %v5072, 0
    %v5075 = vxor.u32 %v5069, 2147483648
    %v5076 = vsel %vm5074, %v5061, %v5075
    %vm5077 = vcmp.eq.s32.totalorder %v5072, 2
    %v5078 = vxor.u32 %v5061, 2147483648
    %v5079 = vsel %vm5077, %v5078, %v5069
    %v5080 = vsel %vm5073, %v5076, %v5079
    %v5081 = vsel %vm5070, nan, %v5080
    %v5082 = vand.u32 2147483647, %v430
    %vm5083 = vcmp.le.f32.partialorder %v5082, 0.7853982
    %vm5084 = vcmp.lt.s32.totalorder %v430, 0
    %v5085 = vand.u32 %v430, 2139095040
    %v5086 = vshrl.u32 %v5085, 23
    %v5087 = vsub.s32 %v5086, 127
    %v5088 = vand.u32 2147483647, %v430
    %v5089 = vand.u32 %v5088, 8388607
    %v5090 = vor.u32 %v5089, 8388608
    %v5091 = vsub.s32 0, %v5090
    %v5092 = vadd.s32 %v5087, 1
    %vm5093 = vcmp.gt.s32.totalorder %v5092, 0
    %v5094 = vsel %vm5093, %v5092, 0
    %v5095 = vshrl.u32 %v5094, 5
    %v5096 = vand.u32 %v5094, 31
    %v5097 = vsub.s32 32, %v5096
    %v5098 = vshrl.u32 683565275, %v5097
    %v5099 = vshll.u32 683565275, %v5096
    %v5100 = vshrl.u32 2475754826, %v5097
    %v5101 = vor.u32 %v5099, %v5100
    %v5102 = vshll.u32 2475754826, %v5096
    %v5103 = vshrl.u32 2131351028, %v5097
    %v5104 = vor.u32 %v5102, %v5103
    %v5105 = vshll.u32 2131351028, %v5096
    %v5106 = vshrl.u32 2102212464, %v5097
    %v5107 = vor.u32 %v5105, %v5106
    %v5108 = vshll.u32 2102212464, %v5096
    %v5109 = vshrl.u32 920167782, %v5097
    %v5110 = vor.u32 %v5108, %v5109
    %v5111 = vshll.u32 920167782, %v5096
    %v5112 = vshrl.u32 1326507024, %v5097
    %v5113 = vor.u32 %v5111, %v5112
    %vm5114 = vcmp.lt.s32.totalorder %v5095, 1
    %vm5115 = vcmp.lt.s32.totalorder %v5095, 2
    %vm5116 = vcmp.lt.s32.totalorder %v5095, 3
    %vm5117 = vcmp.lt.s32.totalorder %v5095, 4
    %v5118 = vsel %vm5114, %v5098, %v5101
    %v5119 = vsel %vm5117, %v5107, 2102212464
    %v5120 = vsel %vm5116, %v5104, %v5119
    %v5121 = vsel %vm5115, %v5118, %v5120
    %v5122 = vsel %vm5114, %v5101, %v5104
    %v5123 = vsel %vm5117, %v5110, 920167782
    %v5124 = vsel %vm5116, %v5107, %v5123
    %v5125 = vsel %vm5115, %v5122, %v5124
    %v5126 = vsel %vm5114, %v5104, %v5107
    %v5127 = vsel %vm5117, %v5113, 1326507024
    %v5128 = vsel %vm5116, %v5110, %v5127
    %v5129 = vsel %vm5115, %v5126, %v5128
    %v5130 = vshll.u32 %v5090, 8
    %v5131 = vand.u32 %v5130, 65535
    %v5132 = vshrl.u32 %v5130, 16
    %v5133 = vand.u32 %v5129, 65535
    %v5134 = vshrl.u32 %v5129, 16
    %v5135 = vmul.u32 %v5131, %v5133
    %v5136 = vmul.u32 %v5131, %v5134
    %v5137 = vmul.u32 %v5132, %v5133
    %v5138 = vmul.u32 %v5132, %v5134
    %v5139 = vshll.u32 %v5136, 16
    %v5140 = vshrl.u32 %v5136, 16
    %v5141 = vshll.u32 %v5137, 16
    %v5142 = vshrl.u32 %v5137, 16
    %vm5143 = vc.u32 %v5135, %v5139
    %v5144 = vsel %vm5143, 1, 0
    %v5145 = vadd.s32 %v5135, %v5139
    %v5146 = vadd.s32 %v5138, %v5144
    %vm5147 = vc.u32 %v5145, %v5141
    %v5148 = vsel %vm5147, 1, 0
    %v5149 = vadd.s32 %v5145, %v5141
    %v5150 = vadd.s32 %v5146, %v5148
    %v5151 = vadd.s32 %v5150, %v5140
    %v5152 = vadd.s32 %v5151, %v5142
    %v5153 = vand.u32 %v5130, 65535
    %v5154 = vshrl.u32 %v5130, 16
    %v5155 = vand.u32 %v5125, 65535
    %v5156 = vshrl.u32 %v5125, 16
    %v5157 = vmul.u32 %v5153, %v5155
    %v5158 = vmul.u32 %v5153, %v5156
    %v5159 = vmul.u32 %v5154, %v5155
    %v5160 = vmul.u32 %v5154, %v5156
    %v5161 = vshll.u32 %v5158, 16
    %v5162 = vshrl.u32 %v5158, 16
    %v5163 = vshll.u32 %v5159, 16
    %v5164 = vshrl.u32 %v5159, 16
    %vm5165 = vc.u32 %v5157, %v5161
    %v5166 = vsel %vm5165, 1, 0
    %v5167 = vadd.s32 %v5157, %v5161
    %v5168 = vadd.s32 %v5160, %v5166
    %vm5169 = vc.u32 %v5167, %v5163
    %v5170 = vsel %vm5169, 1, 0
    %v5171 = vadd.s32 %v5167, %v5163
    %v5172 = vadd.s32 %v5168, %v5170
    %v5173 = vadd.s32 %v5172, %v5162
    %v5174 = vadd.s32 %v5173, %v5164
    %v5175 = vmul.u32 %v5130, %v5121
    %v5176 = vadd.s32 %v5152, %v5171
    %vm5177 = vc.u32 %v5152, %v5171
    %v5178 = vadd.s32 %v5174, 1
    %v5179 = vsel %vm5177, %v5178, %v5174
    %v5180 = vadd.s32 %v5175, %v5179
    %v5181 = vadd.s32 %v5180, 536870912
    %v5182 = vshrl.u32 %v5181, 30
    %v5183 = vshll.u32 %v5182, 30
    %v5184 = vsub.s32 %v5180, %v5183
    %vm5185 = vcmp.lt.s32.totalorder %v5184, 0
    %v5186 = vsub.s32 0, %v5184
    %v5187 = vsel %vm5185, %v5186, %v5184
    %v5188 = vclz %v5187
    %v5189 = vsub.s32 %v5188, 2
    %vm5190 = vcmp.gt.s32.totalorder 0, %v5189
    %v5191 = vsel %vm5190, 0, %v5189
    %v5192 = vsub.s32 32, %v5191
    %v5193 = vshll.u32 %v5184, %v5191
    %v5194 = vshrl.u32 %v5176, %v5192
    %v5195 = vor.u32 %v5193, %v5194
    %v5196 = vsub.s32 4294967266, %v5191
    %v5197 = vadd.s32 %v5196, 127
    %v5198 = vshll.u32 %v5197, 23
    %v5199 = vor.u32 4788187, %v5198
    %v5200 = vand.u32 2147483647, %v5199
    %v5202 = vcvt.s32.f32 %v5195
    %v5203 = vmul.f32 %v5202, %v5200
    %v5204 = vxor.u32 %v5203, 2147483648
    %v5205 = vsel %vm5084, %v5204, %v5203
    %v5206 = vsub.s32 4, %v5182
    %v5207 = vsel %vm5084, %v5206, %v5182
    %v5208 = vsel %vm5083, %v430, %v5205
    %v5209 = vsel %vm5083, 0, %v5207
    %v5210 = vmul.f32 %v5208, %v5208
    %v5211 = vmul.f32 %v5210, -0.001358992
    %v5212 = vadd.f32 %v5211, 0.041655596
    %v5213 = vmul.f32 %v5210, %v5212
    %v5214 = vadd.f32 %v5213, -0.4999988
    %v5215 = vmul.f32 %v5210, %v5214
    %v5216 = vadd.f32 1.0, %v5215
    %v5217 = vmul.f32 %v5208, %v5208
    %v5218 = vmul.f32 %v5217, -0.00019511016
    %v5219 = vadd.f32 %v5218, 0.008332121
    %v5220 = vmul.f32 %v5217, %v5219
    %v5221 = vadd.f32 %v5220, -0.16666654
    %v5222 = vmul.f32 %v5217, %v5221
    %v5223 = vadd.f32 %v5222, 1.0
    %v5224 = vmul.f32 %v5223, %v5208
    %vm5225 = vweird.f32 %v430
    %v5226 = vadd.s32 %v5209, 3
    %v5227 = vand.u32 %v5226, 3
    %vm5228 = vcmp.lt.s32.totalorder %v5227, 2
    %vm5229 = vcmp.eq.s32.totalorder %v5227, 0
    %v5230 = vxor.u32 %v5224, 2147483648
    %v5231 = vsel %vm5229, %v5216, %v5230
    %vm5232 = vcmp.eq.s32.totalorder %v5227, 2
    %v5233 = vxor.u32 %v5216, 2147483648
    %v5234 = vsel %vm5232, %v5233, %v5224
    %v5235 = vsel %vm5228, %v5231, %v5234
    %v5236 = vsel %vm5225, nan, %v5235
    %v5237 = vand.u32 2147483647, %v431
    %vm5238 = vcmp.le.f32.partialorder %v5237, 0.7853982
    %vm5239 = vcmp.lt.s32.totalorder %v431, 0
    %v5240 = vand.u32 %v431, 2139095040
    %v5241 = vshrl.u32 %v5240, 23
    %v5242 = vsub.s32 %v5241, 127
    %v5243 = vand.u32 2147483647, %v431
    %v5244 = vand.u32 %v5243, 8388607
    %v5245 = vor.u32 %v5244, 8388608
    %v5246 = vsub.s32 0, %v5245
    %v5247 = vadd.s32 %v5242, 1
    %vm5248 = vcmp.gt.s32.totalorder %v5247, 0
    %v5249 = vsel %vm5248, %v5247, 0
    %v5250 = vshrl.u32 %v5249, 5
    %v5251 = vand.u32 %v5249, 31
    %v5252 = vsub.s32 32, %v5251
    %v5253 = vshrl.u32 683565275, %v5252
    %v5254 = vshll.u32 683565275, %v5251
    %v5255 = vshrl.u32 2475754826, %v5252
    %v5256 = vor.u32 %v5254, %v5255
    %v5257 = vshll.u32 2475754826, %v5251
    %v5258 = vshrl.u32 2131351028, %v5252
    %v5259 = vor.u32 %v5257, %v5258
    %v5260 = vshll.u32 2131351028, %v5251
    %v5261 = vshrl.u32 2102212464, %v5252
    %v5262 = vor.u32 %v5260, %v5261
    %v5263 = vshll.u32 2102212464, %v5251
    %v5264 = vshrl.u32 920167782, %v5252
    %v5265 = vor.u32 %v5263, %v5264
    %v5266 = vshll.u32 920167782, %v5251
    %v5267 = vshrl.u32 1326507024, %v5252
    %v5268 = vor.u32 %v5266, %v5267
    %vm5269 = vcmp.lt.s32.totalorder %v5250, 1
    %vm5270 = vcmp.lt.s32.totalorder %v5250, 2
    %vm5271 = vcmp.lt.s32.totalorder %v5250, 3
    %vm5272 = vcmp.lt.s32.totalorder %v5250, 4
    %v5273 = vsel %vm5269, %v5253, %v5256
    %v5274 = vsel %vm5272, %v5262, 2102212464
    %v5275 = vsel %vm5271, %v5259, %v5274
    %v5276 = vsel %vm5270, %v5273, %v5275
    %v5277 = vsel %vm5269, %v5256, %v5259
    %v5278 = vsel %vm5272, %v5265, 920167782
    %v5279 = vsel %vm5271, %v5262, %v5278
    %v5280 = vsel %vm5270, %v5277, %v5279
    %v5281 = vsel %vm5269, %v5259, %v5262
    %v5282 = vsel %vm5272, %v5268, 1326507024
    %v5283 = vsel %vm5271, %v5265, %v5282
    %v5284 = vsel %vm5270, %v5281, %v5283
    %v5285 = vshll.u32 %v5245, 8
    %v5286 = vand.u32 %v5285, 65535
    %v5287 = vshrl.u32 %v5285, 16
    %v5288 = vand.u32 %v5284, 65535
    %v5289 = vshrl.u32 %v5284, 16
    %v5290 = vmul.u32 %v5286, %v5288
    %v5291 = vmul.u32 %v5286, %v5289
    %v5292 = vmul.u32 %v5287, %v5288
    %v5293 = vmul.u32 %v5287, %v5289
    %v5294 = vshll.u32 %v5291, 16
    %v5295 = vshrl.u32 %v5291, 16
    %v5296 = vshll.u32 %v5292, 16
    %v5297 = vshrl.u32 %v5292, 16
    %vm5298 = vc.u32 %v5290, %v5294
    %v5299 = vsel %vm5298, 1, 0
    %v5300 = vadd.s32 %v5290, %v5294
    %v5301 = vadd.s32 %v5293, %v5299
    %vm5302 = vc.u32 %v5300, %v5296
    %v5303 = vsel %vm5302, 1, 0
    %v5304 = vadd.s32 %v5300, %v5296
    %v5305 = vadd.s32 %v5301, %v5303
    %v5306 = vadd.s32 %v5305, %v5295
    %v5307 = vadd.s32 %v5306, %v5297
    %v5308 = vand.u32 %v5285, 65535
    %v5309 = vshrl.u32 %v5285, 16
    %v5310 = vand.u32 %v5280, 65535
    %v5311 = vshrl.u32 %v5280, 16
    %v5312 = vmul.u32 %v5308, %v5310
    %v5313 = vmul.u32 %v5308, %v5311
    %v5314 = vmul.u32 %v5309, %v5310
    %v5315 = vmul.u32 %v5309, %v5311
    %v5316 = vshll.u32 %v5313, 16
    %v5317 = vshrl.u32 %v5313, 16
    %v5318 = vshll.u32 %v5314, 16
    %v5319 = vshrl.u32 %v5314, 16
    %vm5320 = vc.u32 %v5312, %v5316
    %v5321 = vsel %vm5320, 1, 0
    %v5322 = vadd.s32 %v5312, %v5316
    %v5323 = vadd.s32 %v5315, %v5321
    %vm5324 = vc.u32 %v5322, %v5318
    %v5325 = vsel %vm5324, 1, 0
    %v5326 = vadd.s32 %v5322, %v5318
    %v5327 = vadd.s32 %v5323, %v5325
    %v5328 = vadd.s32 %v5327, %v5317
    %v5329 = vadd.s32 %v5328, %v5319
    %v5330 = vmul.u32 %v5285, %v5276
    %v5331 = vadd.s32 %v5307, %v5326
    %vm5332 = vc.u32 %v5307, %v5326
    %v5333 = vadd.s32 %v5329, 1
    %v5334 = vsel %vm5332, %v5333, %v5329
    %v5335 = vadd.s32 %v5330, %v5334
    %v5336 = vadd.s32 %v5335, 536870912
    %v5337 = vshrl.u32 %v5336, 30
    %v5338 = vshll.u32 %v5337, 30
    %v5339 = vsub.s32 %v5335, %v5338
    %vm5340 = vcmp.lt.s32.totalorder %v5339, 0
    %v5341 = vsub.s32 0, %v5339
    %v5342 = vsel %vm5340, %v5341, %v5339
    %v5343 = vclz %v5342
    %v5344 = vsub.s32 %v5343, 2
    %vm5345 = vcmp.gt.s32.totalorder 0, %v5344
    %v5346 = vsel %vm5345, 0, %v5344
    %v5347 = vsub.s32 32, %v5346
    %v5348 = vshll.u32 %v5339, %v5346
    %v5349 = vshrl.u32 %v5331, %v5347
    %v5350 = vor.u32 %v5348, %v5349
    %v5351 = vsub.s32 4294967266, %v5346
    %v5352 = vadd.s32 %v5351, 127
    %v5353 = vshll.u32 %v5352, 23
    %v5354 = vor.u32 4788187, %v5353
    %v5355 = vand.u32 2147483647, %v5354
    %v5357 = vcvt.s32.f32 %v5350
    %v5358 = vmul.f32 %v5357, %v5355
    %v5359 = vxor.u32 %v5358, 2147483648
    %v5360 = vsel %vm5239, %v5359, %v5358
    %v5361 = vsub.s32 4, %v5337
    %v5362 = vsel %vm5239, %v5361, %v5337
    %v5363 = vsel %vm5238, %v431, %v5360
    %v5364 = vsel %vm5238, 0, %v5362
    %v5365 = vmul.f32 %v5363, %v5363
    %v5366 = vmul.f32 %v5365, -0.001358992
    %v5367 = vadd.f32 %v5366, 0.041655596
    %v5368 = vmul.f32 %v5365, %v5367
    %v5369 = vadd.f32 %v5368, -0.4999988
    %v5370 = vmul.f32 %v5365, %v5369
    %v5371 = vadd.f32 1.0, %v5370
    %v5372 = vmul.f32 %v5363, %v5363
    %v5373 = vmul.f32 %v5372, -0.00019511016
    %v5374 = vadd.f32 %v5373, 0.008332121
    %v5375 = vmul.f32 %v5372, %v5374
    %v5376 = vadd.f32 %v5375, -0.16666654
    %v5377 = vmul.f32 %v5372, %v5376
    %v5378 = vadd.f32 %v5377, 1.0
    %v5379 = vmul.f32 %v5378, %v5363
    %vm5380 = vweird.f32 %v431
    %v5381 = vadd.s32 %v5364, 3
    %v5382 = vand.u32 %v5381, 3
    %vm5383 = vcmp.lt.s32.totalorder %v5382, 2
    %vm5384 = vcmp.eq.s32.totalorder %v5382, 0
    %v5385 = vxor.u32 %v5379, 2147483648
    %v5386 = vsel %vm5384, %v5371, %v5385
    %vm5387 = vcmp.eq.s32.totalorder %v5382, 2
    %v5388 = vxor.u32 %v5371, 2147483648
    %v5389 = vsel %vm5387, %v5388, %v5379
    %v5390 = vsel %vm5383, %v5386, %v5389
    %v5391 = vsel %vm5380, nan, %v5390
    %v5392 = vpack.c.bf16 %v896, %v586
    %v5393 = vpack.c.bf16 %v1051, %v741
    %v5394 = vpack.c.bf16 %v1516, %v1206
    %v5395 = vpack.c.bf16 %v1671, %v1361
    %v5396 = vpack.c.bf16 %v2136, %v1826
    %v5397 = vpack.c.bf16 %v2291, %v1981
    %v5398 = vpack.c.bf16 %v2756, %v2446
    %v5399 = vpack.c.bf16 %v2911, %v2601
    %v5400 = vpack.c.bf16 %v3376, %v3066
    %v5401 = vpack.c.bf16 %v3531, %v3221
    %v5402 = vpack.c.bf16 %v3996, %v3686
    %v5403 = vpack.c.bf16 %v4151, %v3841
    %v5404 = vpack.c.bf16 %v4616, %v4306
    %v5405 = vpack.c.bf16 %v4771, %v4461
    %v5406 = vpack.c.bf16 %v5236, %v4926
    %v5407 = vpack.c.bf16 %v5391, %v5081
    %v5408 = vld [vmem:[%s3] sm:$0xf]
    %v5409 = vld [vmem:[%s3 + $0x4] sm:$0xf]
    %v5410 = vld [vmem:[%s3 + $0x8] sm:$0xf]
    %v5411 = vld [vmem:[%s3 + $0xc] sm:$0xf]
    %v5412 = vld [vmem:[%s3 + $0x10] sm:$0xf]
    %v5413 = vld [vmem:[%s3 + $0x14] sm:$0xf]
    %v5414 = vld [vmem:[%s3 + $0x18] sm:$0xf]
    %v5415 = vld [vmem:[%s3 + $0x1c] sm:$0xf]
    %v5416 = vld [vmem:[%s3 + $0x20] sm:$0xf]
    %v5417 = vld [vmem:[%s3 + $0x24] sm:$0xf]
    %v5418 = vld [vmem:[%s3 + $0x28] sm:$0xf]
    %v5419 = vld [vmem:[%s3 + $0x2c] sm:$0xf]
    %v5420 = vld [vmem:[%s3 + $0x30] sm:$0xf]
    %v5421 = vld [vmem:[%s3 + $0x34] sm:$0xf]
    %v5422 = vld [vmem:[%s3 + $0x38] sm:$0xf]
    %v5423 = vld [vmem:[%s3 + $0x3c] sm:$0xf]
    %v5424 = vld [vmem:[%s3 + $0x40] sm:$0xf]
    %v5442 = vunpack.c.l.b16 %v5408
    %v5443 = vunpack.c.l.b16 %v5409
    %v5444 = vunpack.c.l.b16 %v5410
    %v5445 = vunpack.c.l.b16 %v5411
    %v5446 = vunpack.c.l.b16 %v5412
    %v5447 = vunpack.c.l.b16 %v5413
    %v5448 = vunpack.c.l.b16 %v5414
    %v5449 = vunpack.c.l.b16 %v5415
    %v5450 = vunpack.c.l.b16 %v5416
    %v5451 = vunpack.c.l.b16 %v5417
    %v5452 = vunpack.c.l.b16 %v5418
    %v5453 = vunpack.c.l.b16 %v5419
    %v5454 = vunpack.c.l.b16 %v5420
    %v5455 = vunpack.c.l.b16 %v5421
    %v5456 = vunpack.c.l.b16 %v5422
    %v5457 = vunpack.c.l.b16 %v5423
    %v5458 = vunpack.c.l.b16 %v5424
    %v5459 = vpack.c.b16 %v5443, %v5442
    %v5460 = vpack.c.b16 %v5445, %v5444
    %v5461 = vpack.c.b16 %v5447, %v5446
    %v5462 = vpack.c.b16 %v5449, %v5448
    %v5463 = vpack.c.b16 %v5451, %v5450
    %v5464 = vpack.c.b16 %v5453, %v5452
    %v5465 = vpack.c.b16 %v5455, %v5454
    %v5466 = vpack.c.b16 %v5457, %v5456
    %v5467 = vpack.c.b16 %v5458, %v5458
    %5477 = vmatpush.bf16.msra.mxu0 %v5406
    %5478 = vmatpush.bf16.msra.mxu0 %v5404
    %5479 = vmatpush.bf16.msra.mxu0 %v5402
    %5480 = vmatpush.bf16.msra.mxu0 %v5400
    %5481 = vmatpush.bf16.msra.mxu0 %v5398
    %5482 = vmatpush.bf16.msra.mxu0 %v5396
    %5483 = vmatpush.bf16.msra.mxu0 %v5394
    %5484 = vmatpush.bf16.msra.mxu0 %v5392
    %5485 = vmatmul.bf16.gmra.mxu0 %v5459
    %v5486 = vpop.f32.mrf.mxu0
    %v5487 = vadd.f32 0.0, %v5486
    %v5488 = vpop.f32.mrf.mxu0
    %v5489 = vadd.f32 0.0, %v5488
    %5490 = vmatmul.bf16.gmra.mxu0 %v5460
    %v5491 = vpop.f32.mrf.mxu0
    %v5492 = vadd.f32 0.0, %v5491
    %v5493 = vpop.f32.mrf.mxu0
    %v5494 = vadd.f32 0.0, %v5493
    %5495 = vmatmul.bf16.gmra.mxu0 %v5461
    %v5496 = vpop.f32.mrf.mxu0
    %v5497 = vadd.f32 0.0, %v5496
    %v5498 = vpop.f32.mrf.mxu0
    %v5499 = vadd.f32 0.0, %v5498
    %5500 = vmatmul.bf16.gmra.mxu0 %v5462
    %v5501 = vpop.f32.mrf.mxu0
    %v5502 = vadd.f32 0.0, %v5501
    %v5503 = vpop.f32.mrf.mxu0
    %v5504 = vadd.f32 0.0, %v5503
    %5505 = vmatmul.bf16.gmra.mxu0 %v5463
    %v5506 = vpop.f32.mrf.mxu0
    %v5507 = vadd.f32 0.0, %v5506
    %v5508 = vpop.f32.mrf.mxu0
    %v5509 = vadd.f32 0.0, %v5508
    %5510 = vmatmul.bf16.gmra.mxu0 %v5464
    %v5511 = vpop.f32.mrf.mxu0
    %v5512 = vadd.f32 0.0, %v5511
    %v5513 = vpop.f32.mrf.mxu0
    %v5514 = vadd.f32 0.0, %v5513
    %5515 = vmatmul.bf16.gmra.mxu0 %v5465
    %v5516 = vpop.f32.mrf.mxu0
    %v5517 = vadd.f32 0.0, %v5516
    %v5518 = vpop.f32.mrf.mxu0
    %v5519 = vadd.f32 0.0, %v5518
    %5520 = vmatmul.bf16.gmra.mxu0 %v5466
    %v5521 = vpop.f32.mrf.mxu0
    %v5522 = vadd.f32 0.0, %v5521
    %v5523 = vpop.f32.mrf.mxu0
    %v5524 = vadd.f32 0.0, %v5523
    %5525 = vmatmul.bf16.gmra.mxu0 %v5467
    %v5526 = vpop.f32.mrf.mxu0
    %v5527 = vadd.f32 0.0, %v5526
    %v5528 = vpop.f32.mrf.mxu0
    %5529 = vdwg.mxu0
    %5530 = vmatpush.bf16.msra.mxu0 %v5407
    %5531 = vmatpush.bf16.msra.mxu0 %v5405
    %5532 = vmatpush.bf16.msra.mxu0 %v5403
    %5533 = vmatpush.bf16.msra.mxu0 %v5401
    %5534 = vmatpush.bf16.msra.mxu0 %v5399
    %5535 = vmatpush.bf16.msra.mxu0 %v5397
    %5536 = vmatpush.bf16.msra.mxu0 %v5395
    %5537 = vmatpush.bf16.msra.mxu0 %v5393
    %5538 = vmatmul.bf16.gmra.mxu0 %v5459
    %v5539 = vpop.f32.mrf.mxu0
    %v5540 = vadd.f32 0.0, %v5539
    %v5541 = vpop.f32.mrf.mxu0
    %v5542 = vadd.f32 0.0, %v5541
    %5543 = vmatmul.bf16.gmra.mxu0 %v5460
    %v5544 = vpop.f32.mrf.mxu0
    %v5545 = vadd.f32 0.0, %v5544
    %v5546 = vpop.f32.mrf.mxu0
    %v5547 = vadd.f32 0.0, %v5546
    %5548 = vmatmul.bf16.gmra.mxu0 %v5461
    %v5549 = vpop.f32.mrf.mxu0
    %v5550 = vadd.f32 0.0, %v5549
    %v5551 = vpop.f32.mrf.mxu0
    %v5552 = vadd.f32 0.0, %v5551
    %5553 = vmatmul.bf16.gmra.mxu0 %v5462
    %v5554 = vpop.f32.mrf.mxu0
    %v5555 = vadd.f32 0.0, %v5554
    %v5556 = vpop.f32.mrf.mxu0
    %v5557 = vadd.f32 0.0, %v5556
    %5558 = vmatmul.bf16.gmra.mxu0 %v5463
    %v5559 = vpop.f32.mrf.mxu0
    %v5560 = vadd.f32 0.0, %v5559
    %v5561 = vpop.f32.mrf.mxu0
    %v5562 = vadd.f32 0.0, %v5561
    %5563 = vmatmul.bf16.gmra.mxu0 %v5464
    %v5564 = vpop.f32.mrf.mxu0
    %v5565 = vadd.f32 0.0, %v5564
    %v5566 = vpop.f32.mrf.mxu0
    %v5567 = vadd.f32 0.0, %v5566
    %5568 = vmatmul.bf16.gmra.mxu0 %v5465
    %v5569 = vpop.f32.mrf.mxu0
    %v5570 = vadd.f32 0.0, %v5569
    %v5571 = vpop.f32.mrf.mxu0
    %v5572 = vadd.f32 0.0, %v5571
    %5573 = vmatmul.bf16.gmra.mxu0 %v5466
    %v5574 = vpop.f32.mrf.mxu0
    %v5575 = vadd.f32 0.0, %v5574
    %v5576 = vpop.f32.mrf.mxu0
    %v5577 = vadd.f32 0.0, %v5576
    %5578 = vmatmul.bf16.gmra.mxu0 %v5467
    %v5579 = vpop.f32.mrf.mxu0
    %v5580 = vadd.f32 0.0, %v5579
    %v5581 = vpop.f32.mrf.mxu0
    %5582 = vdwg.mxu0
    %v5583 = vld [vmem:[%s4] sm:$0xff]
    %v5584 = vld [vmem:[%s4 + $0x8] sm:$0xff]
    %v5585 = vld [vmem:[%s4 + $0x10] sm:$0xff]
    %v5586 = vld [vmem:[%s4 + $0x18] sm:$0xff]
    %v5587 = vld [vmem:[%s4 + $0x20] sm:$0xff]
    %v5588 = vld [vmem:[%s4 + $0x28] sm:$0xff]
    %v5589 = vld [vmem:[%s4 + $0x30] sm:$0xff]
    %v5590 = vld [vmem:[%s4 + $0x38] sm:$0xff]
    %v5591 = vld [vmem:[%s4 + $0x40] sm:$0xff]
    %v5592 = vld [vmem:[%s4 + $0x48] sm:$0xff]
    %v5593 = vld [vmem:[%s4 + $0x50] sm:$0xff]
    %v5594 = vld [vmem:[%s4 + $0x58] sm:$0xff]
    %v5595 = vld [vmem:[%s4 + $0x60] sm:$0xff]
    %v5596 = vld [vmem:[%s4 + $0x68] sm:$0xff]
    %v5597 = vld [vmem:[%s4 + $0x70] sm:$0xff]
    %v5598 = vld [vmem:[%s4 + $0x78] sm:$0xff]
    %5600 = vset.pattern.permute.xlu0 0
    %5601 = vperm.xlu0 %5600, %v5583
    %v5602 = vpop.permute.xlu0 %5601
    %5605 = vset.pattern.permute.xlu0 0
    %5606 = vperm.xlu0 %5605, %v5584
    %v5607 = vpop.permute.xlu0 %5606
    %5610 = vset.pattern.permute.xlu0 0
    %5611 = vperm.xlu0 %5610, %v5585
    %v5612 = vpop.permute.xlu0 %5611
    %5615 = vset.pattern.permute.xlu0 0
    %5616 = vperm.xlu0 %5615, %v5586
    %v5617 = vpop.permute.xlu0 %5616
    %5620 = vset.pattern.permute.xlu0 0
    %5621 = vperm.xlu0 %5620, %v5587
    %v5622 = vpop.permute.xlu0 %5621
    %5625 = vset.pattern.permute.xlu0 0
    %5626 = vperm.xlu0 %5625, %v5588
    %v5627 = vpop.permute.xlu0 %5626
    %5630 = vset.pattern.permute.xlu0 0
    %5631 = vperm.xlu0 %5630, %v5589
    %v5632 = vpop.permute.xlu0 %5631
    %5635 = vset.pattern.permute.xlu0 0
    %5636 = vperm.xlu0 %5635, %v5590
    %v5637 = vpop.permute.xlu0 %5636
    %5640 = vset.pattern.permute.xlu0 0
    %5641 = vperm.xlu0 %5640, %v5591
    %v5642 = vpop.permute.xlu0 %5641
    %5645 = vset.pattern.permute.xlu0 0
    %5646 = vperm.xlu0 %5645, %v5592
    %v5647 = vpop.permute.xlu0 %5646
    %5650 = vset.pattern.permute.xlu0 0
    %5651 = vperm.xlu0 %5650, %v5593
    %v5652 = vpop.permute.xlu0 %5651
    %5655 = vset.pattern.permute.xlu0 0
    %5656 = vperm.xlu0 %5655, %v5594
    %v5657 = vpop.permute.xlu0 %5656
    %5660 = vset.pattern.permute.xlu0 0
    %5661 = vperm.xlu0 %5660, %v5595
    %v5662 = vpop.permute.xlu0 %5661
    %5665 = vset.pattern.permute.xlu0 0
    %5666 = vperm.xlu0 %5665, %v5596
    %v5667 = vpop.permute.xlu0 %5666
    %5670 = vset.pattern.permute.xlu0 0
    %5671 = vperm.xlu0 %5670, %v5597
    %v5672 = vpop.permute.xlu0 %5671
    %5675 = vset.pattern.permute.xlu0 0
    %5676 = vperm.xlu0 %5675, %v5598
    %v5677 = vpop.permute.xlu0 %5676
    %v5679 = vadd.f32 %v5487, %v5602
    %v5680 = vadd.f32 %v5540, %v5602
    %v5681 = vadd.f32 %v5489, %v5607
    %v5682 = vadd.f32 %v5542, %v5607
    %v5683 = vadd.f32 %v5492, %v5612
    %v5684 = vadd.f32 %v5545, %v5612
    %v5685 = vadd.f32 %v5494, %v5617
    %v5686 = vadd.f32 %v5547, %v5617
    %v5687 = vadd.f32 %v5497, %v5622
    %v5688 = vadd.f32 %v5550, %v5622
    %v5689 = vadd.f32 %v5499, %v5627
    %v5690 = vadd.f32 %v5552, %v5627
    %v5691 = vadd.f32 %v5502, %v5632
    %v5692 = vadd.f32 %v5555, %v5632
    %v5693 = vadd.f32 %v5504, %v5637
    %v5694 = vadd.f32 %v5557, %v5637
    %v5695 = vadd.f32 %v5507, %v5642
    %v5696 = vadd.f32 %v5560, %v5642
    %v5697 = vadd.f32 %v5509, %v5647
    %v5698 = vadd.f32 %v5562, %v5647
    %v5699 = vadd.f32 %v5512, %v5652
    %v5700 = vadd.f32 %v5565, %v5652
    %v5701 = vadd.f32 %v5514, %v5657
    %v5702 = vadd.f32 %v5567, %v5657
    %v5703 = vadd.f32 %v5517, %v5662
    %v5704 = vadd.f32 %v5570, %v5662
    %v5705 = vadd.f32 %v5519, %v5667
    %v5706 = vadd.f32 %v5572, %v5667
    %v5707 = vadd.f32 %v5522, %v5672
    %v5708 = vadd.f32 %v5575, %v5672
    %v5709 = vadd.f32 %v5524, %v5677
    %v5710 = vadd.f32 %v5577, %v5677
    %v5711 = vmax.f32 %v5679, 0.0
    %v5712 = vmax.f32 %v5680, 0.0
    %v5713 = vmax.f32 %v5681, 0.0
    %v5714 = vmax.f32 %v5682, 0.0
    %v5715 = vmax.f32 %v5683, 0.0
    %v5716 = vmax.f32 %v5684, 0.0
    %v5717 = vmax.f32 %v5685, 0.0
    %v5718 = vmax.f32 %v5686, 0.0
    %v5719 = vmax.f32 %v5687, 0.0
    %v5720 = vmax.f32 %v5688, 0.0
    %v5721 = vmax.f32 %v5689, 0.0
    %v5722 = vmax.f32 %v5690, 0.0
    %v5723 = vmax.f32 %v5691, 0.0
    %v5724 = vmax.f32 %v5692, 0.0
    %v5725 = vmax.f32 %v5693, 0.0
    %v5726 = vmax.f32 %v5694, 0.0
    %v5727 = vmax.f32 %v5695, 0.0
    %v5728 = vmax.f32 %v5696, 0.0
    %v5729 = vmax.f32 %v5697, 0.0
    %v5730 = vmax.f32 %v5698, 0.0
    %v5731 = vmax.f32 %v5699, 0.0
    %v5732 = vmax.f32 %v5700, 0.0
    %v5733 = vmax.f32 %v5701, 0.0
    %v5734 = vmax.f32 %v5702, 0.0
    %v5735 = vmax.f32 %v5703, 0.0
    %v5736 = vmax.f32 %v5704, 0.0
    %v5737 = vmax.f32 %v5705, 0.0
    %v5738 = vmax.f32 %v5706, 0.0
    %v5739 = vmax.f32 %v5707, 0.0
    %v5740 = vmax.f32 %v5708, 0.0
    %v5741 = vmax.f32 %v5709, 0.0
    %v5742 = vmax.f32 %v5710, 0.0
    %v5743 = vpack.c.bf16 %v5713, %v5711
    %v5744 = vpack.c.bf16 %v5714, %v5712
    %v5745 = vpack.c.bf16 %v5717, %v5715
    %v5746 = vpack.c.bf16 %v5718, %v5716
    %v5747 = vpack.c.bf16 %v5721, %v5719
    %v5748 = vpack.c.bf16 %v5722, %v5720
    %v5749 = vpack.c.bf16 %v5725, %v5723
    %v5750 = vpack.c.bf16 %v5726, %v5724
    %v5751 = vpack.c.bf16 %v5729, %v5727
    %v5752 = vpack.c.bf16 %v5730, %v5728
    %v5753 = vpack.c.bf16 %v5733, %v5731
    %v5754 = vpack.c.bf16 %v5734, %v5732
    %v5755 = vpack.c.bf16 %v5737, %v5735
    %v5756 = vpack.c.bf16 %v5738, %v5736
    %v5757 = vpack.c.bf16 %v5741, %v5739
    %v5758 = vpack.c.bf16 %v5742, %v5740
    %v5759 = vld [vmem:[%s5] sm:$0xf]
    %v5760 = vld [vmem:[%s5 + $0x4] sm:$0xf]
    %v5761 = vld [vmem:[%s5 + $0x8] sm:$0xf]
    %v5762 = vld [vmem:[%s5 + $0xc] sm:$0xf]
    %v5763 = vld [vmem:[%s5 + $0x10] sm:$0xf]
    %v5764 = vld [vmem:[%s5 + $0x14] sm:$0xf]
    %v5765 = vld [vmem:[%s5 + $0x18] sm:$0xf]
    %v5766 = vld [vmem:[%s5 + $0x1c] sm:$0xf]
    %v5767 = vld [vmem:[%s5 + $0x20] sm:$0xf]
    %v5768 = vld [vmem:[%s5 + $0x24] sm:$0xf]
    %v5769 = vld [vmem:[%s5 + $0x28] sm:$0xf]
    %v5770 = vld [vmem:[%s5 + $0x2c] sm:$0xf]
    %v5771 = vld [vmem:[%s5 + $0x30] sm:$0xf]
    %v5772 = vld [vmem:[%s5 + $0x34] sm:$0xf]
    %v5773 = vld [vmem:[%s5 + $0x38] sm:$0xf]
    %v5774 = vld [vmem:[%s5 + $0x3c] sm:$0xf]
    %v5775 = vld [vmem:[%s6] sm:$0xff]
    %v5776 = vld [vmem:[%s6 + $0x8] sm:$0xff]
    %v5777 = vld [vmem:[%s6 + $0x10] sm:$0xff]
    %v5778 = vld [vmem:[%s6 + $0x18] sm:$0xff]
    %v5779 = vld [vmem:[%s6 + $0x20] sm:$0xff]
    %v5780 = vld [vmem:[%s6 + $0x28] sm:$0xff]
    %v5781 = vld [vmem:[%s6 + $0x30] sm:$0xff]
    %v5782 = vld [vmem:[%s6 + $0x38] sm:$0xff]
    %v5783 = vld [vmem:[%s6 + $0x40] sm:$0xff]
    %v5784 = vld [vmem:[%s6 + $0x48] sm:$0xff]
    %v5785 = vld [vmem:[%s6 + $0x50] sm:$0xff]
    %v5786 = vld [vmem:[%s6 + $0x58] sm:$0xff]
    %v5787 = vld [vmem:[%s6 + $0x60] sm:$0xff]
    %v5788 = vld [vmem:[%s6 + $0x68] sm:$0xff]
    %v5789 = vld [vmem:[%s6 + $0x70] sm:$0xff]
    %v5790 = vld [vmem:[%s6 + $0x78] sm:$0xff]
    %5792 = vset.pattern.permute.xlu0 0
    %5793 = vperm.xlu0 %5792, %v5775
    %v5794 = vpop.permute.xlu0 %5793
    %5797 = vset.pattern.permute.xlu0 0
    %5798 = vperm.xlu0 %5797, %v5776
    %v5799 = vpop.permute.xlu0 %5798
    %5802 = vset.pattern.permute.xlu0 0
    %5803 = vperm.xlu0 %5802, %v5777
    %v5804 = vpop.permute.xlu0 %5803
    %5807 = vset.pattern.permute.xlu0 0
    %5808 = vperm.xlu0 %5807, %v5778
    %v5809 = vpop.permute.xlu0 %5808
    %5812 = vset.pattern.permute.xlu0 0
    %5813 = vperm.xlu0 %5812, %v5779
    %v5814 = vpop.permute.xlu0 %5813
    %5817 = vset.pattern.permute.xlu0 0
    %5818 = vperm.xlu0 %5817, %v5780
    %v5819 = vpop.permute.xlu0 %5818
    %5822 = vset.pattern.permute.xlu0 0
    %5823 = vperm.xlu0 %5822, %v5781
    %v5824 = vpop.permute.xlu0 %5823
    %5827 = vset.pattern.permute.xlu0 0
    %5828 = vperm.xlu0 %5827, %v5782
    %v5829 = vpop.permute.xlu0 %5828
    %5832 = vset.pattern.permute.xlu0 0
    %5833 = vperm.xlu0 %5832, %v5783
    %v5834 = vpop.permute.xlu0 %5833
    %5837 = vset.pattern.permute.xlu0 0
    %5838 = vperm.xlu0 %5837, %v5784
    %v5839 = vpop.permute.xlu0 %5838
    %5842 = vset.pattern.permute.xlu0 0
    %5843 = vperm.xlu0 %5842, %v5785
    %v5844 = vpop.permute.xlu0 %5843
    %5847 = vset.pattern.permute.xlu0 0
    %5848 = vperm.xlu0 %5847, %v5786
    %v5849 = vpop.permute.xlu0 %5848
    %5852 = vset.pattern.permute.xlu0 0
    %5853 = vperm.xlu0 %5852, %v5787
    %v5854 = vpop.permute.xlu0 %5853
    %5857 = vset.pattern.permute.xlu0 0
    %5858 = vperm.xlu0 %5857, %v5788
    %v5859 = vpop.permute.xlu0 %5858
    %5862 = vset.pattern.permute.xlu0 0
    %5863 = vperm.xlu0 %5862, %v5789
    %v5864 = vpop.permute.xlu0 %5863
    %5867 = vset.pattern.permute.xlu0 0
    %5868 = vperm.xlu0 %5867, %v5790
    %v5869 = vpop.permute.xlu0 %5868
    %v5887 = vunpack.c.l.b16 %v5759
    %v5888 = vunpack.c.l.b16 %v5760
    %v5889 = vunpack.c.l.b16 %v5761
    %v5890 = vunpack.c.l.b16 %v5762
    %v5891 = vunpack.c.l.b16 %v5763
    %v5892 = vunpack.c.l.b16 %v5764
    %v5893 = vunpack.c.l.b16 %v5765
    %v5894 = vunpack.c.l.b16 %v5766
    %v5895 = vunpack.c.l.b16 %v5767
    %v5896 = vunpack.c.l.b16 %v5768
    %v5897 = vunpack.c.l.b16 %v5769
    %v5898 = vunpack.c.l.b16 %v5770
    %v5899 = vunpack.c.l.b16 %v5771
    %v5900 = vunpack.c.l.b16 %v5772
    %v5901 = vunpack.c.l.b16 %v5773
    %v5902 = vunpack.c.l.b16 %v5774
    %v5903 = vpack.c.b16 %v5888, %v5887
    %v5904 = vpack.c.b16 %v5890, %v5889
    %v5905 = vpack.c.b16 %v5892, %v5891
    %v5906 = vpack.c.b16 %v5894, %v5893
    %v5907 = vpack.c.b16 %v5896, %v5895
    %v5908 = vpack.c.b16 %v5898, %v5897
    %v5909 = vpack.c.b16 %v5900, %v5899
    %v5910 = vpack.c.b16 %v5902, %v5901
    %5919 = vmatpush.bf16.msra.mxu0 %v5757
    %5920 = vmatpush.bf16.msra.mxu0 %v5755
    %5921 = vmatpush.bf16.msra.mxu0 %v5753
    %5922 = vmatpush.bf16.msra.mxu0 %v5751
    %5923 = vmatpush.bf16.msra.mxu0 %v5749
    %5924 = vmatpush.bf16.msra.mxu0 %v5747
    %5925 = vmatpush.bf16.msra.mxu0 %v5745
    %5926 = vmatpush.bf16.msra.mxu0 %v5743
    %5927 = vmatmul.bf16.gmra.mxu0 %v5903
    %v5928 = vpop.f32.mrf.mxu0
    %v5929 = vadd.f32 %v5794, %v5928
    %v5930 = vpop.f32.mrf.mxu0
    %v5931 = vadd.f32 %v5799, %v5930
    %5932 = vmatmul.bf16.gmra.mxu0 %v5904
    %v5933 = vpop.f32.mrf.mxu0
    %v5934 = vadd.f32 %v5804, %v5933
    %v5935 = vpop.f32.mrf.mxu0
    %v5936 = vadd.f32 %v5809, %v5935
    %5937 = vmatmul.bf16.gmra.mxu0 %v5905
    %v5938 = vpop.f32.mrf.mxu0
    %v5939 = vadd.f32 %v5814, %v5938
    %v5940 = vpop.f32.mrf.mxu0
    %v5941 = vadd.f32 %v5819, %v5940
    %5942 = vmatmul.bf16.gmra.mxu0 %v5906
    %v5943 = vpop.f32.mrf.mxu0
    %v5944 = vadd.f32 %v5824, %v5943
    %v5945 = vpop.f32.mrf.mxu0
    %v5946 = vadd.f32 %v5829, %v5945
    %5947 = vmatmul.bf16.gmra.mxu0 %v5907
    %v5948 = vpop.f32.mrf.mxu0
    %v5949 = vadd.f32 %v5834, %v5948
    %v5950 = vpop.f32.mrf.mxu0
    %v5951 = vadd.f32 %v5839, %v5950
    %5952 = vmatmul.bf16.gmra.mxu0 %v5908
    %v5953 = vpop.f32.mrf.mxu0
    %v5954 = vadd.f32 %v5844, %v5953
    %v5955 = vpop.f32.mrf.mxu0
    %v5956 = vadd.f32 %v5849, %v5955
    %5957 = vmatmul.bf16.gmra.mxu0 %v5909
    %v5958 = vpop.f32.mrf.mxu0
    %v5959 = vadd.f32 %v5854, %v5958
    %v5960 = vpop.f32.mrf.mxu0
    %v5961 = vadd.f32 %v5859, %v5960
    %5962 = vmatmul.bf16.gmra.mxu0 %v5910
    %v5963 = vpop.f32.mrf.mxu0
    %v5964 = vadd.f32 %v5864, %v5963
    %v5965 = vpop.f32.mrf.mxu0
    %v5966 = vadd.f32 %v5869, %v5965
    %5967 = vdwg.mxu0
    %5968 = vmatpush.bf16.msra.mxu0 %v5758
    %5969 = vmatpush.bf16.msra.mxu0 %v5756
    %5970 = vmatpush.bf16.msra.mxu0 %v5754
    %5971 = vmatpush.bf16.msra.mxu0 %v5752
    %5972 = vmatpush.bf16.msra.mxu0 %v5750
    %5973 = vmatpush.bf16.msra.mxu0 %v5748
    %5974 = vmatpush.bf16.msra.mxu0 %v5746
    %5975 = vmatpush.bf16.msra.mxu0 %v5744
    %5976 = vmatmul.bf16.gmra.mxu0 %v5903
    %v5977 = vpop.f32.mrf.mxu0
    %v5978 = vadd.f32 %v5794, %v5977
    %v5979 = vpop.f32.mrf.mxu0
    %v5980 = vadd.f32 %v5799, %v5979
    %5981 = vmatmul.bf16.gmra.mxu0 %v5904
    %v5982 = vpop.f32.mrf.mxu0
    %v5983 = vadd.f32 %v5804, %v5982
    %v5984 = vpop.f32.mrf.mxu0
    %v5985 = vadd.f32 %v5809, %v5984
    %5986 = vmatmul.bf16.gmra.mxu0 %v5905
    %v5987 = vpop.f32.mrf.mxu0
    %v5988 = vadd.f32 %v5814, %v5987
    %v5989 = vpop.f32.mrf.mxu0
    %v5990 = vadd.f32 %v5819, %v5989
    %5991 = vmatmul.bf16.gmra.mxu0 %v5906
    %v5992 = vpop.f32.mrf.mxu0
    %v5993 = vadd.f32 %v5824, %v5992
    %v5994 = vpop.f32.mrf.mxu0
    %v5995 = vadd.f32 %v5829, %v5994
    %5996 = vmatmul.bf16.gmra.mxu0 %v5907
    %v5997 = vpop.f32.mrf.mxu0
    %v5998 = vadd.f32 %v5834, %v5997
    %v5999 = vpop.f32.mrf.mxu0
    %v6000 = vadd.f32 %v5839, %v5999
    %6001 = vmatmul.bf16.gmra.mxu0 %v5908
    %v6002 = vpop.f32.mrf.mxu0
    %v6003 = vadd.f32 %v5844, %v6002
    %v6004 = vpop.f32.mrf.mxu0
    %v6005 = vadd.f32 %v5849, %v6004
    %6006 = vmatmul.bf16.gmra.mxu0 %v5909
    %v6007 = vpop.f32.mrf.mxu0
    %v6008 = vadd.f32 %v5854, %v6007
    %v6009 = vpop.f32.mrf.mxu0
    %v6010 = vadd.f32 %v5859, %v6009
    %6011 = vmatmul.bf16.gmra.mxu0 %v5910
    %v6012 = vpop.f32.mrf.mxu0
    %v6013 = vadd.f32 %v5864, %v6012
    %v6014 = vpop.f32.mrf.mxu0
    %v6015 = vadd.f32 %v5869, %v6014
    %6016 = vdwg.mxu0
    %v6017 = vmax.f32 %v5929, 0.0
    %v6018 = vmax.f32 %v5978, 0.0
    %v6019 = vmax.f32 %v5931, 0.0
    %v6020 = vmax.f32 %v5980, 0.0
    %v6021 = vmax.f32 %v5934, 0.0
    %v6022 = vmax.f32 %v5983, 0.0
    %v6023 = vmax.f32 %v5936, 0.0
    %v6024 = vmax.f32 %v5985, 0.0
    %v6025 = vmax.f32 %v5939, 0.0
    %v6026 = vmax.f32 %v5988, 0.0
    %v6027 = vmax.f32 %v5941, 0.0
    %v6028 = vmax.f32 %v5990, 0.0
    %v6029 = vmax.f32 %v5944, 0.0
    %v6030 = vmax.f32 %v5993, 0.0
    %v6031 = vmax.f32 %v5946, 0.0
    %v6032 = vmax.f32 %v5995, 0.0
    %v6033 = vmax.f32 %v5949, 0.0
    %v6034 = vmax.f32 %v5998, 0.0
    %v6035 = vmax.f32 %v5951, 0.0
    %v6036 = vmax.f32 %v6000, 0.0
    %v6037 = vmax.f32 %v5954, 0.0
    %v6038 = vmax.f32 %v6003, 0.0
    %v6039 = vmax.f32 %v5956, 0.0
    %v6040 = vmax.f32 %v6005, 0.0
    %v6041 = vmax.f32 %v5959, 0.0
    %v6042 = vmax.f32 %v6008, 0.0
    %v6043 = vmax.f32 %v5961, 0.0
    %v6044 = vmax.f32 %v6010, 0.0
    %v6045 = vmax.f32 %v5964, 0.0
    %v6046 = vmax.f32 %v6013, 0.0
    %v6047 = vmax.f32 %v5966, 0.0
    %v6048 = vmax.f32 %v6015, 0.0
    %v6049 = vpack.c.bf16 %v6019, %v6017
    %v6050 = vpack.c.bf16 %v6020, %v6018
    %v6051 = vpack.c.bf16 %v6023, %v6021
    %v6052 = vpack.c.bf16 %v6024, %v6022
    %v6053 = vpack.c.bf16 %v6027, %v6025
    %v6054 = vpack.c.bf16 %v6028, %v6026
    %v6055 = vpack.c.bf16 %v6031, %v6029
    %v6056 = vpack.c.bf16 %v6032, %v6030
    %v6057 = vpack.c.bf16 %v6035, %v6033
    %v6058 = vpack.c.bf16 %v6036, %v6034
    %v6059 = vpack.c.bf16 %v6039, %v6037
    %v6060 = vpack.c.bf16 %v6040, %v6038
    %v6061 = vpack.c.bf16 %v6043, %v6041
    %v6062 = vpack.c.bf16 %v6044, %v6042
    %v6063 = vpack.c.bf16 %v6047, %v6045
    %v6064 = vpack.c.bf16 %v6048, %v6046
    %v6065 = vld [vmem:[%s7] sm:$0xf]
    %6066 = vmatpush.bf16.msra.mxu0 %v6063
    %6067 = vmatpush.bf16.msra.mxu0 %v6061
    %6068 = vmatpush.bf16.msra.mxu0 %v6059
    %6069 = vmatpush.bf16.msra.mxu0 %v6057
    %6070 = vmatpush.bf16.msra.mxu0 %v6055
    %6071 = vmatpush.bf16.msra.mxu0 %v6053
    %6072 = vmatpush.bf16.msra.mxu0 %v6051
    %6073 = vmatpush.bf16.msra.mxu0 %v6049
    %6074 = vmatmul.bf16.gmra.mxu0 %v6065
    %v6075 = vpop.f32.mrf.mxu0
    %v6076 = vadd.f32 0.0, %v6075
    %v6077 = vpop.f32.mrf.mxu0
    %6078 = vdwg.mxu0
    %6079 = vmatpush.bf16.msra.mxu0 %v6064
    %6080 = vmatpush.bf16.msra.mxu0 %v6062
    %6081 = vmatpush.bf16.msra.mxu0 %v6060
    %6082 = vmatpush.bf16.msra.mxu0 %v6058
    %6083 = vmatpush.bf16.msra.mxu0 %v6056
    %6084 = vmatpush.bf16.msra.mxu0 %v6054
    %6085 = vmatpush.bf16.msra.mxu0 %v6052
    %6086 = vmatpush.bf16.msra.mxu0 %v6050
    %6087 = vmatmul.bf16.gmra.mxu0 %v6065
    %v6088 = vpop.f32.mrf.mxu0
    %v6089 = vadd.f32 0.0, %v6088
    %v6090 = vpop.f32.mrf.mxu0
    %6091 = vdwg.mxu0
    %v6092 = vadd.f32 %v6076, %v5527
    %v6093 = vadd.f32 %v6089, %v5580
    %v6094 = vld [vmem:[#allocation2] sm:$0x1]
    %6096 = vset.pattern.permute.xlu0 0
    %6097 = vperm.xlu0 %6096, %v6094
    %v6098 = vpop.permute.xlu0 %6097
    %v6100 = vperm.slane %v6098, 0
    %v6101 = vadd.f32 %v6092, %v6100
    %v6102 = vadd.f32 %v6093, %v6100
    %v6105 = vrot.slane %v6102, 7
    %vm6106 = vcmask 1040384
    %v6107 = vsel %vm6106, %v6101, %v6105
    %v6109 = vlaneseq
    %vm6110 = vcmp.ge.s32.totalorder %v6109, 0
    %vm6111 = vcmp.lt.s32.totalorder %v6109, 256
    %vm6112 = vmand %vm6110, %vm6111
    %6113 = vst.msk [vmem:[#allocation3] sm:$0x3] %vm6112, %v6107
    // Predicated region
    $region38: #{tpu_custom_call.1} parent=1 // pred_check
      _
    $region39: #{tpu_custom_call.1} parent=1 // pred_check_branch
      %6115 = sbr.rel (0) target = $region41
    $region40: #{tpu_custom_call.1} parent=1 // pred_region
      %6117 = vsyncadd [#allocation4], 0
      %s6119 = sshll.u32 [#allocation3], 4
      %s6120 = int_to_ptr.vmem [resolvable:$true] %s6119
      %s6121 = sshll.u32 %s9, 4
      %s6122 = int_to_ptr.hbm [resolvable:$true] %s6121
      %6124 = dma.vmem_to_hbm [thread:$0]  %s6120, 32, %s6122, [#allocation4]
    $region41: #{tpu_custom_call.1} parent=1 // pred_fallthru
      _
    // Predicated region
    $region42: #{tpu_custom_call.1} parent=1 // pred_check
      _
    $region43: #{tpu_custom_call.1} parent=1 // pred_check_branch
      %6126 = sbr.rel (0) target = $region45
    $region44: #{tpu_custom_call.1} parent=1 // pred_region
      %6128 = dma.done [#allocation4], 32
    $region45: #{tpu_custom_call.1} parent=1 // pred_fallthru
      _
    %6129 = vsyncpa [#allocation4], 1

</llo_original>
